<compile_context>
chip_gen: v7x
topology: tpu7x:2x2x1
jax: 0.10.0
libtpu: 0.0.40
codegen_flags: <defaults>
</compile_context>

<pallas_src>
import jax
import jax.numpy as jnp
import numpy as np
from jax.experimental import pallas as pl
from jax.experimental.pallas import tpu as pltpu

EPS = 1e-5
LANES = 128


# --------------------------------------------------------------------------
# In-kernel helpers
# --------------------------------------------------------------------------
def _conv3x3(xp, w_ref):
    """3x3 stride-1 conv of a zero-padded (H+2, W+2, Cp) bf16 image.

    w_ref holds HWIO weights reshaped to (3, 3*Cp, Cp): the three horizontal
    taps fuse into one K = 3*Cp contraction per kernel row, i.e. 3 deep MXU
    matmuls per image instead of 9 skinny K=Cp ones.

    The horizontal im2col is built once per image (hoisted out of the dy
    loop) and the three dy contributions accumulate in a value, so no f32
    accumulator ever bounces through VMEM scratch.

    Returns the (H*W, Cp) f32 accumulator value.
    """
    Hp, Wp, Cp = xp.shape
    H, W = Hp - 2, Wp - 2
    patch_full = jnp.concatenate(
        [xp[:, 0:W, :], xp[:, 1:W + 1, :], xp[:, 2:W + 2, :]],
        axis=-1)                                           # (H+2, W, 3*Cp) bf16
    acc = None
    for dy in range(3):                                    # static unroll
        patch = patch_full[dy:dy + H].reshape(H * W, 3 * Cp)
        contrib = jnp.dot(patch, w_ref[dy],
                          preferred_element_type=jnp.float32)
        acc = contrib if acc is None else acc + contrib
    return acc


def _stats(acc):
    """Per-image per-channel (sum, sum-of-squares) from the f32 accumulator."""
    s = jnp.sum(acc, axis=0, keepdims=True)
    ss = jnp.sum(acc * acc, axis=0, keepdims=True)
    return jnp.concatenate([s, ss], axis=0)                # (2, Cp) f32


# --------------------------------------------------------------------------
# Kernels
# --------------------------------------------------------------------------
def _conv1_kernel(xpad_ref, w1_ref, y1_ref, stats_ref):
    _, Hp, Wp, Cp = xpad_ref.shape
    H, W = Hp - 2, Wp - 2
    xp = xpad_ref[...].reshape(Hp, Wp, Cp)                 # bf16 padded image
    acc = _conv3x3(xp, w1_ref)
    y1_ref[...] = acc.reshape(1, H, W, Cp).astype(y1_ref.dtype)   # bf16 store
    stats_ref[...] = _stats(acc).reshape(1, 2, Cp)


def _conv2_kernel(y1_ref, scale1_ref, shift1_ref, w2_ref, y2_ref, stats_ref):
    _, H, W, Cp = y1_ref.shape
    # bn1 (folded per-channel scale/shift, f32 math) + ReLU, lane-dense view.
    h = y1_ref[...].reshape(H * W, Cp).astype(jnp.float32)
    h = jnp.maximum(h * scale1_ref[...] + shift1_ref[...], 0.0)
    hb = h.reshape(H, W, Cp).astype(jnp.bfloat16)

    # conv2 zero padding built as a value (no VMEM store/reload round-trip).
    zc = jnp.zeros((H, 1, Cp), jnp.bfloat16)
    zr = jnp.zeros((1, W + 2, Cp), jnp.bfloat16)
    hp = jnp.concatenate(
        [zr, jnp.concatenate([zc, hb, zc], axis=1), zr], axis=0)  # (H+2,W+2,Cp)

    acc = _conv3x3(hp, w2_ref)
    y2_ref[...] = acc.reshape(1, H, W, Cp).astype(y2_ref.dtype)   # bf16 store
    stats_ref[...] = _stats(acc).reshape(1, 2, Cp)


def _bn2_add_relu_kernel(y2_ref, res_ref, scale2_ref, shift2_ref, out_ref):
    _, HB, W, Cp = y2_ref.shape
    o = (y2_ref[...].reshape(HB * W, Cp).astype(jnp.float32)
         * scale2_ref[...] + shift2_ref[...])
    res = res_ref[...].reshape(HB * W, Cp)                 # f32 residual (= x)
    o = jnp.maximum(o + res, 0.0)
    out_ref[...] = o.reshape(1, HB, W, Cp).astype(out_ref.dtype)


# --------------------------------------------------------------------------
# Wrapper
# --------------------------------------------------------------------------
def _fold_bn(stats, gamma_p, beta_p, count):
    """Fold training-mode BatchNorm (global batch stats) into scale/shift."""
    tot = jnp.sum(stats, axis=0)                           # (2, Cp)
    mean = tot[0] / count
    var = jnp.maximum(tot[1] / count - mean * mean, 0.0)
    scale = gamma_p * jax.lax.rsqrt(var + EPS)
    shift = beta_p - mean * scale
    return scale.reshape(1, -1), shift.reshape(1, -1)


@jax.jit
def basic_block(x_nhwc, w1_hwio, g1, b1, w2_hwio, g2, b2):
    """x_nhwc: (N,H,W,C) f32; w*_hwio: (3,3,C,C) f32; g*,b*: (C,) f32."""
    N, H, W, C = x_nhwc.shape
    assert w1_hwio.shape[-1] == C and w1_hwio.shape[-2] == C, \
        "identity residual requires inplanes == planes"
    # TODO(synk): nn.BatchNorm2d running-stat updates (training-time side
    # effect) are not emitted; the forward output does not depend on them.

    Cp = ((C + LANES - 1) // LANES) * LANES                # lane-dense channels
    cpad = Cp - C
    # TODO(synk): for C << 128 this padding inflates FLOPs/HBM bytes ~Cp/C; a
    # small-C layout (W or N*W in lanes, channels in sublanes) would avoid it.

    # 1-pixel spatial halo for conv1 + channel padding; bf16 MXU operands.
    xpad = jnp.pad(x_nhwc, ((0, 0), (1, 1), (1, 1), (0, cpad)))
    xpad = xpad.astype(jnp.bfloat16)
    # f32 residual (unpadded spatially, channel-padded): full-precision skip.
    x_res = jnp.pad(x_nhwc, ((0, 0), (0, 0), (0, 0), (0, cpad)))

    def prep_w(w):
        w = jnp.pad(w, ((0, 0), (0, 0), (0, cpad), (0, cpad)))
        return w.reshape(3, 3 * Cp, Cp).astype(jnp.bfloat16)

    w1 = prep_w(w1_hwio)
    w2 = prep_w(w2_hwio)
    g1p = jnp.pad(g1.astype(jnp.float32), (0, cpad))
    b1p = jnp.pad(b1.astype(jnp.float32), (0, cpad))
    g2p = jnp.pad(g2.astype(jnp.float32), (0, cpad))
    b2p = jnp.pad(b2.astype(jnp.float32), (0, cpad))

    params_1d = pltpu.CompilerParams(
        dimension_semantics=("parallel",),                 # megacore sharding
        vmem_limit_bytes=32 * 1024 * 1024)                 # safe on v5e/v6e/v7x
    # NOTE: on v6e (128 MiB VMEM) larger multi-image blocks would amortize the
    # per-step pipeline overhead; single-image blocks are kept for v7x safety.

    img_spec = pl.BlockSpec((1, H, W, Cp), lambda n: (n, 0, 0, 0))
    pad_spec = pl.BlockSpec((1, H + 2, W + 2, Cp), lambda n: (n, 0, 0, 0))
    # Grid-invariant operands (index_map constant) are never re-fetched by the
    # pipeline; single-buffering them would only trim VMEM footprint.
    w_spec = pl.BlockSpec((3, 3 * Cp, Cp), lambda n: (0, 0, 0))
    vec_spec = pl.BlockSpec((1, Cp), lambda n: (0, 0))
    stats_spec = pl.BlockSpec((1, 2, Cp), lambda n: (n, 0, 0))

    # --- conv1 + per-image BN statistics -------------------------------
    y1, stats1 = pl.pallas_call(
        _conv1_kernel,
        grid=(N,),
        in_specs=[pad_spec, w_spec],
        out_specs=(img_spec, stats_spec),
        out_shape=(jax.ShapeDtypeStruct((N, H, W, Cp), jnp.bfloat16),
                   jax.ShapeDtypeStruct((N, 2, Cp), jnp.float32)),
        compiler_params=params_1d,
    )(xpad, w1)

    count = N * H * W
    scale1, shift1 = _fold_bn(stats1, g1p, b1p, count)

    # --- bn1 + relu + conv2 + per-image BN statistics ------------------
    y2, stats2 = pl.pallas_call(
        _conv2_kernel,
        grid=(N,),
        in_specs=[img_spec, vec_spec, vec_spec, w_spec],
        out_specs=(img_spec, stats_spec),
        out_shape=(jax.ShapeDtypeStruct((N, H, W, Cp), jnp.bfloat16),
                   jax.ShapeDtypeStruct((N, 2, Cp), jnp.float32)),
        compiler_params=params_1d,
    )(y1, scale1, shift1, w2)

    scale2, shift2 = _fold_bn(stats2, g2p, b2p, count)

    # --- bn2 + residual + relu (memory-bound, 2-D grid for pipeline depth) --
    HB = H // 2 if (H % 2 == 0 and H >= 2) else H
    row_spec = pl.BlockSpec((1, HB, W, Cp), lambda n, r: (n, r, 0, 0))
    vec_spec2 = pl.BlockSpec((1, Cp), lambda n, r: (0, 0))
    params_2d = pltpu.CompilerParams(
        dimension_semantics=("parallel", "parallel"),
        vmem_limit_bytes=32 * 1024 * 1024)

    out = pl.pallas_call(
        _bn2_add_relu_kernel,
        grid=(N, H // HB),
        in_specs=[row_spec, row_spec, vec_spec2, vec_spec2],
        out_specs=row_spec,
        out_shape=jax.ShapeDtypeStruct((N, H, W, Cp), jnp.float32),
        compiler_params=params_2d,
    )(y2, x_res, scale2, shift2)

    # TODO(synk): the channel slice below is one extra memory pass; consumers
    # that accept the padded-Cp layout should take `out` directly instead.
    return out[..., :C]


# --------------------------------------------------------------------------
# Pure-JAX reference (f32 NHWC conv + training-mode BN)
# --------------------------------------------------------------------------
def _reference(x_nhwc, w1_hwio, g1, b1, w2_hwio, g2, b2):
    def conv(x, w):
        return jax.lax.conv_general_dilated(
            x, w, window_strides=(1, 1), padding=((1, 1), (1, 1)),
            dimension_numbers=("NHWC", "HWIO", "NHWC"))

    def bn(x, g, b):
        m = jnp.mean(x, axis=(0, 1, 2), keepdims=True)
        v = jnp.mean((x - m) ** 2, axis=(0, 1, 2), keepdims=True)
        return (x - m) * jax.lax.rsqrt(v + EPS) * g + b

    h = jnp.maximum(bn(conv(x_nhwc, w1_hwio), g1, b1), 0.0)
    o = bn(conv(h, w2_hwio), g2, b2) + x_nhwc
    return jnp.maximum(o, 0.0)


if __name__ == "__main__":
    # Small shapes: batch=2, inplanes=planes=8, spatial 16x16 (NCHW in torch).
    N, C, H, W = 2, 8, 16, 16
    key = jax.random.PRNGKey(0)
    kx, kw1, kw2, kg1, kb1, kg2, kb2 = jax.random.split(key, 7)

    x_nchw = jax.random.normal(kx, (N, C, H, W), jnp.float32)
    x_nhwc = jnp.transpose(x_nchw, (0, 2, 3, 1))           # kernel layout: NHWC

    std = float(np.sqrt(2.0 / (9 * C)))                    # kaiming-like
    w1_oihw = jax.random.normal(kw1, (C, C, 3, 3), jnp.float32) * std
    w2_oihw = jax.random.normal(kw2, (C, C, 3, 3), jnp.float32) * std
    w1_hwio = jnp.transpose(w1_oihw, (2, 3, 1, 0))
    w2_hwio = jnp.transpose(w2_oihw, (2, 3, 1, 0))

    g1 = 1.0 + 0.1 * jax.random.normal(kg1, (C,), jnp.float32)
    b1 = 0.1 * jax.random.normal(kb1, (C,), jnp.float32)
    g2 = 1.0 + 0.1 * jax.random.normal(kg2, (C,), jnp.float32)
    b2 = 0.1 * jax.random.normal(kb2, (C,), jnp.float32)

    out_nhwc = basic_block(x_nhwc, w1_hwio, g1, b1, w2_hwio, g2, b2)
    out_nhwc = jax.block_until_ready(out_nhwc)
    out_nchw = jnp.transpose(out_nhwc, (0, 3, 1, 2))       # back to torch NCHW

    ref = _reference(x_nhwc, w1_hwio, g1, b1, w2_hwio, g2, b2)
    # Tolerance covers bf16 MXU operands and bf16 inter-kernel activations
    # (y1, y2) vs. the pure-f32 reference; accumulation, BN statistics and the
    # residual add are all f32.
    np.testing.assert_allclose(np.asarray(out_nhwc), np.asarray(ref),
                               rtol=2e-2, atol=4e-2)
    assert out_nchw.shape == (N, C, H, W)
    print("KERNEL_OK")
</pallas_src>

<mosaic_0001>
module attributes {stable_mosaic.version = 11 : i64} {
  func.func @_conv1_kernel(%arg0: i32, %arg1: memref<1x18x18x128xbf16, #tpu.memory_space<vmem>>, %arg2: memref<3x384x128xbf16, #tpu.memory_space<vmem>>, %arg3: memref<1x16x16x128xbf16, #tpu.memory_space<vmem>>, %arg4: memref<1x2x128xf32, #tpu.memory_space<vmem>>) attributes {dimension_semantics = [#tpu.dimension_semantics<parallel>], iteration_bounds = array<i64: 2>, scalar_prefetch = 0 : i64, scratch_operands = 0 : i64, tpu.core_type = #tpu.core_type<tc>, window_params = [{transform_indices = @transform_0, window_bounds = array<i64: 1, 18, 18, 128>}, {pipeline_mode = #tpu.pipeline_mode<synchronous>, transform_indices = @transform_1, window_bounds = array<i64: 3, 384, 128>}, {transform_indices = @transform_2, window_bounds = array<i64: 1, 16, 16, 128>}, {transform_indices = @transform_3, window_bounds = array<i64: 1, 2, 128>}]} {
    %c0 = arith.constant 0 : index
    %c0_0 = arith.constant 0 : index
    %c0_1 = arith.constant 0 : index
    %c0_2 = arith.constant 0 : index
    %0 = vector.load %arg1[%c0, %c0_0, %c0_1, %c0_2] : memref<1x18x18x128xbf16, #tpu.memory_space<vmem>>, vector<1x18x18x128xbf16>
    %1 = vector.shape_cast %0 : vector<1x18x18x128xbf16> to vector<18x18x128xbf16>
    %2 = vector.extract_strided_slice %1 {offsets = [0, 0, 0], sizes = [18, 16, 128], strides = [1, 1, 1]} : vector<18x18x128xbf16> to vector<18x16x128xbf16>
    %3 = vector.extract_strided_slice %1 {offsets = [0, 1, 0], sizes = [18, 16, 128], strides = [1, 1, 1]} : vector<18x18x128xbf16> to vector<18x16x128xbf16>
    %4 = vector.extract_strided_slice %1 {offsets = [0, 2, 0], sizes = [18, 16, 128], strides = [1, 1, 1]} : vector<18x18x128xbf16> to vector<18x16x128xbf16>
    %5 = tpu.concatenate %2, %3, %4 in 2 : vector<18x16x128xbf16>, vector<18x16x128xbf16>, vector<18x16x128xbf16> -> vector<18x16x384xbf16>
    %6 = vector.extract_strided_slice %5 {offsets = [0, 0, 0], sizes = [16, 16, 384], strides = [1, 1, 1]} : vector<18x16x384xbf16> to vector<16x16x384xbf16>
    %7 = vector.shape_cast %6 : vector<16x16x384xbf16> to vector<256x384xbf16>
    %c0_3 = arith.constant 0 : index
    %c0_4 = arith.constant 0 : index
    %c0_5 = arith.constant 0 : index
    %8 = vector.load %arg2[%c0_3, %c0_4, %c0_5] : memref<3x384x128xbf16, #tpu.memory_space<vmem>>, vector<1x384x128xbf16>
    %9 = vector.shape_cast %8 : vector<1x384x128xbf16> to vector<384x128xbf16>
    %cst = arith.constant dense<0.000000e+00> : vector<256x128xf32>
    %10 = tpu.matmul %7, %9, %cst {dimension_numbers = #tpu.dot_dimension_numbers<[1], [0], [0], [1], [0, 0, 1, 1], [], []>} : vector<256x384xbf16>, vector<384x128xbf16>, vector<256x128xf32> -> vector<256x128xf32>
    %11 = vector.extract_strided_slice %5 {offsets = [1, 0, 0], sizes = [16, 16, 384], strides = [1, 1, 1]} : vector<18x16x384xbf16> to vector<16x16x384xbf16>
    %12 = vector.shape_cast %11 : vector<16x16x384xbf16> to vector<256x384xbf16>
    %c1 = arith.constant 1 : index
    %c0_6 = arith.constant 0 : index
    %c0_7 = arith.constant 0 : index
    %13 = vector.load %arg2[%c1, %c0_6, %c0_7] : memref<3x384x128xbf16, #tpu.memory_space<vmem>>, vector<1x384x128xbf16>
    %14 = vector.shape_cast %13 : vector<1x384x128xbf16> to vector<384x128xbf16>
    %cst_8 = arith.constant dense<0.000000e+00> : vector<256x128xf32>
    %15 = tpu.matmul %12, %14, %cst_8 {dimension_numbers = #tpu.dot_dimension_numbers<[1], [0], [0], [1], [0, 0, 1, 1], [], []>} : vector<256x384xbf16>, vector<384x128xbf16>, vector<256x128xf32> -> vector<256x128xf32>
    %16 = arith.addf %10, %15 : vector<256x128xf32>
    %17 = vector.extract_strided_slice %5 {offsets = [2, 0, 0], sizes = [16, 16, 384], strides = [1, 1, 1]} : vector<18x16x384xbf16> to vector<16x16x384xbf16>
    %18 = vector.shape_cast %17 : vector<16x16x384xbf16> to vector<256x384xbf16>
    %c2 = arith.constant 2 : index
    %c0_9 = arith.constant 0 : index
    %c0_10 = arith.constant 0 : index
    %19 = vector.load %arg2[%c2, %c0_9, %c0_10] : memref<3x384x128xbf16, #tpu.memory_space<vmem>>, vector<1x384x128xbf16>
    %20 = vector.shape_cast %19 : vector<1x384x128xbf16> to vector<384x128xbf16>
    %cst_11 = arith.constant dense<0.000000e+00> : vector<256x128xf32>
    %21 = tpu.matmul %18, %20, %cst_11 {dimension_numbers = #tpu.dot_dimension_numbers<[1], [0], [0], [1], [0, 0, 1, 1], [], []>} : vector<256x384xbf16>, vector<384x128xbf16>, vector<256x128xf32> -> vector<256x128xf32>
    %22 = arith.addf %16, %21 : vector<256x128xf32>
    %23 = vector.shape_cast %22 : vector<256x128xf32> to vector<1x16x16x128xf32>
    %24 = arith.truncf %23 : vector<1x16x16x128xf32> to vector<1x16x16x128xbf16>
    %c0_12 = arith.constant 0 : index
    %c0_13 = arith.constant 0 : index
    %c0_14 = arith.constant 0 : index
    %c0_15 = arith.constant 0 : index
    %25 = vector.load %arg3[%c0_12, %c0_13, %c0_14, %c0_15] : memref<1x16x16x128xbf16, #tpu.memory_space<vmem>>, vector<1x16x16x128xbf16>
    tpu.vector_store %arg3[%c0_12, %c0_13, %c0_14, %c0_15], %24 {strides = array<i32>} : memref<1x16x16x128xbf16, #tpu.memory_space<vmem>>, vector<1x16x16x128xbf16>,
    %cst_16 = arith.constant dense<0.000000e+00> : vector<128xf32>
    %26 = vector.multi_reduction <add>, %22, %cst_16 [0] : vector<256x128xf32> to vector<128xf32>
    %27 = vector.shape_cast %26 : vector<128xf32> to vector<1x128xf32>
    %28 = arith.mulf %22, %22 : vector<256x128xf32>
    %cst_17 = arith.constant dense<0.000000e+00> : vector<128xf32>
    %29 = vector.multi_reduction <add>, %28, %cst_17 [0] : vector<256x128xf32> to vector<128xf32>
    %30 = vector.shape_cast %29 : vector<128xf32> to vector<1x128xf32>
    %31 = tpu.concatenate %27, %30 in 0 : vector<1x128xf32>, vector<1x128xf32> -> vector<2x128xf32>
    %32 = vector.shape_cast %31 : vector<2x128xf32> to vector<1x2x128xf32>
    %c0_18 = arith.constant 0 : index
    %c0_19 = arith.constant 0 : index
    %c0_20 = arith.constant 0 : index
    %33 = vector.load %arg4[%c0_18, %c0_19, %c0_20] : memref<1x2x128xf32, #tpu.memory_space<vmem>>, vector<1x2x128xf32>
    tpu.vector_store %arg4[%c0_18, %c0_19, %c0_20], %32 {strides = array<i32>} : memref<1x2x128xf32, #tpu.memory_space<vmem>>, vector<1x2x128xf32>,
    return
  }
  func.func @transform_0(%arg0: i32) -> (i32, i32, i32, i32) {
    %c0_i32 = arith.constant 0 : i32
    %c0_i32_0 = arith.constant 0 : i32
    %c0_i32_1 = arith.constant 0 : i32
    %c0_i32_2 = arith.constant 0 : i32
    return %arg0, %c0_i32, %c0_i32_0, %c0_i32_1 : i32, i32, i32, i32
  }
  func.func @transform_1(%arg0: i32) -> (i32, i32, i32) {
    %c0_i32 = arith.constant 0 : i32
    %c0_i32_0 = arith.constant 0 : i32
    %c0_i32_1 = arith.constant 0 : i32
    %c0_i32_2 = arith.constant 0 : i32
    return %c0_i32, %c0_i32_0, %c0_i32_1 : i32, i32, i32
  }
  func.func @transform_2(%arg0: i32) -> (i32, i32, i32, i32) {
    %c0_i32 = arith.constant 0 : i32
    %c0_i32_0 = arith.constant 0 : i32
    %c0_i32_1 = arith.constant 0 : i32
    %c0_i32_2 = arith.constant 0 : i32
    return %arg0, %c0_i32, %c0_i32_0, %c0_i32_1 : i32, i32, i32, i32
  }
  func.func @transform_3(%arg0: i32) -> (i32, i32, i32) {
    %c0_i32 = arith.constant 0 : i32
    %c0_i32_0 = arith.constant 0 : i32
    %c0_i32_1 = arith.constant 0 : i32
    return %arg0, %c0_i32, %c0_i32_0 : i32, i32, i32
  }
}

module attributes {stable_mosaic.version = 11 : i64} {
  func.func @_conv2_kernel(%arg0: i32, %arg1: memref<1x16x16x128xbf16, #tpu.memory_space<vmem>>, %arg2: memref<1x128xf32, #tpu.memory_space<vmem>>, %arg3: memref<1x128xf32, #tpu.memory_space<vmem>>, %arg4: memref<3x384x128xbf16, #tpu.memory_space<vmem>>, %arg5: memref<1x16x16x128xbf16, #tpu.memory_space<vmem>>, %arg6: memref<1x2x128xf32, #tpu.memory_space<vmem>>) attributes {dimension_semantics = [#tpu.dimension_semantics<parallel>], iteration_bounds = array<i64: 2>, scalar_prefetch = 0 : i64, scratch_operands = 0 : i64, tpu.core_type = #tpu.core_type<tc>, window_params = [{transform_indices = @transform_0, window_bounds = array<i64: 1, 16, 16, 128>}, {pipeline_mode = #tpu.pipeline_mode<synchronous>, transform_indices = @transform_1, window_bounds = array<i64: 1, 128>}, {pipeline_mode = #tpu.pipeline_mode<synchronous>, transform_indices = @transform_2, window_bounds = array<i64: 1, 128>}, {pipeline_mode = #tpu.pipeline_mode<synchronous>, transform_indices = @transform_3, window_bounds = array<i64: 3, 384, 128>}, {transform_indices = @transform_4, window_bounds = array<i64: 1, 16, 16, 128>}, {transform_indices = @transform_5, window_bounds = array<i64: 1, 2, 128>}]} {
    %c0 = arith.constant 0 : index
    %c0_0 = arith.constant 0 : index
    %c0_1 = arith.constant 0 : index
    %c0_2 = arith.constant 0 : index
    %0 = vector.load %arg1[%c0, %c0_0, %c0_1, %c0_2] : memref<1x16x16x128xbf16, #tpu.memory_space<vmem>>, vector<1x16x16x128xbf16>
    %1 = vector.shape_cast %0 : vector<1x16x16x128xbf16> to vector<256x128xbf16>
    %2 = arith.extf %1 : vector<256x128xbf16> to vector<256x128xf32>
    %c0_3 = arith.constant 0 : index
    %c0_4 = arith.constant 0 : index
    %3 = vector.load %arg2[%c0_3, %c0_4] : memref<1x128xf32, #tpu.memory_space<vmem>>, vector<1x128xf32>
    %4 = vector.broadcast %3 : vector<1x128xf32> to vector<256x128xf32>
    %5 = arith.mulf %2, %4 : vector<256x128xf32>
    %c0_5 = arith.constant 0 : index
    %c0_6 = arith.constant 0 : index
    %6 = vector.load %arg3[%c0_5, %c0_6] : memref<1x128xf32, #tpu.memory_space<vmem>>, vector<1x128xf32>
    %7 = vector.broadcast %6 : vector<1x128xf32> to vector<256x128xf32>
    %8 = arith.addf %5, %7 : vector<256x128xf32>
    %cst = arith.constant 0.000000e+00 : f32
    %9 = vector.broadcast %cst : f32 to vector<256x128xf32>
    %10 = arith.maximumf %8, %9 : vector<256x128xf32>
    %11 = vector.shape_cast %10 : vector<256x128xf32> to vector<16x16x128xf32>
    %12 = arith.truncf %11 : vector<16x16x128xf32> to vector<16x16x128xbf16>
    %cst_7 = arith.constant 0.000000e+00 : bf16
    %13 = vector.broadcast %cst_7 : bf16 to vector<16x1x128xbf16>
    %cst_8 = arith.constant 0.000000e+00 : bf16
    %14 = vector.broadcast %cst_8 : bf16 to vector<1x18x128xbf16>
    %15 = tpu.concatenate %13, %12, %13 in 1 : vector<16x1x128xbf16>, vector<16x16x128xbf16>, vector<16x1x128xbf16> -> vector<16x18x128xbf16>
    %16 = tpu.concatenate %14, %15, %14 in 0 : vector<1x18x128xbf16>, vector<16x18x128xbf16>, vector<1x18x128xbf16> -> vector<18x18x128xbf16>
    %17 = vector.extract_strided_slice %16 {offsets = [0, 0, 0], sizes = [18, 16, 128], strides = [1, 1, 1]} : vector<18x18x128xbf16> to vector<18x16x128xbf16>
    %18 = vector.extract_strided_slice %16 {offsets = [0, 1, 0], sizes = [18, 16, 128], strides = [1, 1, 1]} : vector<18x18x128xbf16> to vector<18x16x128xbf16>
    %19 = vector.extract_strided_slice %16 {offsets = [0, 2, 0], sizes = [18, 16, 128], strides = [1, 1, 1]} : vector<18x18x128xbf16> to vector<18x16x128xbf16>
    %20 = tpu.concatenate %17, %18, %19 in 2 : vector<18x16x128xbf16>, vector<18x16x128xbf16>, vector<18x16x128xbf16> -> vector<18x16x384xbf16>
    %21 = vector.extract_strided_slice %20 {offsets = [0, 0, 0], sizes = [16, 16, 384], strides = [1, 1, 1]} : vector<18x16x384xbf16> to vector<16x16x384xbf16>
    %22 = vector.shape_cast %21 : vector<16x16x384xbf16> to vector<256x384xbf16>
    %c0_9 = arith.constant 0 : index
    %c0_10 = arith.constant 0 : index
    %c0_11 = arith.constant 0 : index
    %23 = vector.load %arg4[%c0_9, %c0_10, %c0_11] : memref<3x384x128xbf16, #tpu.memory_space<vmem>>, vector<1x384x128xbf16>
    %24 = vector.shape_cast %23 : vector<1x384x128xbf16> to vector<384x128xbf16>
    %cst_12 = arith.constant dense<0.000000e+00> : vector<256x128xf32>
    %25 = tpu.matmul %22, %24, %cst_12 {dimension_numbers = #tpu.dot_dimension_numbers<[1], [0], [0], [1], [0, 0, 1, 1], [], []>} : vector<256x384xbf16>, vector<384x128xbf16>, vector<256x128xf32> -> vector<256x128xf32>
    %26 = vector.extract_strided_slice %20 {offsets = [1, 0, 0], sizes = [16, 16, 384], strides = [1, 1, 1]} : vector<18x16x384xbf16> to vector<16x16x384xbf16>
    %27 = vector.shape_cast %26 : vector<16x16x384xbf16> to vector<256x384xbf16>
    %c1 = arith.constant 1 : index
    %c0_13 = arith.constant 0 : index
    %c0_14 = arith.constant 0 : index
    %28 = vector.load %arg4[%c1, %c0_13, %c0_14] : memref<3x384x128xbf16, #tpu.memory_space<vmem>>, vector<1x384x128xbf16>
    %29 = vector.shape_cast %28 : vector<1x384x128xbf16> to vector<384x128xbf16>
    %cst_15 = arith.constant dense<0.000000e+00> : vector<256x128xf32>
    %30 = tpu.matmul %27, %29, %cst_15 {dimension_numbers = #tpu.dot_dimension_numbers<[1], [0], [0], [1], [0, 0, 1, 1], [], []>} : vector<256x384xbf16>, vector<384x128xbf16>, vector<256x128xf32> -> vector<256x128xf32>
    %31 = arith.addf %25, %30 : vector<256x128xf32>
    %32 = vector.extract_strided_slice %20 {offsets = [2, 0, 0], sizes = [16, 16, 384], strides = [1, 1, 1]} : vector<18x16x384xbf16> to vector<16x16x384xbf16>
    %33 = vector.shape_cast %32 : vector<16x16x384xbf16> to vector<256x384xbf16>
    %c2 = arith.constant 2 : index
    %c0_16 = arith.constant 0 : index
    %c0_17 = arith.constant 0 : index
    %34 = vector.load %arg4[%c2, %c0_16, %c0_17] : memref<3x384x128xbf16, #tpu.memory_space<vmem>>, vector<1x384x128xbf16>
    %35 = vector.shape_cast %34 : vector<1x384x128xbf16> to vector<384x128xbf16>
    %cst_18 = arith.constant dense<0.000000e+00> : vector<256x128xf32>
    %36 = tpu.matmul %33, %35, %cst_18 {dimension_numbers = #tpu.dot_dimension_numbers<[1], [0], [0], [1], [0, 0, 1, 1], [], []>} : vector<256x384xbf16>, vector<384x128xbf16>, vector<256x128xf32> -> vector<256x128xf32>
    %37 = arith.addf %31, %36 : vector<256x128xf32>
    %38 = vector.shape_cast %37 : vector<256x128xf32> to vector<1x16x16x128xf32>
    %39 = arith.truncf %38 : vector<1x16x16x128xf32> to vector<1x16x16x128xbf16>
    %c0_19 = arith.constant 0 : index
    %c0_20 = arith.constant 0 : index
    %c0_21 = arith.constant 0 : index
    %c0_22 = arith.constant 0 : index
    %40 = vector.load %arg5[%c0_19, %c0_20, %c0_21, %c0_22] : memref<1x16x16x128xbf16, #tpu.memory_space<vmem>>, vector<1x16x16x128xbf16>
    tpu.vector_store %arg5[%c0_19, %c0_20, %c0_21, %c0_22], %39 {strides = array<i32>} : memref<1x16x16x128xbf16, #tpu.memory_space<vmem>>, vector<1x16x16x128xbf16>,
    %cst_23 = arith.constant dense<0.000000e+00> : vector<128xf32>
    %41 = vector.multi_reduction <add>, %37, %cst_23 [0] : vector<256x128xf32> to vector<128xf32>
    %42 = vector.shape_cast %41 : vector<128xf32> to vector<1x128xf32>
    %43 = arith.mulf %37, %37 : vector<256x128xf32>
    %cst_24 = arith.constant dense<0.000000e+00> : vector<128xf32>
    %44 = vector.multi_reduction <add>, %43, %cst_24 [0] : vector<256x128xf32> to vector<128xf32>
    %45 = vector.shape_cast %44 : vector<128xf32> to vector<1x128xf32>
    %46 = tpu.concatenate %42, %45 in 0 : vector<1x128xf32>, vector<1x128xf32> -> vector<2x128xf32>
    %47 = vector.shape_cast %46 : vector<2x128xf32> to vector<1x2x128xf32>
    %c0_25 = arith.constant 0 : index
    %c0_26 = arith.constant 0 : index
    %c0_27 = arith.constant 0 : index
    %48 = vector.load %arg6[%c0_25, %c0_26, %c0_27] : memref<1x2x128xf32, #tpu.memory_space<vmem>>, vector<1x2x128xf32>
    tpu.vector_store %arg6[%c0_25, %c0_26, %c0_27], %47 {strides = array<i32>} : memref<1x2x128xf32, #tpu.memory_space<vmem>>, vector<1x2x128xf32>,
    return
  }
  func.func @transform_0(%arg0: i32) -> (i32, i32, i32, i32) {
    %c0_i32 = arith.constant 0 : i32
    %c0_i32_0 = arith.constant 0 : i32
    %c0_i32_1 = arith.constant 0 : i32
    %c0_i32_2 = arith.constant 0 : i32
    return %arg0, %c0_i32, %c0_i32_0, %c0_i32_1 : i32, i32, i32, i32
  }
  func.func @transform_1(%arg0: i32) -> (i32, i32) {
    %c0_i32 = arith.constant 0 : i32
    %c0_i32_0 = arith.constant 0 : i32
    %c0_i32_1 = arith.constant 0 : i32
    return %c0_i32, %c0_i32_0 : i32, i32
  }
  func.func @transform_2(%arg0: i32) -> (i32, i32) {
    %c0_i32 = arith.constant 0 : i32
    %c0_i32_0 = arith.constant 0 : i32
    %c0_i32_1 = arith.constant 0 : i32
    return %c0_i32, %c0_i32_0 : i32, i32
  }
  func.func @transform_3(%arg0: i32) -> (i32, i32, i32) {
    %c0_i32 = arith.constant 0 : i32
    %c0_i32_0 = arith.constant 0 : i32
    %c0_i32_1 = arith.constant 0 : i32
    %c0_i32_2 = arith.constant 0 : i32
    return %c0_i32, %c0_i32_0, %c0_i32_1 : i32, i32, i32
  }
  func.func @transform_4(%arg0: i32) -> (i32, i32, i32, i32) {
    %c0_i32 = arith.constant 0 : i32
    %c0_i32_0 = arith.constant 0 : i32
    %c0_i32_1 = arith.constant 0 : i32
    %c0_i32_2 = arith.constant 0 : i32
    return %arg0, %c0_i32, %c0_i32_0, %c0_i32_1 : i32, i32, i32, i32
  }
  func.func @transform_5(%arg0: i32) -> (i32, i32, i32) {
    %c0_i32 = arith.constant 0 : i32
    %c0_i32_0 = arith.constant 0 : i32
    %c0_i32_1 = arith.constant 0 : i32
    return %arg0, %c0_i32, %c0_i32_0 : i32, i32, i32
  }
}

module attributes {stable_mosaic.version = 11 : i64} {
  func.func @_bn2_add_relu_kernel(%arg0: i32, %arg1: i32, %arg2: memref<1x8x16x128xbf16, #tpu.memory_space<vmem>>, %arg3: memref<1x8x16x128xf32, #tpu.memory_space<vmem>>, %arg4: memref<1x128xf32, #tpu.memory_space<vmem>>, %arg5: memref<1x128xf32, #tpu.memory_space<vmem>>, %arg6: memref<1x8x16x128xf32, #tpu.memory_space<vmem>>) attributes {dimension_semantics = [#tpu.dimension_semantics<parallel>, #tpu.dimension_semantics<parallel>], iteration_bounds = array<i64: 2, 2>, scalar_prefetch = 0 : i64, scratch_operands = 0 : i64, tpu.core_type = #tpu.core_type<tc>, window_params = [{transform_indices = @transform_0, window_bounds = array<i64: 1, 8, 16, 128>}, {transform_indices = @transform_1, window_bounds = array<i64: 1, 8, 16, 128>}, {pipeline_mode = #tpu.pipeline_mode<synchronous>, transform_indices = @transform_2, window_bounds = array<i64: 1, 128>}, {pipeline_mode = #tpu.pipeline_mode<synchronous>, transform_indices = @transform_3, window_bounds = array<i64: 1, 128>}, {transform_indices = @transform_4, window_bounds = array<i64: 1, 8, 16, 128>}]} {
    %c0 = arith.constant 0 : index
    %c0_0 = arith.constant 0 : index
    %c0_1 = arith.constant 0 : index
    %c0_2 = arith.constant 0 : index
    %0 = vector.load %arg2[%c0, %c0_0, %c0_1, %c0_2] : memref<1x8x16x128xbf16, #tpu.memory_space<vmem>>, vector<1x8x16x128xbf16>
    %1 = vector.shape_cast %0 : vector<1x8x16x128xbf16> to vector<128x128xbf16>
    %2 = arith.extf %1 : vector<128x128xbf16> to vector<128x128xf32>
    %c0_3 = arith.constant 0 : index
    %c0_4 = arith.constant 0 : index
    %3 = vector.load %arg4[%c0_3, %c0_4] : memref<1x128xf32, #tpu.memory_space<vmem>>, vector<1x128xf32>
    %4 = vector.broadcast %3 : vector<1x128xf32> to vector<128x128xf32>
    %5 = arith.mulf %2, %4 : vector<128x128xf32>
    %c0_5 = arith.constant 0 : index
    %c0_6 = arith.constant 0 : index
    %6 = vector.load %arg5[%c0_5, %c0_6] : memref<1x128xf32, #tpu.memory_space<vmem>>, vector<1x128xf32>
    %7 = vector.broadcast %6 : vector<1x128xf32> to vector<128x128xf32>
    %8 = arith.addf %5, %7 : vector<128x128xf32>
    %c0_7 = arith.constant 0 : index
    %c0_8 = arith.constant 0 : index
    %c0_9 = arith.constant 0 : index
    %c0_10 = arith.constant 0 : index
    %9 = vector.load %arg3[%c0_7, %c0_8, %c0_9, %c0_10] : memref<1x8x16x128xf32, #tpu.memory_space<vmem>>, vector<1x8x16x128xf32>
    %10 = vector.shape_cast %9 : vector<1x8x16x128xf32> to vector<128x128xf32>
    %11 = arith.addf %8, %10 : vector<128x128xf32>
    %cst = arith.constant 0.000000e+00 : f32
    %12 = vector.broadcast %cst : f32 to vector<128x128xf32>
    %13 = arith.maximumf %11, %12 : vector<128x128xf32>
    %14 = vector.shape_cast %13 : vector<128x128xf32> to vector<1x8x16x128xf32>
    %c0_11 = arith.constant 0 : index
    %c0_12 = arith.constant 0 : index
    %c0_13 = arith.constant 0 : index
    %c0_14 = arith.constant 0 : index
    %15 = vector.load %arg6[%c0_11, %c0_12, %c0_13, %c0_14] : memref<1x8x16x128xf32, #tpu.memory_space<vmem>>, vector<1x8x16x128xf32>
    tpu.vector_store %arg6[%c0_11, %c0_12, %c0_13, %c0_14], %14 {strides = array<i32>} : memref<1x8x16x128xf32, #tpu.memory_space<vmem>>, vector<1x8x16x128xf32>,
    return
  }
  func.func @transform_0(%arg0: i32, %arg1: i32) -> (i32, i32, i32, i32) {
    %c0_i32 = arith.constant 0 : i32
    %c0_i32_0 = arith.constant 0 : i32
    %c0_i32_1 = arith.constant 0 : i32
    return %arg0, %arg1, %c0_i32, %c0_i32_0 : i32, i32, i32, i32
  }
  func.func @transform_1(%arg0: i32, %arg1: i32) -> (i32, i32, i32, i32) {
    %c0_i32 = arith.constant 0 : i32
    %c0_i32_0 = arith.constant 0 : i32
    %c0_i32_1 = arith.constant 0 : i32
    return %arg0, %arg1, %c0_i32, %c0_i32_0 : i32, i32, i32, i32
  }
  func.func @transform_2(%arg0: i32, %arg1: i32) -> (i32, i32) {
    %c0_i32 = arith.constant 0 : i32
    %c0_i32_0 = arith.constant 0 : i32
    %c0_i32_1 = arith.constant 0 : i32
    return %c0_i32, %c0_i32_0 : i32, i32
  }
  func.func @transform_3(%arg0: i32, %arg1: i32) -> (i32, i32) {
    %c0_i32 = arith.constant 0 : i32
    %c0_i32_0 = arith.constant 0 : i32
    %c0_i32_1 = arith.constant 0 : i32
    return %c0_i32, %c0_i32_0 : i32, i32
  }
  func.func @transform_4(%arg0: i32, %arg1: i32) -> (i32, i32, i32, i32) {
    %c0_i32 = arith.constant 0 : i32
    %c0_i32_0 = arith.constant 0 : i32
    %c0_i32_1 = arith.constant 0 : i32
    return %arg0, %arg1, %c0_i32, %c0_i32_0 : i32, i32, i32, i32
  }
}

</mosaic_0001>

<llo_original>
// kernel: basic_block.5
$region0: #{basic_block.5}
  #allocation0 [shape = 'u32[]', space=smem, size = 0x4, offset = 0x4, fixed_abs, tag = 'smem constant byte address 0x4 - core index']
  #allocation1 [shape = 'u32[144,128]{1,0:T(1,128)}', space=vmem, size = 0x12000, scoped, tag = 'internal scratch']
  %s0 = inlined_call_operand.vmem [shape: bf16[2,16,16,128], index: 0, kind: input, shape index: {}]
  %s1 = inlined_call_operand.vmem [shape: f32[2,16,16,128], index: 1, kind: input, shape index: {}]
  %s2 = inlined_call_operand.vmem [shape: f32[1,128], index: 2, kind: input, shape index: {}]
  %s3 = inlined_call_operand.vmem [shape: f32[1,128], index: 3, kind: input, shape index: {}]
  %s4 = inlined_call_operand.vmem [shape: f32[2,16,16,128], index: 4, kind: output, shape index: {}]
  %s5 = sld [smem:[#allocation0]]
  $region49: #{basic_block.5} parent=0
    _
  %s7 = ssub.s32 1, %s5
  %s8 = scalar_select 0, %s7, %s5
  loop: start=0, step=1, limit=6
  $region2: #{basic_block.5} parent=0 // loop_pre_header
    _
  $region3: #{basic_block.5} parent=0 // loop_header
    %s10 = sphi 0, %s14
    %p11 = scmp.ge.s32.totalorder %s10, 6
    %s17 = sphi 0, %s29
    %s18 = sphi 0, %s25
    %s19 = sphi 0, %s17
    %s20 = sphi 0, %s18
    %s21 = sphi 0, %s19
    %s22 = sphi 0, %s20
    %s34 = sphi 0, %s36
    %s37 = sphi 0, %s34
    %s38 = sphi 0, %s37
    %s54 = sphi 0, %s38
    %s62 = sphi 0, %s64
    %s65 = sphi 0, %s62
    %s66 = sphi 0, %s65
    %s82 = sphi 0, %s66
    %s86 = sphi 0, %s86
    %s88 = sphi 0, %s86
    %s89 = sphi 0, %s88
    %s103 = sphi 0, %s89
    %s107 = sphi 0, %s107
    %s109 = sphi 0, %s107
    %s110 = sphi 0, %s109
    %s124 = sphi 0, %s110
    %s132 = sphi 0, %s134
    %s135 = sphi 0, %s132
    %s136 = sphi 0, %s135
    %s152 = sphi 0, %s136
  $region4: #{basic_block.5} parent=0 // loop_header_branch
    %13 = sbr.rel (%p11) target = $region8
  $region5: #{basic_block.5} parent=0 // loop_body
    %s15 = ssub.s32 %s10, 1
    %s16 = ssub.s32 %s10, 2
    %s23 = sadd.s32 1, %s18
    %p24 = scmp.ge.s32.totalorder %s23, 2
    %s25 = scalar_select %p24, 0, %s23
    %s26 = sadd.s32 1, %s17
    %s27 = scalar_select %p24, %s26, %s17
    %p28 = scmp.ge.s32.totalorder %s27, 2
    %s29 = scalar_select %p28, 0, %s27
    %s30 = ssub.s32 %s17, %s29
    %s31 = ssub.s32 %s18, %s25
    %s32 = sor.u32 %s30, %s31
    %p33 = scmp.eq.s32.totalorder %s32, 0
    %s35 = sadd.s32 %s34, 1
    %s36 = scalar_select %p33, %s34, %s35
    %p39 = pneg %p33
    %p40 = scmp.eq.s32.totalorder %s10, 3
    %p41 = por %p39, %p40
    %p42 = scmp.ne.s32.totalorder %s34, %s37
    %p43 = scmp.eq.s32.totalorder %s10, 0
    %p44 = por %p42, %p43
    %p45 = scmp.ne.s32.totalorder %s34, %s37
    %p46 = scmp.eq.s32.totalorder %s15, 3
    %p47 = por %p45, %p46
    %p48 = scmp.ne.s32.totalorder %s37, %s38
    %p49 = scmp.eq.s32.totalorder %s15, 0
    %p50 = por %p48, %p49
    %p51 = scmp.ne.s32.totalorder %s37, %s38
    %p52 = scmp.eq.s32.totalorder %s16, 3
    %p53 = por %p51, %p52
    %p55 = scmp.ne.s32.totalorder %s38, %s54
    %p56 = scmp.eq.s32.totalorder %s16, 0
    %p57 = por %p55, %p56
    %s58 = ssub.s32 %s17, %s29
    %s59 = ssub.s32 %s18, %s25
    %s60 = sor.u32 %s58, %s59
    %p61 = scmp.eq.s32.totalorder %s60, 0
    %s63 = sadd.s32 %s62, 1
    %s64 = scalar_select %p61, %s62, %s63
    %p67 = pneg %p61
    %p68 = scmp.eq.s32.totalorder %s10, 3
    %p69 = por %p67, %p68
    %p70 = scmp.ne.s32.totalorder %s62, %s65
    %p71 = scmp.eq.s32.totalorder %s10, 0
    %p72 = por %p70, %p71
    %p73 = scmp.ne.s32.totalorder %s62, %s65
    %p74 = scmp.eq.s32.totalorder %s15, 3
    %p75 = por %p73, %p74
    %p76 = scmp.ne.s32.totalorder %s65, %s66
    %p77 = scmp.eq.s32.totalorder %s15, 0
    %p78 = por %p76, %p77
    %p79 = scmp.ne.s32.totalorder %s65, %s66
    %p80 = scmp.eq.s32.totalorder %s16, 3
    %p81 = por %p79, %p80
    %p83 = scmp.ne.s32.totalorder %s66, %s82
    %p84 = scmp.eq.s32.totalorder %s16, 0
    %p85 = por %p83, %p84
    %s87 = sadd.s32 %s86, 1
    %p90 = scmp.eq.s32.totalorder %s10, 3
    %p91 = scmp.ne.s32.totalorder %s86, %s88
    %p92 = scmp.eq.s32.totalorder %s10, 0
    %p93 = por %p91, %p92
    %p94 = scmp.ne.s32.totalorder %s86, %s88
    %p95 = scmp.eq.s32.totalorder %s15, 3
    %p96 = por %p94, %p95
    %p97 = scmp.ne.s32.totalorder %s88, %s89
    %p98 = scmp.eq.s32.totalorder %s15, 0
    %p99 = por %p97, %p98
    %p100 = scmp.ne.s32.totalorder %s88, %s89
    %p101 = scmp.eq.s32.totalorder %s16, 3
    %p102 = por %p100, %p101
    %p104 = scmp.ne.s32.totalorder %s89, %s103
    %p105 = scmp.eq.s32.totalorder %s16, 0
    %p106 = por %p104, %p105
    %s108 = sadd.s32 %s107, 1
    %p111 = scmp.eq.s32.totalorder %s10, 3
    %p112 = scmp.ne.s32.totalorder %s107, %s109
    %p113 = scmp.eq.s32.totalorder %s10, 0
    %p114 = por %p112, %p113
    %p115 = scmp.ne.s32.totalorder %s107, %s109
    %p116 = scmp.eq.s32.totalorder %s15, 3
    %p117 = por %p115, %p116
    %p118 = scmp.ne.s32.totalorder %s109, %s110
    %p119 = scmp.eq.s32.totalorder %s15, 0
    %p120 = por %p118, %p119
    %p121 = scmp.ne.s32.totalorder %s109, %s110
    %p122 = scmp.eq.s32.totalorder %s16, 3
    %p123 = por %p121, %p122
    %p125 = scmp.ne.s32.totalorder %s110, %s124
    %p126 = scmp.eq.s32.totalorder %s16, 0
    %p127 = por %p125, %p126
    %s128 = ssub.s32 %s17, %s29
    %s129 = ssub.s32 %s18, %s25
    %s130 = sor.u32 %s128, %s129
    %p131 = scmp.eq.s32.totalorder %s130, 0
    %s133 = sadd.s32 %s132, 1
    %s134 = scalar_select %p131, %s132, %s133
    %p137 = pneg %p131
    %p138 = scmp.eq.s32.totalorder %s10, 3
    %p139 = por %p137, %p138
    %p140 = scmp.ne.s32.totalorder %s132, %s135
    %p141 = scmp.eq.s32.totalorder %s10, 0
    %p142 = por %p140, %p141
    %p143 = scmp.ne.s32.totalorder %s132, %s135
    %p144 = scmp.eq.s32.totalorder %s15, 3
    %p145 = por %p143, %p144
    %p146 = scmp.ne.s32.totalorder %s135, %s136
    %p147 = scmp.eq.s32.totalorder %s15, 0
    %p148 = por %p146, %p147
    %p149 = scmp.ne.s32.totalorder %s135, %s136
    %p150 = scmp.eq.s32.totalorder %s16, 3
    %p151 = por %p149, %p150
    %p153 = scmp.ne.s32.totalorder %s136, %s152
    %p154 = scmp.eq.s32.totalorder %s16, 0
    %p155 = por %p153, %p154
    %p156 = scmp.le.s32.totalorder 1, %s10
    %p157 = scmp.lt.s32.totalorder %s10, 5
    %p158 = pnand %p156, %p157
    %p159 = pneg %p158
    // Predicated region
    $region9: #{basic_block.5} parent=5 // pred_check
      _
    $region10: #{basic_block.5} parent=5 // pred_check_branch
      %161 = sbr.rel (%p158) target = $region12
    $region11: #{basic_block.5} parent=5 // pred_region
      %s162 = ssub.s32 %s10, 1
      // Predicated region
      $region13: #{basic_block.5} parent=11 // pred_check
        %p163 = pneg %p99
      $region14: #{basic_block.5} parent=11 // pred_check_branch
        %165 = sbr.rel (%p163) target = $region16
      $region15: #{basic_block.5} parent=11 // pred_region
        _
      $region16: #{basic_block.5} parent=11 // pred_fallthru
        _
      // Predicated region
      $region17: #{basic_block.5} parent=11 // pred_check
        %p166 = pneg %p120
      $region18: #{basic_block.5} parent=11 // pred_check_branch
        %168 = sbr.rel (%p166) target = $region20
      $region19: #{basic_block.5} parent=11 // pred_region
        _
      $region20: #{basic_block.5} parent=11 // pred_fallthru
        _
    $region12: #{basic_block.5} parent=5 // pred_fallthru
      _
    %p169 = scmp.lt.s32.totalorder %s10, 4
    // Predicated region
    $region21: #{basic_block.5} parent=5 // pred_check
      %p170 = pneg %p169
    $region22: #{basic_block.5} parent=5 // pred_check_branch
      %172 = sbr.rel (%p170) target = $region24
    $region23: #{basic_block.5} parent=5 // pred_region
      // Predicated region
      $region25: #{basic_block.5} parent=23 // pred_check
        %p173 = pneg %p44
      $region26: #{basic_block.5} parent=23 // pred_check_branch
        %175 = sbr.rel (%p173) target = $region28
      $region27: #{basic_block.5} parent=23 // pred_region
        %s176 = smul.u32 8, %s18
        %p177 = scmp.lt.s32.totalorder %s17, 1
        %s178 = scalar_select %p177, %s17, 1
        %p179 = scmp.lt.s32.totalorder %s176, 15
        %s180 = scalar_select %p179, %s176, 15
        %s181 = smul.addr %s180, 2
        %s182 = smul.addr %s178, 32
        %s183 = sadd.s32 %s181, %s182
        %s184 = smul.addr %s183, 4
        %s185 = scalar_lea.vmem %s0, %s184
        %s186 = smul.u32 8, %s18
      $region28: #{basic_block.5} parent=23 // pred_fallthru
        _
      // Predicated region
      $region29: #{basic_block.5} parent=23 // pred_check
        %p187 = pneg %p72
      $region30: #{basic_block.5} parent=23 // pred_check_branch
        %189 = sbr.rel (%p187) target = $region32
      $region31: #{basic_block.5} parent=23 // pred_region
        %s190 = smul.u32 8, %s18
        %p191 = scmp.lt.s32.totalorder %s17, 1
        %s192 = scalar_select %p191, %s17, 1
        %p193 = scmp.lt.s32.totalorder %s190, 15
        %s194 = scalar_select %p193, %s190, 15
        %s195 = smul.addr %s194, 2
        %s196 = smul.addr %s192, 32
        %s197 = sadd.s32 %s195, %s196
        %s198 = smul.addr %s197, 8
        %s199 = scalar_lea.vmem %s1, %s198
        %s200 = smul.u32 8, %s18
      $region32: #{basic_block.5} parent=23 // pred_fallthru
        _
    $region24: #{basic_block.5} parent=5 // pred_fallthru
      _
    %p201 = scmp.le.s32.totalorder 1, %s10
    %p202 = scmp.lt.s32.totalorder %s10, 5
    %p203 = pnand %p201, %p202
    %p204 = pneg %p203
    // Predicated region
    $region33: #{basic_block.5} parent=5 // pred_check
      _
    $region34: #{basic_block.5} parent=5 // pred_check_branch
      %206 = sbr.rel (%p203) target = $region36
    $region35: #{basic_block.5} parent=5 // pred_region
      %s207 = ssub.s32 %s10, 1
      %s208 = smul.u32 8, %s20
      %p209 = scmp.lt.s32.totalorder %s19, 1
      %s210 = scalar_select %p209, %s19, 1
      %p211 = scmp.lt.s32.totalorder %s208, 15
      %s212 = scalar_select %p211, %s208, 15
      %s213 = smul.addr %s212, 2
      %s214 = smul.addr %s210, 32
      %s215 = sadd.s32 %s213, %s214
      %s216 = smul.addr %s215, 4
      %s217 = scalar_lea.vmem %s0, %s216
      %p218 = pneg %p50
      %p219 = pneg %p47
      %s220 = smul.u32 8, %s20
      %p221 = scmp.lt.s32.totalorder %s19, 1
      %s222 = scalar_select %p221, %s19, 1
      %p223 = scmp.lt.s32.totalorder %s220, 15
      %s224 = scalar_select %p223, %s220, 15
      %s225 = smul.addr %s224, 2
      %s226 = smul.addr %s222, 32
      %s227 = sadd.s32 %s225, %s226
      %s228 = smul.addr %s227, 8
      %s229 = scalar_lea.vmem %s1, %s228
      %p230 = pneg %p78
      %p231 = pneg %p75
      %p232 = pneg %p99
      %p233 = pneg %p96
      %p234 = pneg %p120
      %p235 = pneg %p117
      %p236 = pneg %p148
      %p237 = pneg %p145
      %s238 = smul.u32 8, %s20
      %p239 = scmp.lt.s32.totalorder %s19, 1
      %s240 = scalar_select %p239, %s19, 1
      %p241 = scmp.lt.s32.totalorder %s238, 15
      %s242 = scalar_select %p241, %s238, 15
      %s243 = smul.addr %s242, 2
      %s244 = smul.addr %s240, 32
      %s245 = sadd.s32 %s243, %s244
      %s246 = smul.addr %s245, 8
      %s247 = scalar_lea.vmem %s4, %s246
      %s248 = smul.u32 8, %s20
      %p249 = scmp.lt.s32.totalorder %s19, 1
      %s250 = scalar_select %p249, %s19, 1
      %p251 = scmp.lt.s32.totalorder %s248, 15
      %s252 = scalar_select %p251, %s248, 15
      %s253 = smul.addr %s252, 2
      %s254 = smul.addr %s250, 32
      %s255 = sadd.s32 %s253, %s254
      %s256 = smul.addr %s255, 4
      %s257 = scalar_lea.vmem %s0, %s256
      %s258 = smul.u32 8, %s20
      %s259 = smul.u32 8, %s20
      %p260 = scmp.lt.s32.totalorder %s19, 1
      %s261 = scalar_select %p260, %s19, 1
      %p262 = scmp.lt.s32.totalorder %s259, 15
      %s263 = scalar_select %p262, %s259, 15
      %s264 = smul.addr %s263, 2
      %s265 = smul.addr %s261, 32
      %s266 = sadd.s32 %s264, %s265
      %s267 = smul.addr %s266, 8
      %s268 = scalar_lea.vmem %s1, %s267
      %s269 = smul.u32 8, %s20
      %s270 = smul.u32 8, %s20
      %p271 = scmp.lt.s32.totalorder %s19, 1
      %s272 = scalar_select %p271, %s19, 1
      %p273 = scmp.lt.s32.totalorder %s270, 15
      %s274 = scalar_select %p273, %s270, 15
      %s275 = smul.addr %s274, 2
      %s276 = smul.addr %s272, 32
      %s277 = sadd.s32 %s275, %s276
      %s278 = smul.addr %s277, 8
      %s279 = scalar_lea.vmem %s4, %s278
      %s280 = smul.u32 8, %s20
      %v281 = vld [vmem:[%s257] sm:$0xf]
      %v282 = vld [vmem:[%s257 + $0x4] sm:$0xf]
      %v283 = vld [vmem:[%s257 + $0x8] sm:$0xf]
      %v284 = vld [vmem:[%s257 + $0xc] sm:$0xf]
      %v285 = vld [vmem:[%s257 + $0x10] sm:$0xf]
      %v286 = vld [vmem:[%s257 + $0x14] sm:$0xf]
      %v287 = vld [vmem:[%s257 + $0x18] sm:$0xf]
      %v288 = vld [vmem:[%s257 + $0x1c] sm:$0xf]
      %v289 = vld [vmem:[%s257 + $0x20] sm:$0xf]
      %v290 = vld [vmem:[%s257 + $0x24] sm:$0xf]
      %v291 = vld [vmem:[%s257 + $0x28] sm:$0xf]
      %v292 = vld [vmem:[%s257 + $0x2c] sm:$0xf]
      %v293 = vld [vmem:[%s257 + $0x30] sm:$0xf]
      %v294 = vld [vmem:[%s257 + $0x34] sm:$0xf]
      %v295 = vld [vmem:[%s257 + $0x38] sm:$0xf]
      %v296 = vld [vmem:[%s257 + $0x3c] sm:$0xf]
      %v297 = vunpack.c.l.bf16 %v281
      %v298 = vunpack.c.l.bf16 %v282
      %v299 = vunpack.c.l.bf16 %v283
      %v300 = vunpack.c.l.bf16 %v284
      %v301 = vunpack.c.l.bf16 %v285
      %v302 = vunpack.c.l.bf16 %v286
      %v303 = vunpack.c.l.bf16 %v287
      %v304 = vunpack.c.l.bf16 %v288
      %v305 = vunpack.c.l.bf16 %v289
      %v306 = vunpack.c.l.bf16 %v290
      %v307 = vunpack.c.l.bf16 %v291
      %v308 = vunpack.c.l.bf16 %v292
      %v309 = vunpack.c.l.bf16 %v293
      %v310 = vunpack.c.l.bf16 %v294
      %v311 = vunpack.c.l.bf16 %v295
      %v312 = vunpack.c.l.bf16 %v296
      %v313 = vld [vmem:[%s2] sm:$0x1]
      %v315 = vlaneseq
      %v316 = vshrl.u32 %v315, 7
      %v317 = vsub.s32 0, %v316
      %v318 = vrot.slane %v313, %v317
      %v320 = vmul.f32 %v297, %v318
      %v321 = vmul.f32 %v298, %v318
      %v322 = vmul.f32 %v299, %v318
      %v323 = vmul.f32 %v300, %v318
      %v324 = vmul.f32 %v301, %v318
      %v325 = vmul.f32 %v302, %v318
      %v326 = vmul.f32 %v303, %v318
      %v327 = vmul.f32 %v304, %v318
      %v328 = vmul.f32 %v305, %v318
      %v329 = vmul.f32 %v306, %v318
      %v330 = vmul.f32 %v307, %v318
      %v331 = vmul.f32 %v308, %v318
      %v332 = vmul.f32 %v309, %v318
      %v333 = vmul.f32 %v310, %v318
      %v334 = vmul.f32 %v311, %v318
      %v335 = vmul.f32 %v312, %v318
      %v336 = vld [vmem:[%s3] sm:$0x1]
      %v338 = vlaneseq
      %v339 = vshrl.u32 %v338, 7
      %v340 = vsub.s32 0, %v339
      %v341 = vrot.slane %v336, %v340
      %v343 = vadd.f32 %v320, %v341
      %v344 = vadd.f32 %v321, %v341
      %v345 = vadd.f32 %v322, %v341
      %v346 = vadd.f32 %v323, %v341
      %v347 = vadd.f32 %v324, %v341
      %v348 = vadd.f32 %v325, %v341
      %v349 = vadd.f32 %v326, %v341
      %v350 = vadd.f32 %v327, %v341
      %v351 = vadd.f32 %v328, %v341
      %v352 = vadd.f32 %v329, %v341
      %v353 = vadd.f32 %v330, %v341
      %v354 = vadd.f32 %v331, %v341
      %v355 = vadd.f32 %v332, %v341
      %v356 = vadd.f32 %v333, %v341
      %v357 = vadd.f32 %v334, %v341
      %v358 = vadd.f32 %v335, %v341
      %v359 = vld [vmem:[%s268] sm:$0xff]
      %v360 = vld [vmem:[%s268 + $0x8] sm:$0xff]
      %v361 = vld [vmem:[%s268 + $0x10] sm:$0xff]
      %v362 = vld [vmem:[%s268 + $0x18] sm:$0xff]
      %v363 = vld [vmem:[%s268 + $0x20] sm:$0xff]
      %v364 = vld [vmem:[%s268 + $0x28] sm:$0xff]
      %v365 = vld [vmem:[%s268 + $0x30] sm:$0xff]
      %v366 = vld [vmem:[%s268 + $0x38] sm:$0xff]
      %v367 = vld [vmem:[%s268 + $0x40] sm:$0xff]
      %v368 = vld [vmem:[%s268 + $0x48] sm:$0xff]
      %v369 = vld [vmem:[%s268 + $0x50] sm:$0xff]
      %v370 = vld [vmem:[%s268 + $0x58] sm:$0xff]
      %v371 = vld [vmem:[%s268 + $0x60] sm:$0xff]
      %v372 = vld [vmem:[%s268 + $0x68] sm:$0xff]
      %v373 = vld [vmem:[%s268 + $0x70] sm:$0xff]
      %v374 = vld [vmem:[%s268 + $0x78] sm:$0xff]
      %v375 = vadd.f32 %v343, %v359
      %v376 = vadd.f32 %v344, %v360
      %v377 = vadd.f32 %v345, %v361
      %v378 = vadd.f32 %v346, %v362
      %v379 = vadd.f32 %v347, %v363
      %v380 = vadd.f32 %v348, %v364
      %v381 = vadd.f32 %v349, %v365
      %v382 = vadd.f32 %v350, %v366
      %v383 = vadd.f32 %v351, %v367
      %v384 = vadd.f32 %v352, %v368
      %v385 = vadd.f32 %v353, %v369
      %v386 = vadd.f32 %v354, %v370
      %v387 = vadd.f32 %v355, %v371
      %v388 = vadd.f32 %v356, %v372
      %v389 = vadd.f32 %v357, %v373
      %v390 = vadd.f32 %v358, %v374
      %v391 = vmax.f32 %v375, 0.0
      %v392 = vmax.f32 %v376, 0.0
      %v393 = vmax.f32 %v377, 0.0
      %v394 = vmax.f32 %v378, 0.0
      %v395 = vmax.f32 %v379, 0.0
      %v396 = vmax.f32 %v380, 0.0
      %v397 = vmax.f32 %v381, 0.0
      %v398 = vmax.f32 %v382, 0.0
      %v399 = vmax.f32 %v383, 0.0
      %v400 = vmax.f32 %v384, 0.0
      %v401 = vmax.f32 %v385, 0.0
      %v402 = vmax.f32 %v386, 0.0
      %v403 = vmax.f32 %v387, 0.0
      %v404 = vmax.f32 %v388, 0.0
      %v405 = vmax.f32 %v389, 0.0
      %v406 = vmax.f32 %v390, 0.0
      %407 = vst [vmem:[%s279] sm:$0xff] %v391
      %408 = vst [vmem:[%s279 + $0x8] sm:$0xff] %v392
      %409 = vst [vmem:[%s279 + $0x10] sm:$0xff] %v393
      %410 = vst [vmem:[%s279 + $0x18] sm:$0xff] %v394
      %411 = vst [vmem:[%s279 + $0x20] sm:$0xff] %v395
      %412 = vst [vmem:[%s279 + $0x28] sm:$0xff] %v396
      %413 = vst [vmem:[%s279 + $0x30] sm:$0xff] %v397
      %414 = vst [vmem:[%s279 + $0x38] sm:$0xff] %v398
      %415 = vst [vmem:[%s279 + $0x40] sm:$0xff] %v399
      %416 = vst [vmem:[%s279 + $0x48] sm:$0xff] %v400
      %417 = vst [vmem:[%s279 + $0x50] sm:$0xff] %v401
      %418 = vst [vmem:[%s279 + $0x58] sm:$0xff] %v402
      %419 = vst [vmem:[%s279 + $0x60] sm:$0xff] %v403
      %420 = vst [vmem:[%s279 + $0x68] sm:$0xff] %v404
      %421 = vst [vmem:[%s279 + $0x70] sm:$0xff] %v405
      %422 = vst [vmem:[%s279 + $0x78] sm:$0xff] %v406
      %s423 = smul.u32 8, %s20
      %p424 = scmp.lt.s32.totalorder %s19, 1
      %s425 = scalar_select %p424, %s19, 1
      %p426 = scmp.lt.s32.totalorder %s423, 15
      %s427 = scalar_select %p426, %s423, 15
      %s428 = smul.addr %s427, 2
      %s429 = smul.addr %s425, 32
      %s430 = sadd.s32 %s428, %s429
      %s431 = smul.addr %s430, 8
      %s432 = scalar_lea.vmem %s4, %s431
      // Predicated region
      $region37: #{basic_block.5} parent=35 // pred_check
        %p433 = pneg %p145
      $region38: #{basic_block.5} parent=35 // pred_check_branch
        %435 = sbr.rel (%p433) target = $region40
      $region39: #{basic_block.5} parent=35 // pred_region
        %s436 = smul.u32 8, %s20
      $region40: #{basic_block.5} parent=35 // pred_fallthru
        _
    $region36: #{basic_block.5} parent=5 // pred_fallthru
      _
    %p437 = scmp.le.s32.totalorder 2, %s10
    // Predicated region
    $region41: #{basic_block.5} parent=5 // pred_check
      %p438 = pneg %p437
    $region42: #{basic_block.5} parent=5 // pred_check_branch
      %440 = sbr.rel (%p438) target = $region44
    $region43: #{basic_block.5} parent=5 // pred_region
      %s441 = ssub.s32 %s10, 2
      // Predicated region
      $region45: #{basic_block.5} parent=43 // pred_check
        %p442 = pneg %p151
      $region46: #{basic_block.5} parent=43 // pred_check_branch
        %444 = sbr.rel (%p442) target = $region48
      $region47: #{basic_block.5} parent=43 // pred_region
        %s445 = smul.u32 8, %s22
        %p446 = scmp.lt.s32.totalorder %s21, 1
        %s447 = scalar_select %p446, %s21, 1
        %p448 = scmp.lt.s32.totalorder %s445, 15
        %s449 = scalar_select %p448, %s445, 15
        %s450 = smul.addr %s449, 2
        %s451 = smul.addr %s447, 32
        %s452 = sadd.s32 %s450, %s451
        %s453 = smul.addr %s452, 8
        %s454 = scalar_lea.vmem %s4, %s453
      $region48: #{basic_block.5} parent=43 // pred_fallthru
        _
    $region44: #{basic_block.5} parent=5 // pred_fallthru
      _
  $region6: #{basic_block.5} parent=0 // loop_footer
    %s14 = sadd.s32 1, %s10
  $region7: #{basic_block.5} parent=0 // loop_footer_branch
    %9 = sbr.rel target = $region3
  $region8: #{basic_block.5} parent=0 // loop_exit
    _

// kernel: basic_block.3
$region0: #{basic_block.3}
  #allocation0 [shape = 'u32[]', space=smem, size = 0x4, offset = 0x4, fixed_abs, tag = 'smem constant byte address 0x4 - core index']
  #allocation1 [shape = 'u32[144,128]{1,0:T(1,128)}', space=vmem, size = 0x12000, scoped, tag = 'internal scratch']
  %s0 = inlined_call_operand.vmem [shape: bf16[2,18,18,128], index: 0, kind: input, shape index: {}]
  %s1 = inlined_call_operand.vmem [shape: bf16[3,384,128], index: 1, kind: input, shape index: {}]
  %s2 = inlined_call_operand.vmem [shape: bf16[2,16,16,128], index: 2, kind: output, shape index: {0}]
  %s3 = inlined_call_operand.vmem [shape: f32[2,2,128], index: 3, kind: output, shape index: {1}]
  %4 = xla_tuple %s2, %s3
  %s5 = sld [smem:[#allocation0]]
  $region49: #{basic_block.3} parent=0
    _
  %s7 = ssub.s32 1, %s5
  %s8 = scalar_select 0, %s7, %s5
  loop: start=0, step=1, limit=4
  $region2: #{basic_block.3} parent=0 // loop_pre_header
    _
  $region3: #{basic_block.3} parent=0 // loop_header
    %s10 = sphi 0, %s14
    %p11 = scmp.ge.s32.totalorder %s10, 4
    %s20 = sphi 0, %s22
    %s23 = sphi 0, %s20
    %s24 = sphi 0, %s23
    %s40 = sphi 0, %s24
    %s44 = sphi 0, %s44
    %s46 = sphi 0, %s44
    %s47 = sphi 0, %s46
    %s61 = sphi 0, %s47
    %s67 = sphi 0, %s69
    %s70 = sphi 0, %s67
    %s71 = sphi 0, %s70
    %s87 = sphi 0, %s71
    %s93 = sphi 0, %s95
    %s96 = sphi 0, %s93
    %s97 = sphi 0, %s96
    %s113 = sphi 0, %s97
  $region4: #{basic_block.3} parent=0 // loop_header_branch
    %13 = sbr.rel (%p11) target = $region8
  $region5: #{basic_block.3} parent=0 // loop_body
    %s15 = ssub.s32 %s10, 1
    %s16 = ssub.s32 %s10, 2
    %s17 = sadd.s32 %s10, 1
    %s18 = ssub.s32 %s10, %s17
    %p19 = scmp.eq.s32.totalorder %s18, 0
    %s21 = sadd.s32 %s20, 1
    %s22 = scalar_select %p19, %s20, %s21
    %p25 = pneg %p19
    %p26 = scmp.eq.s32.totalorder %s10, 1
    %p27 = por %p25, %p26
    %p28 = scmp.ne.s32.totalorder %s20, %s23
    %p29 = scmp.eq.s32.totalorder %s10, 0
    %p30 = por %p28, %p29
    %p31 = scmp.ne.s32.totalorder %s20, %s23
    %p32 = scmp.eq.s32.totalorder %s15, 1
    %p33 = por %p31, %p32
    %p34 = scmp.ne.s32.totalorder %s23, %s24
    %p35 = scmp.eq.s32.totalorder %s15, 0
    %p36 = por %p34, %p35
    %p37 = scmp.ne.s32.totalorder %s23, %s24
    %p38 = scmp.eq.s32.totalorder %s16, 1
    %p39 = por %p37, %p38
    %p41 = scmp.ne.s32.totalorder %s24, %s40
    %p42 = scmp.eq.s32.totalorder %s16, 0
    %p43 = por %p41, %p42
    %s45 = sadd.s32 %s44, 1
    %p48 = scmp.eq.s32.totalorder %s10, 1
    %p49 = scmp.ne.s32.totalorder %s44, %s46
    %p50 = scmp.eq.s32.totalorder %s10, 0
    %p51 = por %p49, %p50
    %p52 = scmp.ne.s32.totalorder %s44, %s46
    %p53 = scmp.eq.s32.totalorder %s15, 1
    %p54 = por %p52, %p53
    %p55 = scmp.ne.s32.totalorder %s46, %s47
    %p56 = scmp.eq.s32.totalorder %s15, 0
    %p57 = por %p55, %p56
    %p58 = scmp.ne.s32.totalorder %s46, %s47
    %p59 = scmp.eq.s32.totalorder %s16, 1
    %p60 = por %p58, %p59
    %p62 = scmp.ne.s32.totalorder %s47, %s61
    %p63 = scmp.eq.s32.totalorder %s16, 0
    %p64 = por %p62, %p63
    %s65 = ssub.s32 %s10, %s17
    %p66 = scmp.eq.s32.totalorder %s65, 0
    %s68 = sadd.s32 %s67, 1
    %s69 = scalar_select %p66, %s67, %s68
    %p72 = pneg %p66
    %p73 = scmp.eq.s32.totalorder %s10, 1
    %p74 = por %p72, %p73
    %p75 = scmp.ne.s32.totalorder %s67, %s70
    %p76 = scmp.eq.s32.totalorder %s10, 0
    %p77 = por %p75, %p76
    %p78 = scmp.ne.s32.totalorder %s67, %s70
    %p79 = scmp.eq.s32.totalorder %s15, 1
    %p80 = por %p78, %p79
    %p81 = scmp.ne.s32.totalorder %s70, %s71
    %p82 = scmp.eq.s32.totalorder %s15, 0
    %p83 = por %p81, %p82
    %p84 = scmp.ne.s32.totalorder %s70, %s71
    %p85 = scmp.eq.s32.totalorder %s16, 1
    %p86 = por %p84, %p85
    %p88 = scmp.ne.s32.totalorder %s71, %s87
    %p89 = scmp.eq.s32.totalorder %s16, 0
    %p90 = por %p88, %p89
    %s91 = ssub.s32 %s10, %s17
    %p92 = scmp.eq.s32.totalorder %s91, 0
    %s94 = sadd.s32 %s93, 1
    %s95 = scalar_select %p92, %s93, %s94
    %p98 = pneg %p92
    %p99 = scmp.eq.s32.totalorder %s10, 1
    %p100 = por %p98, %p99
    %p101 = scmp.ne.s32.totalorder %s93, %s96
    %p102 = scmp.eq.s32.totalorder %s10, 0
    %p103 = por %p101, %p102
    %p104 = scmp.ne.s32.totalorder %s93, %s96
    %p105 = scmp.eq.s32.totalorder %s15, 1
    %p106 = por %p104, %p105
    %p107 = scmp.ne.s32.totalorder %s96, %s97
    %p108 = scmp.eq.s32.totalorder %s15, 0
    %p109 = por %p107, %p108
    %p110 = scmp.ne.s32.totalorder %s96, %s97
    %p111 = scmp.eq.s32.totalorder %s16, 1
    %p112 = por %p110, %p111
    %p114 = scmp.ne.s32.totalorder %s97, %s113
    %p115 = scmp.eq.s32.totalorder %s16, 0
    %p116 = por %p114, %p115
    %p117 = scmp.le.s32.totalorder 1, %s10
    %p118 = scmp.lt.s32.totalorder %s10, 3
    %p119 = pnand %p117, %p118
    %p120 = pneg %p119
    // Predicated region
    $region9: #{basic_block.3} parent=5 // pred_check
      _
    $region10: #{basic_block.3} parent=5 // pred_check_branch
      %122 = sbr.rel (%p119) target = $region12
    $region11: #{basic_block.3} parent=5 // pred_region
      %s123 = ssub.s32 %s10, 1
      // Predicated region
      $region13: #{basic_block.3} parent=11 // pred_check
        %p124 = pneg %p57
      $region14: #{basic_block.3} parent=11 // pred_check_branch
        %126 = sbr.rel (%p124) target = $region16
      $region15: #{basic_block.3} parent=11 // pred_region
        _
      $region16: #{basic_block.3} parent=11 // pred_fallthru
        _
    $region12: #{basic_block.3} parent=5 // pred_fallthru
      _
    %p127 = scmp.lt.s32.totalorder %s10, 2
    // Predicated region
    $region17: #{basic_block.3} parent=5 // pred_check
      %p128 = pneg %p127
    $region18: #{basic_block.3} parent=5 // pred_check_branch
      %130 = sbr.rel (%p128) target = $region20
    $region19: #{basic_block.3} parent=5 // pred_region
      // Predicated region
      $region21: #{basic_block.3} parent=19 // pred_check
        %p131 = pneg %p30
      $region22: #{basic_block.3} parent=19 // pred_check_branch
        %133 = sbr.rel (%p131) target = $region24
      $region23: #{basic_block.3} parent=19 // pred_region
        %p134 = scmp.lt.s32.totalorder %s10, 1
        %s135 = scalar_select %p134, %s10, 1
        %s136 = smul.addr %s135, 54
        %s137 = smul.addr %s136, 4
        %s138 = scalar_lea.vmem %s0, %s137
      $region24: #{basic_block.3} parent=19 // pred_fallthru
        _
    $region20: #{basic_block.3} parent=5 // pred_fallthru
      _
    %p139 = scmp.le.s32.totalorder 1, %s10
    %p140 = scmp.lt.s32.totalorder %s10, 3
    %p141 = pnand %p139, %p140
    %p142 = pneg %p141
    // Predicated region
    $region25: #{basic_block.3} parent=5 // pred_check
      _
    $region26: #{basic_block.3} parent=5 // pred_check_branch
      %144 = sbr.rel (%p141) target = $region28
    $region27: #{basic_block.3} parent=5 // pred_region
      %s145 = ssub.s32 %s10, 1
      %p146 = scmp.lt.s32.totalorder %s15, 1
      %s147 = scalar_select %p146, %s15, 1
      %s148 = smul.addr %s147, 54
      %s149 = smul.addr %s148, 4
      %s150 = scalar_lea.vmem %s0, %s149
      %p151 = pneg %p36
      %p152 = pneg %p33
      %p153 = pneg %p57
      %p154 = pneg %p54
      %p155 = pneg %p83
      %p156 = pneg %p80
      %p157 = scmp.lt.s32.totalorder %s15, 1
      %s158 = scalar_select %p157, %s15, 1
      %s159 = smul.addr %s158, 32
      %s160 = smul.addr %s159, 4
      %s161 = scalar_lea.vmem %s2, %s160
      %p162 = pneg %p109
      %p163 = pneg %p106
      %p164 = scmp.lt.s32.totalorder %s15, 1
      %s165 = scalar_select %p164, %s15, 1
      %s166 = smul.addr %s165, 2
      %s167 = scalar_lea.vmem %s3, %s166
      %p168 = scmp.lt.s32.totalorder %s15, 1
      %s169 = scalar_select %p168, %s15, 1
      %s170 = smul.addr %s169, 54
      %s171 = smul.addr %s170, 4
      %s172 = scalar_lea.vmem %s0, %s171
      %p173 = scmp.lt.s32.totalorder %s15, 1
      %s174 = scalar_select %p173, %s15, 1
      %s175 = smul.addr %s174, 32
      %s176 = smul.addr %s175, 4
      %s177 = scalar_lea.vmem %s2, %s176
      %p178 = scmp.lt.s32.totalorder %s15, 1
      %s179 = scalar_select %p178, %s15, 1
      %s180 = smul.addr %s179, 2
      %s181 = scalar_lea.vmem %s3, %s180
      %v183 = vld [vmem:[%s172] sm:$0xf]
      %v184 = vld [vmem:[%s172 + $0x4] sm:$0xf]
      %v185 = vld [vmem:[%s172 + $0x8] sm:$0x1]
      %v186 = vld [vmem:[%s172 + $0xc] sm:$0xf]
      %v187 = vld [vmem:[%s172 + $0x10] sm:$0xf]
      %v188 = vld [vmem:[%s172 + $0x14] sm:$0x1]
      %v189 = vld [vmem:[%s172 + $0x18] sm:$0xf]
      %v190 = vld [vmem:[%s172 + $0x1c] sm:$0xf]
      %v191 = vld [vmem:[%s172 + $0x20] sm:$0x1]
      %v192 = vld [vmem:[%s172 + $0x24] sm:$0xf]
      %v193 = vld [vmem:[%s172 + $0x28] sm:$0xf]
      %v194 = vld [vmem:[%s172 + $0x2c] sm:$0x1]
      %v195 = vld [vmem:[%s172 + $0x30] sm:$0xf]
      %v196 = vld [vmem:[%s172 + $0x34] sm:$0xf]
      %v197 = vld [vmem:[%s172 + $0x38] sm:$0x1]
      %v198 = vld [vmem:[%s172 + $0x3c] sm:$0xf]
      %v199 = vld [vmem:[%s172 + $0x40] sm:$0xf]
      %v200 = vld [vmem:[%s172 + $0x44] sm:$0x1]
      %v201 = vld [vmem:[%s172 + $0x48] sm:$0xf]
      %v202 = vld [vmem:[%s172 + $0x4c] sm:$0xf]
      %v203 = vld [vmem:[%s172 + $0x50] sm:$0x1]
      %v204 = vld [vmem:[%s172 + $0x54] sm:$0xf]
      %v205 = vld [vmem:[%s172 + $0x58] sm:$0xf]
      %v206 = vld [vmem:[%s172 + $0x5c] sm:$0x1]
      %v207 = vld [vmem:[%s172 + $0x60] sm:$0xf]
      %v208 = vld [vmem:[%s172 + $0x64] sm:$0xf]
      %v209 = vld [vmem:[%s172 + $0x68] sm:$0x1]
      %v210 = vld [vmem:[%s172 + $0x6c] sm:$0xf]
      %v211 = vld [vmem:[%s172 + $0x70] sm:$0xf]
      %v212 = vld [vmem:[%s172 + $0x74] sm:$0x1]
      %v213 = vld [vmem:[%s172 + $0x78] sm:$0xf]
      %v214 = vld [vmem:[%s172 + $0x7c] sm:$0xf]
      %v215 = vld [vmem:[%s172 + $0x80] sm:$0x1]
      %v216 = vld [vmem:[%s172 + $0x84] sm:$0xf]
      %v217 = vld [vmem:[%s172 + $0x88] sm:$0xf]
      %v218 = vld [vmem:[%s172 + $0x8c] sm:$0x1]
      %v219 = vld [vmem:[%s172 + $0x90] sm:$0xf]
      %v220 = vld [vmem:[%s172 + $0x94] sm:$0xf]
      %v221 = vld [vmem:[%s172 + $0x98] sm:$0x1]
      %v222 = vld [vmem:[%s172 + $0x9c] sm:$0xf]
      %v223 = vld [vmem:[%s172 + $0xa0] sm:$0xf]
      %v224 = vld [vmem:[%s172 + $0xa4] sm:$0x1]
      %v225 = vld [vmem:[%s172 + $0xa8] sm:$0xf]
      %v226 = vld [vmem:[%s172 + $0xac] sm:$0xf]
      %v227 = vld [vmem:[%s172 + $0xb0] sm:$0x1]
      %v228 = vld [vmem:[%s172 + $0xb4] sm:$0xf]
      %v229 = vld [vmem:[%s172 + $0xb8] sm:$0xf]
      %v230 = vld [vmem:[%s172 + $0xbc] sm:$0x1]
      %v231 = vld [vmem:[%s172 + $0xc0] sm:$0xf]
      %v232 = vld [vmem:[%s172 + $0xc4] sm:$0xf]
      %v233 = vld [vmem:[%s172 + $0xc8] sm:$0x1]
      %v234 = vld [vmem:[%s172 + $0xcc] sm:$0xf]
      %v235 = vld [vmem:[%s172 + $0xd0] sm:$0xf]
      %v236 = vld [vmem:[%s172 + $0xd4] sm:$0x1]
      %v273 = vunpack.c.l.b16 %v183
      %v274 = vunpack.c.l.b16 %v184
      %v275 = vunpack.c.l.b16 %v186
      %v276 = vunpack.c.l.b16 %v187
      %v277 = vunpack.c.l.b16 %v189
      %v278 = vunpack.c.l.b16 %v190
      %v279 = vunpack.c.l.b16 %v192
      %v280 = vunpack.c.l.b16 %v193
      %v281 = vunpack.c.l.b16 %v195
      %v282 = vunpack.c.l.b16 %v196
      %v283 = vunpack.c.l.b16 %v198
      %v284 = vunpack.c.l.b16 %v199
      %v285 = vunpack.c.l.b16 %v201
      %v286 = vunpack.c.l.b16 %v202
      %v287 = vunpack.c.l.b16 %v204
      %v288 = vunpack.c.l.b16 %v205
      %v289 = vunpack.c.l.b16 %v207
      %v290 = vunpack.c.l.b16 %v208
      %v291 = vunpack.c.l.b16 %v210
      %v292 = vunpack.c.l.b16 %v211
      %v293 = vunpack.c.l.b16 %v213
      %v294 = vunpack.c.l.b16 %v214
      %v295 = vunpack.c.l.b16 %v216
      %v296 = vunpack.c.l.b16 %v217
      %v297 = vunpack.c.l.b16 %v219
      %v298 = vunpack.c.l.b16 %v220
      %v299 = vunpack.c.l.b16 %v222
      %v300 = vunpack.c.l.b16 %v223
      %v301 = vunpack.c.l.b16 %v225
      %v302 = vunpack.c.l.b16 %v226
      %v303 = vunpack.c.l.b16 %v228
      %v304 = vunpack.c.l.b16 %v229
      %v305 = vunpack.c.l.b16 %v231
      %v306 = vunpack.c.l.b16 %v232
      %v307 = vunpack.c.l.b16 %v234
      %v308 = vunpack.c.l.b16 %v235
      %v309 = vpack.c.b16 %v274, %v273
      %v310 = vpack.c.b16 %v276, %v275
      %v311 = vpack.c.b16 %v278, %v277
      %v312 = vpack.c.b16 %v280, %v279
      %v313 = vpack.c.b16 %v282, %v281
      %v314 = vpack.c.b16 %v284, %v283
      %v315 = vpack.c.b16 %v286, %v285
      %v316 = vpack.c.b16 %v288, %v287
      %v317 = vpack.c.b16 %v290, %v289
      %v318 = vpack.c.b16 %v292, %v291
      %v319 = vpack.c.b16 %v294, %v293
      %v320 = vpack.c.b16 %v296, %v295
      %v321 = vpack.c.b16 %v298, %v297
      %v322 = vpack.c.b16 %v300, %v299
      %v323 = vpack.c.b16 %v302, %v301
      %v324 = vpack.c.b16 %v304, %v303
      %v325 = vpack.c.b16 %v306, %v305
      %v326 = vpack.c.b16 %v308, %v307
      %v363 = vunpack.c.l.b16 %v185
      %v364 = vunpack.c.l.b16 %v188
      %v365 = vunpack.c.l.b16 %v191
      %v366 = vunpack.c.l.b16 %v194
      %v367 = vunpack.c.l.b16 %v197
      %v368 = vunpack.c.l.b16 %v200
      %v369 = vunpack.c.l.b16 %v203
      %v370 = vunpack.c.l.b16 %v206
      %v371 = vunpack.c.l.b16 %v209
      %v372 = vunpack.c.l.b16 %v212
      %v373 = vunpack.c.l.b16 %v215
      %v374 = vunpack.c.l.b16 %v218
      %v375 = vunpack.c.l.b16 %v221
      %v376 = vunpack.c.l.b16 %v224
      %v377 = vunpack.c.l.b16 %v227
      %v378 = vunpack.c.l.b16 %v230
      %v379 = vunpack.c.l.b16 %v233
      %v380 = vunpack.c.l.b16 %v236
      %v381 = vpack.c.b16 %v363, %v363
      %v382 = vpack.c.b16 %v364, %v364
      %v383 = vpack.c.b16 %v365, %v365
      %v384 = vpack.c.b16 %v366, %v366
      %v385 = vpack.c.b16 %v367, %v367
      %v386 = vpack.c.b16 %v368, %v368
      %v387 = vpack.c.b16 %v369, %v369
      %v388 = vpack.c.b16 %v370, %v370
      %v389 = vpack.c.b16 %v371, %v371
      %v390 = vpack.c.b16 %v372, %v372
      %v391 = vpack.c.b16 %v373, %v373
      %v392 = vpack.c.b16 %v374, %v374
      %v393 = vpack.c.b16 %v375, %v375
      %v394 = vpack.c.b16 %v376, %v376
      %v395 = vpack.c.b16 %v377, %v377
      %v396 = vpack.c.b16 %v378, %v378
      %v397 = vpack.c.b16 %v379, %v379
      %v398 = vpack.c.b16 %v380, %v380
      %vm399 = vsmask.f32 7424
      %v401 = vshrl.u32 %v309, 16
      %v403 = vshll.u32 %v309, 16
      %v405 = vrot.slane %v403, 1
      %v406 = vor.u32 %v401, %v405
      %v408 = vshll.u32 %v381, 16
      %v410 = vrot.slane %v408, 1
      %v411 = vsel %vm399, %v406, %v410
      %v413 = vshrl.u32 %v310, 16
      %v415 = vshll.u32 %v310, 16
      %v417 = vrot.slane %v415, 1
      %v418 = vor.u32 %v413, %v417
      %v420 = vshll.u32 %v382, 16
      %v422 = vrot.slane %v420, 1
      %v423 = vsel %vm399, %v418, %v422
      %v425 = vshrl.u32 %v311, 16
      %v427 = vshll.u32 %v311, 16
      %v429 = vrot.slane %v427, 1
      %v430 = vor.u32 %v425, %v429
      %v432 = vshll.u32 %v383, 16
      %v434 = vrot.slane %v432, 1
      %v435 = vsel %vm399, %v430, %v434
      %v437 = vshrl.u32 %v312, 16
      %v439 = vshll.u32 %v312, 16
      %v441 = vrot.slane %v439, 1
      %v442 = vor.u32 %v437, %v441
      %v444 = vshll.u32 %v384, 16
      %v446 = vrot.slane %v444, 1
      %v447 = vsel %vm399, %v442, %v446
      %v449 = vshrl.u32 %v313, 16
      %v451 = vshll.u32 %v313, 16
      %v453 = vrot.slane %v451, 1
      %v454 = vor.u32 %v449, %v453
      %v456 = vshll.u32 %v385, 16
      %v458 = vrot.slane %v456, 1
      %v459 = vsel %vm399, %v454, %v458
      %v461 = vshrl.u32 %v314, 16
      %v463 = vshll.u32 %v314, 16
      %v465 = vrot.slane %v463, 1
      %v466 = vor.u32 %v461, %v465
      %v468 = vshll.u32 %v386, 16
      %v470 = vrot.slane %v468, 1
      %v471 = vsel %vm399, %v466, %v470
      %v473 = vshrl.u32 %v315, 16
      %v475 = vshll.u32 %v315, 16
      %v477 = vrot.slane %v475, 1
      %v478 = vor.u32 %v473, %v477
      %v480 = vshll.u32 %v387, 16
      %v482 = vrot.slane %v480, 1
      %v483 = vsel %vm399, %v478, %v482
      %v485 = vshrl.u32 %v316, 16
      %v487 = vshll.u32 %v316, 16
      %v489 = vrot.slane %v487, 1
      %v490 = vor.u32 %v485, %v489
      %v492 = vshll.u32 %v388, 16
      %v494 = vrot.slane %v492, 1
      %v495 = vsel %vm399, %v490, %v494
      %v497 = vshrl.u32 %v317, 16
      %v499 = vshll.u32 %v317, 16
      %v501 = vrot.slane %v499, 1
      %v502 = vor.u32 %v497, %v501
      %v504 = vshll.u32 %v389, 16
      %v506 = vrot.slane %v504, 1
      %v507 = vsel %vm399, %v502, %v506
      %v509 = vshrl.u32 %v318, 16
      %v511 = vshll.u32 %v318, 16
      %v513 = vrot.slane %v511, 1
      %v514 = vor.u32 %v509, %v513
      %v516 = vshll.u32 %v390, 16
      %v518 = vrot.slane %v516, 1
      %v519 = vsel %vm399, %v514, %v518
      %v521 = vshrl.u32 %v319, 16
      %v523 = vshll.u32 %v319, 16
      %v525 = vrot.slane %v523, 1
      %v526 = vor.u32 %v521, %v525
      %v528 = vshll.u32 %v391, 16
      %v530 = vrot.slane %v528, 1
      %v531 = vsel %vm399, %v526, %v530
      %v533 = vshrl.u32 %v320, 16
      %v535 = vshll.u32 %v320, 16
      %v537 = vrot.slane %v535, 1
      %v538 = vor.u32 %v533, %v537
      %v540 = vshll.u32 %v392, 16
      %v542 = vrot.slane %v540, 1
      %v543 = vsel %vm399, %v538, %v542
      %v545 = vshrl.u32 %v321, 16
      %v547 = vshll.u32 %v321, 16
      %v549 = vrot.slane %v547, 1
      %v550 = vor.u32 %v545, %v549
      %v552 = vshll.u32 %v393, 16
      %v554 = vrot.slane %v552, 1
      %v555 = vsel %vm399, %v550, %v554
      %v557 = vshrl.u32 %v322, 16
      %v559 = vshll.u32 %v322, 16
      %v561 = vrot.slane %v559, 1
      %v562 = vor.u32 %v557, %v561
      %v564 = vshll.u32 %v394, 16
      %v566 = vrot.slane %v564, 1
      %v567 = vsel %vm399, %v562, %v566
      %v569 = vshrl.u32 %v323, 16
      %v571 = vshll.u32 %v323, 16
      %v573 = vrot.slane %v571, 1
      %v574 = vor.u32 %v569, %v573
      %v576 = vshll.u32 %v395, 16
      %v578 = vrot.slane %v576, 1
      %v579 = vsel %vm399, %v574, %v578
      %v581 = vshrl.u32 %v324, 16
      %v583 = vshll.u32 %v324, 16
      %v585 = vrot.slane %v583, 1
      %v586 = vor.u32 %v581, %v585
      %v588 = vshll.u32 %v396, 16
      %v590 = vrot.slane %v588, 1
      %v591 = vsel %vm399, %v586, %v590
      %v593 = vshrl.u32 %v325, 16
      %v595 = vshll.u32 %v325, 16
      %v597 = vrot.slane %v595, 1
      %v598 = vor.u32 %v593, %v597
      %v600 = vshll.u32 %v397, 16
      %v602 = vrot.slane %v600, 1
      %v603 = vsel %vm399, %v598, %v602
      %v605 = vshrl.u32 %v326, 16
      %v607 = vshll.u32 %v326, 16
      %v609 = vrot.slane %v607, 1
      %v610 = vor.u32 %v605, %v609
      %v612 = vshll.u32 %v398, 16
      %v614 = vrot.slane %v612, 1
      %v615 = vsel %vm399, %v610, %v614
      %vm634 = vcmask 1046528
      %v635 = vrot.slane %v309, 1
      %v636 = vrot.slane %v381, 1
      %v637 = vsel %vm634, %v635, %v636
      %v638 = vrot.slane %v310, 1
      %v639 = vrot.slane %v382, 1
      %v640 = vsel %vm634, %v638, %v639
      %v641 = vrot.slane %v311, 1
      %v642 = vrot.slane %v383, 1
      %v643 = vsel %vm634, %v641, %v642
      %v644 = vrot.slane %v312, 1
      %v645 = vrot.slane %v384, 1
      %v646 = vsel %vm634, %v644, %v645
      %v647 = vrot.slane %v313, 1
      %v648 = vrot.slane %v385, 1
      %v649 = vsel %vm634, %v647, %v648
      %v650 = vrot.slane %v314, 1
      %v651 = vrot.slane %v386, 1
      %v652 = vsel %vm634, %v650, %v651
      %v653 = vrot.slane %v315, 1
      %v654 = vrot.slane %v387, 1
      %v655 = vsel %vm634, %v653, %v654
      %v656 = vrot.slane %v316, 1
      %v657 = vrot.slane %v388, 1
      %v658 = vsel %vm634, %v656, %v657
      %v659 = vrot.slane %v317, 1
      %v660 = vrot.slane %v389, 1
      %v661 = vsel %vm634, %v659, %v660
      %v662 = vrot.slane %v318, 1
      %v663 = vrot.slane %v390, 1
      %v664 = vsel %vm634, %v662, %v663
      %v665 = vrot.slane %v319, 1
      %v666 = vrot.slane %v391, 1
      %v667 = vsel %vm634, %v665, %v666
      %v668 = vrot.slane %v320, 1
      %v669 = vrot.slane %v392, 1
      %v670 = vsel %vm634, %v668, %v669
      %v671 = vrot.slane %v321, 1
      %v672 = vrot.slane %v393, 1
      %v673 = vsel %vm634, %v671, %v672
      %v674 = vrot.slane %v322, 1
      %v675 = vrot.slane %v394, 1
      %v676 = vsel %vm634, %v674, %v675
      %v677 = vrot.slane %v323, 1
      %v678 = vrot.slane %v395, 1
      %v679 = vsel %vm634, %v677, %v678
      %v680 = vrot.slane %v324, 1
      %v681 = vrot.slane %v396, 1
      %v682 = vsel %vm634, %v680, %v681
      %v683 = vrot.slane %v325, 1
      %v684 = vrot.slane %v397, 1
      %v685 = vsel %vm634, %v683, %v684
      %v686 = vrot.slane %v326, 1
      %v687 = vrot.slane %v398, 1
      %v688 = vsel %vm634, %v686, %v687
      %v707 = vld [vmem:[%s1] sm:$0xf]
      %v708 = vld [vmem:[%s1 + $0x4] sm:$0xf]
      %v709 = vld [vmem:[%s1 + $0x8] sm:$0xf]
      %v710 = vld [vmem:[%s1 + $0xc] sm:$0xf]
      %v711 = vld [vmem:[%s1 + $0x10] sm:$0xf]
      %v712 = vld [vmem:[%s1 + $0x14] sm:$0xf]
      %v713 = vld [vmem:[%s1 + $0x18] sm:$0xf]
      %v714 = vld [vmem:[%s1 + $0x1c] sm:$0xf]
      %v715 = vld [vmem:[%s1 + $0x20] sm:$0xf]
      %v716 = vld [vmem:[%s1 + $0x24] sm:$0xf]
      %v717 = vld [vmem:[%s1 + $0x28] sm:$0xf]
      %v718 = vld [vmem:[%s1 + $0x2c] sm:$0xf]
      %v719 = vld [vmem:[%s1 + $0x30] sm:$0xf]
      %v720 = vld [vmem:[%s1 + $0x34] sm:$0xf]
      %v721 = vld [vmem:[%s1 + $0x38] sm:$0xf]
      %v722 = vld [vmem:[%s1 + $0x3c] sm:$0xf]
      %v723 = vld [vmem:[%s1 + $0x40] sm:$0xf]
      %v724 = vld [vmem:[%s1 + $0x44] sm:$0xf]
      %v725 = vld [vmem:[%s1 + $0x48] sm:$0xf]
      %v726 = vld [vmem:[%s1 + $0x4c] sm:$0xf]
      %v727 = vld [vmem:[%s1 + $0x50] sm:$0xf]
      %v728 = vld [vmem:[%s1 + $0x54] sm:$0xf]
      %v729 = vld [vmem:[%s1 + $0x58] sm:$0xf]
      %v730 = vld [vmem:[%s1 + $0x5c] sm:$0xf]
      %v731 = vld [vmem:[%s1 + $0x60] sm:$0xf]
      %v732 = vld [vmem:[%s1 + $0x64] sm:$0xf]
      %v733 = vld [vmem:[%s1 + $0x68] sm:$0xf]
      %v734 = vld [vmem:[%s1 + $0x6c] sm:$0xf]
      %v735 = vld [vmem:[%s1 + $0x70] sm:$0xf]
      %v736 = vld [vmem:[%s1 + $0x74] sm:$0xf]
      %v737 = vld [vmem:[%s1 + $0x78] sm:$0xf]
      %v738 = vld [vmem:[%s1 + $0x7c] sm:$0xf]
      %v739 = vld [vmem:[%s1 + $0x80] sm:$0xf]
      %v740 = vld [vmem:[%s1 + $0x84] sm:$0xf]
      %v741 = vld [vmem:[%s1 + $0x88] sm:$0xf]
      %v742 = vld [vmem:[%s1 + $0x8c] sm:$0xf]
      %v743 = vld [vmem:[%s1 + $0x90] sm:$0xf]
      %v744 = vld [vmem:[%s1 + $0x94] sm:$0xf]
      %v745 = vld [vmem:[%s1 + $0x98] sm:$0xf]
      %v746 = vld [vmem:[%s1 + $0x9c] sm:$0xf]
      %v747 = vld [vmem:[%s1 + $0xa0] sm:$0xf]
      %v748 = vld [vmem:[%s1 + $0xa4] sm:$0xf]
      %v749 = vld [vmem:[%s1 + $0xa8] sm:$0xf]
      %v750 = vld [vmem:[%s1 + $0xac] sm:$0xf]
      %v751 = vld [vmem:[%s1 + $0xb0] sm:$0xf]
      %v752 = vld [vmem:[%s1 + $0xb4] sm:$0xf]
      %v753 = vld [vmem:[%s1 + $0xb8] sm:$0xf]
      %v754 = vld [vmem:[%s1 + $0xbc] sm:$0xf]
      %s755 = scalar_lea.vmem %s1, 192
      %v756 = vld [vmem:[%s755] sm:$0xf]
      %v757 = vld [vmem:[%s755 + $0x4] sm:$0xf]
      %v758 = vld [vmem:[%s755 + $0x8] sm:$0xf]
      %v759 = vld [vmem:[%s755 + $0xc] sm:$0xf]
      %v760 = vld [vmem:[%s755 + $0x10] sm:$0xf]
      %v761 = vld [vmem:[%s755 + $0x14] sm:$0xf]
      %v762 = vld [vmem:[%s755 + $0x18] sm:$0xf]
      %v763 = vld [vmem:[%s755 + $0x1c] sm:$0xf]
      %v764 = vld [vmem:[%s755 + $0x20] sm:$0xf]
      %v765 = vld [vmem:[%s755 + $0x24] sm:$0xf]
      %v766 = vld [vmem:[%s755 + $0x28] sm:$0xf]
      %v767 = vld [vmem:[%s755 + $0x2c] sm:$0xf]
      %v768 = vld [vmem:[%s755 + $0x30] sm:$0xf]
      %v769 = vld [vmem:[%s755 + $0x34] sm:$0xf]
      %v770 = vld [vmem:[%s755 + $0x38] sm:$0xf]
      %v771 = vld [vmem:[%s755 + $0x3c] sm:$0xf]
      %v772 = vld [vmem:[%s755 + $0x40] sm:$0xf]
      %v773 = vld [vmem:[%s755 + $0x44] sm:$0xf]
      %v774 = vld [vmem:[%s755 + $0x48] sm:$0xf]
      %v775 = vld [vmem:[%s755 + $0x4c] sm:$0xf]
      %v776 = vld [vmem:[%s755 + $0x50] sm:$0xf]
      %v777 = vld [vmem:[%s755 + $0x54] sm:$0xf]
      %v778 = vld [vmem:[%s755 + $0x58] sm:$0xf]
      %v779 = vld [vmem:[%s755 + $0x5c] sm:$0xf]
      %v780 = vld [vmem:[%s755 + $0x60] sm:$0xf]
      %v781 = vld [vmem:[%s755 + $0x64] sm:$0xf]
      %v782 = vld [vmem:[%s755 + $0x68] sm:$0xf]
      %v783 = vld [vmem:[%s755 + $0x6c] sm:$0xf]
      %v784 = vld [vmem:[%s755 + $0x70] sm:$0xf]
      %v785 = vld [vmem:[%s755 + $0x74] sm:$0xf]
      %v786 = vld [vmem:[%s755 + $0x78] sm:$0xf]
      %v787 = vld [vmem:[%s755 + $0x7c] sm:$0xf]
      %v788 = vld [vmem:[%s755 + $0x80] sm:$0xf]
      %v789 = vld [vmem:[%s755 + $0x84] sm:$0xf]
      %v790 = vld [vmem:[%s755 + $0x88] sm:$0xf]
      %v791 = vld [vmem:[%s755 + $0x8c] sm:$0xf]
      %v792 = vld [vmem:[%s755 + $0x90] sm:$0xf]
      %v793 = vld [vmem:[%s755 + $0x94] sm:$0xf]
      %v794 = vld [vmem:[%s755 + $0x98] sm:$0xf]
      %v795 = vld [vmem:[%s755 + $0x9c] sm:$0xf]
      %v796 = vld [vmem:[%s755 + $0xa0] sm:$0xf]
      %v797 = vld [vmem:[%s755 + $0xa4] sm:$0xf]
      %v798 = vld [vmem:[%s755 + $0xa8] sm:$0xf]
      %v799 = vld [vmem:[%s755 + $0xac] sm:$0xf]
      %v800 = vld [vmem:[%s755 + $0xb0] sm:$0xf]
      %v801 = vld [vmem:[%s755 + $0xb4] sm:$0xf]
      %v802 = vld [vmem:[%s755 + $0xb8] sm:$0xf]
      %v803 = vld [vmem:[%s755 + $0xbc] sm:$0xf]
      %v852 = vunpack.c.l.b16 %v756
      %v853 = vunpack.c.l.b16 %v757
      %v854 = vunpack.c.l.b16 %v758
      %v855 = vunpack.c.l.b16 %v759
      %v856 = vunpack.c.l.b16 %v760
      %v857 = vunpack.c.l.b16 %v761
      %v858 = vunpack.c.l.b16 %v762
      %v859 = vunpack.c.l.b16 %v763
      %v860 = vunpack.c.l.b16 %v764
      %v861 = vunpack.c.l.b16 %v765
      %v862 = vunpack.c.l.b16 %v766
      %v863 = vunpack.c.l.b16 %v767
      %v864 = vunpack.c.l.b16 %v768
      %v865 = vunpack.c.l.b16 %v769
      %v866 = vunpack.c.l.b16 %v770
      %v867 = vunpack.c.l.b16 %v771
      %v868 = vunpack.c.l.b16 %v772
      %v869 = vunpack.c.l.b16 %v773
      %v870 = vunpack.c.l.b16 %v774
      %v871 = vunpack.c.l.b16 %v775
      %v872 = vunpack.c.l.b16 %v776
      %v873 = vunpack.c.l.b16 %v777
      %v874 = vunpack.c.l.b16 %v778
      %v875 = vunpack.c.l.b16 %v779
      %v876 = vunpack.c.l.b16 %v780
      %v877 = vunpack.c.l.b16 %v781
      %v878 = vunpack.c.l.b16 %v782
      %v879 = vunpack.c.l.b16 %v783
      %v880 = vunpack.c.l.b16 %v784
      %v881 = vunpack.c.l.b16 %v785
      %v882 = vunpack.c.l.b16 %v786
      %v883 = vunpack.c.l.b16 %v787
      %v884 = vunpack.c.l.b16 %v788
      %v885 = vunpack.c.l.b16 %v789
      %v886 = vunpack.c.l.b16 %v790
      %v887 = vunpack.c.l.b16 %v791
      %v888 = vunpack.c.l.b16 %v792
      %v889 = vunpack.c.l.b16 %v793
      %v890 = vunpack.c.l.b16 %v794
      %v891 = vunpack.c.l.b16 %v795
      %v892 = vunpack.c.l.b16 %v796
      %v893 = vunpack.c.l.b16 %v797
      %v894 = vunpack.c.l.b16 %v798
      %v895 = vunpack.c.l.b16 %v799
      %v896 = vunpack.c.l.b16 %v800
      %v897 = vunpack.c.l.b16 %v801
      %v898 = vunpack.c.l.b16 %v802
      %v899 = vunpack.c.l.b16 %v803
      %v900 = vpack.c.b16 %v853, %v852
      %v901 = vpack.c.b16 %v855, %v854
      %v902 = vpack.c.b16 %v857, %v856
      %v903 = vpack.c.b16 %v859, %v858
      %v904 = vpack.c.b16 %v861, %v860
      %v905 = vpack.c.b16 %v863, %v862
      %v906 = vpack.c.b16 %v865, %v864
      %v907 = vpack.c.b16 %v867, %v866
      %v908 = vpack.c.b16 %v869, %v868
      %v909 = vpack.c.b16 %v871, %v870
      %v910 = vpack.c.b16 %v873, %v872
      %v911 = vpack.c.b16 %v875, %v874
      %v912 = vpack.c.b16 %v877, %v876
      %v913 = vpack.c.b16 %v879, %v878
      %v914 = vpack.c.b16 %v881, %v880
      %v915 = vpack.c.b16 %v883, %v882
      %v916 = vpack.c.b16 %v885, %v884
      %v917 = vpack.c.b16 %v887, %v886
      %v918 = vpack.c.b16 %v889, %v888
      %v919 = vpack.c.b16 %v891, %v890
      %v920 = vpack.c.b16 %v893, %v892
      %v921 = vpack.c.b16 %v895, %v894
      %v922 = vpack.c.b16 %v897, %v896
      %v923 = vpack.c.b16 %v899, %v898
      %948 = vmatprep.subr.bf16.mxu0 0
      %949 = vmatpush1.bf16.msra.mxu0 %v900
      %950 = vmatprep.subr.bf16.mxu0 0
      %951 = vmatpush1.bf16.msra.mxu0 %v901
      %952 = vmatprep.subr.bf16.mxu0 0
      %953 = vmatpush1.bf16.msra.mxu0 %v902
      %954 = vmatprep.subr.bf16.mxu0 0
      %955 = vmatpush1.bf16.msra.mxu0 %v903
      %956 = vmatprep.subr.bf16.mxu0 0
      %957 = vmatpush1.bf16.msra.mxu0 %v904
      %958 = vmatprep.subr.bf16.mxu0 0
      %959 = vmatpush1.bf16.msra.mxu0 %v905
      %960 = vmatprep.subr.bf16.mxu0 0
      %961 = vmatpush1.bf16.msra.mxu0 %v906
      %962 = vmatprep.subr.bf16.mxu0 0
      %963 = vmatpush1.bf16.msra.mxu0 %v907
      %964 = vmatprep.subr.bf16.mxu0 0
      %965 = vmatpush1.bf16.msra.mxu0 %v908
      %966 = vmatprep.subr.bf16.mxu0 0
      %967 = vmatpush1.bf16.msra.mxu0 %v909
      %968 = vmatprep.subr.bf16.mxu0 0
      %969 = vmatpush1.bf16.msra.mxu0 %v910
      %970 = vmatprep.subr.bf16.mxu0 0
      %971 = vmatpush1.bf16.msra.mxu0 %v911
      %972 = vmatprep.subr.bf16.mxu0 0
      %973 = vmatpush1.bf16.msra.mxu0 %v912
      %974 = vmatprep.subr.bf16.mxu0 0
      %975 = vmatpush1.bf16.msra.mxu0 %v913
      %976 = vmatprep.subr.bf16.mxu0 0
      %977 = vmatpush1.bf16.msra.mxu0 %v914
      %978 = vmatprep.subr.bf16.mxu0 0
      %979 = vmatpush1.bf16.msra.mxu0 %v915
      %980 = vmatprep.mubr.bf16.mxu0 %v423
      %981 = vmatmul.mubr.bf16.gmra.mrb[0].mxu0 %v310
      %v982 = vpop.f32.mrb[0].mxu0
      %v983 = vadd.f32 0.0, %v982
      %v984 = vpop.f32.mrb[0].mxu0
      %v985 = vpop.f32.mrb[0].mxu0
      %v986 = vadd.f32 0.0, %v985
      %v987 = vpop.f32.mrb[0].mxu0
      %988 = vmatprep.mubr.bf16.mxu0 %v435
      %989 = vmatmul.mubr.bf16.gmra.mrb[0].mxu0 %v311
      %v990 = vpop.f32.mrb[0].mxu0
      %v991 = vadd.f32 0.0, %v990
      %v992 = vpop.f32.mrb[0].mxu0
      %v993 = vpop.f32.mrb[0].mxu0
      %v994 = vadd.f32 0.0, %v993
      %v995 = vpop.f32.mrb[0].mxu0
      %996 = vmatprep.mubr.bf16.mxu0 %v447
      %997 = vmatmul.mubr.bf16.gmra.mrb[0].mxu0 %v312
      %v998 = vpop.f32.mrb[0].mxu0
      %v999 = vadd.f32 0.0, %v998
      %v1000 = vpop.f32.mrb[0].mxu0
      %v1001 = vpop.f32.mrb[0].mxu0
      %v1002 = vadd.f32 0.0, %v1001
      %v1003 = vpop.f32.mrb[0].mxu0
      %1004 = vmatprep.mubr.bf16.mxu0 %v459
      %1005 = vmatmul.mubr.bf16.gmra.mrb[0].mxu0 %v313
      %v1006 = vpop.f32.mrb[0].mxu0
      %v1007 = vadd.f32 0.0, %v1006
      %v1008 = vpop.f32.mrb[0].mxu0
      %v1009 = vpop.f32.mrb[0].mxu0
      %v1010 = vadd.f32 0.0, %v1009
      %v1011 = vpop.f32.mrb[0].mxu0
      %1012 = vmatprep.mubr.bf16.mxu0 %v471
      %1013 = vmatmul.mubr.bf16.gmra.mrb[0].mxu0 %v314
      %v1014 = vpop.f32.mrb[0].mxu0
      %v1015 = vadd.f32 0.0, %v1014
      %v1016 = vpop.f32.mrb[0].mxu0
      %v1017 = vpop.f32.mrb[0].mxu0
      %v1018 = vadd.f32 0.0, %v1017
      %v1019 = vpop.f32.mrb[0].mxu0
      %1020 = vmatprep.mubr.bf16.mxu0 %v483
      %1021 = vmatmul.mubr.bf16.gmra.mrb[0].mxu0 %v315
      %v1022 = vpop.f32.mrb[0].mxu0
      %v1023 = vadd.f32 0.0, %v1022
      %v1024 = vpop.f32.mrb[0].mxu0
      %v1025 = vpop.f32.mrb[0].mxu0
      %v1026 = vadd.f32 0.0, %v1025
      %v1027 = vpop.f32.mrb[0].mxu0
      %1028 = vmatprep.mubr.bf16.mxu0 %v495
      %1029 = vmatmul.mubr.bf16.gmra.mrb[0].mxu0 %v316
      %v1030 = vpop.f32.mrb[0].mxu0
      %v1031 = vadd.f32 0.0, %v1030
      %v1032 = vpop.f32.mrb[0].mxu0
      %v1033 = vpop.f32.mrb[0].mxu0
      %v1034 = vadd.f32 0.0, %v1033
      %v1035 = vpop.f32.mrb[0].mxu0
      %1036 = vmatprep.mubr.bf16.mxu0 %v507
      %1037 = vmatmul.mubr.bf16.gmra.mrb[0].mxu0 %v317
      %v1038 = vpop.f32.mrb[0].mxu0
      %v1039 = vadd.f32 0.0, %v1038
      %v1040 = vpop.f32.mrb[0].mxu0
      %v1041 = vpop.f32.mrb[0].mxu0
      %v1042 = vadd.f32 0.0, %v1041
      %v1043 = vpop.f32.mrb[0].mxu0
      %1044 = vmatprep.mubr.bf16.mxu0 %v519
      %1045 = vmatmul.mubr.bf16.gmra.mrb[0].mxu0 %v318
      %v1046 = vpop.f32.mrb[0].mxu0
      %v1047 = vadd.f32 0.0, %v1046
      %v1048 = vpop.f32.mrb[0].mxu0
      %v1049 = vpop.f32.mrb[0].mxu0
      %v1050 = vadd.f32 0.0, %v1049
      %v1051 = vpop.f32.mrb[0].mxu0
      %1052 = vmatprep.mubr.bf16.mxu0 %v531
      %1053 = vmatmul.mubr.bf16.gmra.mrb[0].mxu0 %v319
      %v1054 = vpop.f32.mrb[0].mxu0
      %v1055 = vadd.f32 0.0, %v1054
      %v1056 = vpop.f32.mrb[0].mxu0
      %v1057 = vpop.f32.mrb[0].mxu0
      %v1058 = vadd.f32 0.0, %v1057
      %v1059 = vpop.f32.mrb[0].mxu0
      %1060 = vmatprep.mubr.bf16.mxu0 %v543
      %1061 = vmatmul.mubr.bf16.gmra.mrb[0].mxu0 %v320
      %v1062 = vpop.f32.mrb[0].mxu0
      %v1063 = vadd.f32 0.0, %v1062
      %v1064 = vpop.f32.mrb[0].mxu0
      %v1065 = vpop.f32.mrb[0].mxu0
      %v1066 = vadd.f32 0.0, %v1065
      %v1067 = vpop.f32.mrb[0].mxu0
      %1068 = vmatprep.mubr.bf16.mxu0 %v555
      %1069 = vmatmul.mubr.bf16.gmra.mrb[0].mxu0 %v321
      %v1070 = vpop.f32.mrb[0].mxu0
      %v1071 = vadd.f32 0.0, %v1070
      %v1072 = vpop.f32.mrb[0].mxu0
      %v1073 = vpop.f32.mrb[0].mxu0
      %v1074 = vadd.f32 0.0, %v1073
      %v1075 = vpop.f32.mrb[0].mxu0
      %1076 = vmatprep.mubr.bf16.mxu0 %v567
      %1077 = vmatmul.mubr.bf16.gmra.mrb[0].mxu0 %v322
      %v1078 = vpop.f32.mrb[0].mxu0
      %v1079 = vadd.f32 0.0, %v1078
      %v1080 = vpop.f32.mrb[0].mxu0
      %v1081 = vpop.f32.mrb[0].mxu0
      %v1082 = vadd.f32 0.0, %v1081
      %v1083 = vpop.f32.mrb[0].mxu0
      %1084 = vmatprep.mubr.bf16.mxu0 %v579
      %1085 = vmatmul.mubr.bf16.gmra.mrb[0].mxu0 %v323
      %v1086 = vpop.f32.mrb[0].mxu0
      %v1087 = vadd.f32 0.0, %v1086
      %v1088 = vpop.f32.mrb[0].mxu0
      %v1089 = vpop.f32.mrb[0].mxu0
      %v1090 = vadd.f32 0.0, %v1089
      %v1091 = vpop.f32.mrb[0].mxu0
      %1092 = vmatprep.mubr.bf16.mxu0 %v591
      %1093 = vmatmul.mubr.bf16.gmra.mrb[0].mxu0 %v324
      %v1094 = vpop.f32.mrb[0].mxu0
      %v1095 = vadd.f32 0.0, %v1094
      %v1096 = vpop.f32.mrb[0].mxu0
      %v1097 = vpop.f32.mrb[0].mxu0
      %v1098 = vadd.f32 0.0, %v1097
      %v1099 = vpop.f32.mrb[0].mxu0
      %1100 = vmatprep.mubr.bf16.mxu0 %v603
      %1101 = vmatmul.mubr.bf16.gmra.mrb[0].mxu0 %v325
      %v1102 = vpop.f32.mrb[0].mxu0
      %v1103 = vadd.f32 0.0, %v1102
      %v1104 = vpop.f32.mrb[0].mxu0
      %v1105 = vpop.f32.mrb[0].mxu0
      %v1106 = vadd.f32 0.0, %v1105
      %v1107 = vpop.f32.mrb[0].mxu0
      %1108 = vdwg.mxu0
      %1109 = vmatprep.subr.bf16.mxu0 0
      %1110 = vmatpush1.bf16.msra.mxu0 %v916
      %1111 = vmatprep.subr.bf16.mxu0 0
      %1112 = vmatpush1.bf16.msra.mxu0 %v917
      %1113 = vmatprep.subr.bf16.mxu0 0
      %1114 = vmatpush1.bf16.msra.mxu0 %v918
      %1115 = vmatprep.subr.bf16.mxu0 0
      %1116 = vmatpush1.bf16.msra.mxu0 %v919
      %1117 = vmatprep.subr.bf16.mxu0 0
      %1118 = vmatpush1.bf16.msra.mxu0 %v920
      %1119 = vmatprep.subr.bf16.mxu0 0
      %1120 = vmatpush1.bf16.msra.mxu0 %v921
      %1121 = vmatprep.subr.bf16.mxu0 0
      %1122 = vmatpush1.bf16.msra.mxu0 %v922
      %1123 = vmatprep.subr.bf16.mxu0 0
      %1124 = vmatpush1.bf16.msra.mxu0 %v923
      %1125 = vmatprep.subr.bf16.mxu0 0
      %1126 = vmatpush1.bf16.msra.mxu0 0
      %1127 = vmatprep.subr.bf16.mxu0 0
      %1128 = vmatpush1.bf16.msra.mxu0 0
      %1129 = vmatprep.subr.bf16.mxu0 0
      %1130 = vmatpush1.bf16.msra.mxu0 0
      %1131 = vmatprep.subr.bf16.mxu0 0
      %1132 = vmatpush1.bf16.msra.mxu0 0
      %1133 = vmatprep.subr.bf16.mxu0 0
      %1134 = vmatpush1.bf16.msra.mxu0 0
      %1135 = vmatprep.subr.bf16.mxu0 0
      %1136 = vmatpush1.bf16.msra.mxu0 0
      %1137 = vmatprep.subr.bf16.mxu0 0
      %1138 = vmatpush1.bf16.msra.mxu0 0
      %1139 = vmatprep.subr.bf16.mxu0 0
      %1140 = vmatpush1.bf16.msra.mxu0 0
      %1141 = vmatprep.mubr.bf16.mxu0 0
      %1142 = vmatmul.mubr.bf16.gmra.mrb[0].mxu0 %v640
      %v1143 = vpop.f32.mrb[0].mxu0
      %v1144 = vadd.f32 %v983, %v1143
      %v1145 = vpop.f32.mrb[0].mxu0
      %v1146 = vpop.f32.mrb[0].mxu0
      %v1147 = vadd.f32 %v986, %v1146
      %v1148 = vpop.f32.mrb[0].mxu0
      %1149 = vmatprep.mubr.bf16.mxu0 0
      %1150 = vmatmul.mubr.bf16.gmra.mrb[0].mxu0 %v643
      %v1151 = vpop.f32.mrb[0].mxu0
      %v1152 = vadd.f32 %v991, %v1151
      %v1153 = vpop.f32.mrb[0].mxu0
      %v1154 = vpop.f32.mrb[0].mxu0
      %v1155 = vadd.f32 %v994, %v1154
      %v1156 = vpop.f32.mrb[0].mxu0
      %1157 = vmatprep.mubr.bf16.mxu0 0
      %1158 = vmatmul.mubr.bf16.gmra.mrb[0].mxu0 %v646
      %v1159 = vpop.f32.mrb[0].mxu0
      %v1160 = vadd.f32 %v999, %v1159
      %v1161 = vpop.f32.mrb[0].mxu0
      %v1162 = vpop.f32.mrb[0].mxu0
      %v1163 = vadd.f32 %v1002, %v1162
      %v1164 = vpop.f32.mrb[0].mxu0
      %1165 = vmatprep.mubr.bf16.mxu0 0
      %1166 = vmatmul.mubr.bf16.gmra.mrb[0].mxu0 %v649
      %v1167 = vpop.f32.mrb[0].mxu0
      %v1168 = vadd.f32 %v1007, %v1167
      %v1169 = vpop.f32.mrb[0].mxu0
      %v1170 = vpop.f32.mrb[0].mxu0
      %v1171 = vadd.f32 %v1010, %v1170
      %v1172 = vpop.f32.mrb[0].mxu0
      %1173 = vmatprep.mubr.bf16.mxu0 0
      %1174 = vmatmul.mubr.bf16.gmra.mrb[0].mxu0 %v652
      %v1175 = vpop.f32.mrb[0].mxu0
      %v1176 = vadd.f32 %v1015, %v1175
      %v1177 = vpop.f32.mrb[0].mxu0
      %v1178 = vpop.f32.mrb[0].mxu0
      %v1179 = vadd.f32 %v1018, %v1178
      %v1180 = vpop.f32.mrb[0].mxu0
      %1181 = vmatprep.mubr.bf16.mxu0 0
      %1182 = vmatmul.mubr.bf16.gmra.mrb[0].mxu0 %v655
      %v1183 = vpop.f32.mrb[0].mxu0
      %v1184 = vadd.f32 %v1023, %v1183
      %v1185 = vpop.f32.mrb[0].mxu0
      %v1186 = vpop.f32.mrb[0].mxu0
      %v1187 = vadd.f32 %v1026, %v1186
      %v1188 = vpop.f32.mrb[0].mxu0
      %1189 = vmatprep.mubr.bf16.mxu0 0
      %1190 = vmatmul.mubr.bf16.gmra.mrb[0].mxu0 %v658
      %v1191 = vpop.f32.mrb[0].mxu0
      %v1192 = vadd.f32 %v1031, %v1191
      %v1193 = vpop.f32.mrb[0].mxu0
      %v1194 = vpop.f32.mrb[0].mxu0
      %v1195 = vadd.f32 %v1034, %v1194
      %v1196 = vpop.f32.mrb[0].mxu0
      %1197 = vmatprep.mubr.bf16.mxu0 0
      %1198 = vmatmul.mubr.bf16.gmra.mrb[0].mxu0 %v661
      %v1199 = vpop.f32.mrb[0].mxu0
      %v1200 = vadd.f32 %v1039, %v1199
      %v1201 = vpop.f32.mrb[0].mxu0
      %v1202 = vpop.f32.mrb[0].mxu0
      %v1203 = vadd.f32 %v1042, %v1202
      %v1204 = vpop.f32.mrb[0].mxu0
      %1205 = vmatprep.mubr.bf16.mxu0 0
      %1206 = vmatmul.mubr.bf16.gmra.mrb[0].mxu0 %v664
      %v1207 = vpop.f32.mrb[0].mxu0
      %v1208 = vadd.f32 %v1047, %v1207
      %v1209 = vpop.f32.mrb[0].mxu0
      %v1210 = vpop.f32.mrb[0].mxu0
      %v1211 = vadd.f32 %v1050, %v1210
      %v1212 = vpop.f32.mrb[0].mxu0
      %1213 = vmatprep.mubr.bf16.mxu0 0
      %1214 = vmatmul.mubr.bf16.gmra.mrb[0].mxu0 %v667
      %v1215 = vpop.f32.mrb[0].mxu0
      %v1216 = vadd.f32 %v1055, %v1215
      %v1217 = vpop.f32.mrb[0].mxu0
      %v1218 = vpop.f32.mrb[0].mxu0
      %v1219 = vadd.f32 %v1058, %v1218
      %v1220 = vpop.f32.mrb[0].mxu0
      %1221 = vmatprep.mubr.bf16.mxu0 0
      %1222 = vmatmul.mubr.bf16.gmra.mrb[0].mxu0 %v670
      %v1223 = vpop.f32.mrb[0].mxu0
      %v1224 = vadd.f32 %v1063, %v1223
      %v1225 = vpop.f32.mrb[0].mxu0
      %v1226 = vpop.f32.mrb[0].mxu0
      %v1227 = vadd.f32 %v1066, %v1226
      %v1228 = vpop.f32.mrb[0].mxu0
      %1229 = vmatprep.mubr.bf16.mxu0 0
      %1230 = vmatmul.mubr.bf16.gmra.mrb[0].mxu0 %v673
      %v1231 = vpop.f32.mrb[0].mxu0
      %v1232 = vadd.f32 %v1071, %v1231
      %v1233 = vpop.f32.mrb[0].mxu0
      %v1234 = vpop.f32.mrb[0].mxu0
      %v1235 = vadd.f32 %v1074, %v1234
      %v1236 = vpop.f32.mrb[0].mxu0
      %1237 = vmatprep.mubr.bf16.mxu0 0
      %1238 = vmatmul.mubr.bf16.gmra.mrb[0].mxu0 %v676
      %v1239 = vpop.f32.mrb[0].mxu0
      %v1240 = vadd.f32 %v1079, %v1239
      %v1241 = vpop.f32.mrb[0].mxu0
      %v1242 = vpop.f32.mrb[0].mxu0
      %v1243 = vadd.f32 %v1082, %v1242
      %v1244 = vpop.f32.mrb[0].mxu0
      %1245 = vmatprep.mubr.bf16.mxu0 0
      %1246 = vmatmul.mubr.bf16.gmra.mrb[0].mxu0 %v679
      %v1247 = vpop.f32.mrb[0].mxu0
      %v1248 = vadd.f32 %v1087, %v1247
      %v1249 = vpop.f32.mrb[0].mxu0
      %v1250 = vpop.f32.mrb[0].mxu0
      %v1251 = vadd.f32 %v1090, %v1250
      %v1252 = vpop.f32.mrb[0].mxu0
      %1253 = vmatprep.mubr.bf16.mxu0 0
      %1254 = vmatmul.mubr.bf16.gmra.mrb[0].mxu0 %v682
      %v1255 = vpop.f32.mrb[0].mxu0
      %v1256 = vadd.f32 %v1095, %v1255
      %v1257 = vpop.f32.mrb[0].mxu0
      %v1258 = vpop.f32.mrb[0].mxu0
      %v1259 = vadd.f32 %v1098, %v1258
      %v1260 = vpop.f32.mrb[0].mxu0
      %1261 = vmatprep.mubr.bf16.mxu0 0
      %1262 = vmatmul.mubr.bf16.gmra.mrb[0].mxu0 %v685
      %v1263 = vpop.f32.mrb[0].mxu0
      %v1264 = vadd.f32 %v1103, %v1263
      %v1265 = vpop.f32.mrb[0].mxu0
      %v1266 = vpop.f32.mrb[0].mxu0
      %v1267 = vadd.f32 %v1106, %v1266
      %v1268 = vpop.f32.mrb[0].mxu0
      %1269 = vdwg.mxu0
      %v1318 = vunpack.c.l.b16 %v707
      %v1319 = vunpack.c.l.b16 %v708
      %v1320 = vunpack.c.l.b16 %v709
      %v1321 = vunpack.c.l.b16 %v710
      %v1322 = vunpack.c.l.b16 %v711
      %v1323 = vunpack.c.l.b16 %v712
      %v1324 = vunpack.c.l.b16 %v713
      %v1325 = vunpack.c.l.b16 %v714
      %v1326 = vunpack.c.l.b16 %v715
      %v1327 = vunpack.c.l.b16 %v716
      %v1328 = vunpack.c.l.b16 %v717
      %v1329 = vunpack.c.l.b16 %v718
      %v1330 = vunpack.c.l.b16 %v719
      %v1331 = vunpack.c.l.b16 %v720
      %v1332 = vunpack.c.l.b16 %v721
      %v1333 = vunpack.c.l.b16 %v722
      %v1334 = vunpack.c.l.b16 %v723
      %v1335 = vunpack.c.l.b16 %v724
      %v1336 = vunpack.c.l.b16 %v725
      %v1337 = vunpack.c.l.b16 %v726
      %v1338 = vunpack.c.l.b16 %v727
      %v1339 = vunpack.c.l.b16 %v728
      %v1340 = vunpack.c.l.b16 %v729
      %v1341 = vunpack.c.l.b16 %v730
      %v1342 = vunpack.c.l.b16 %v731
      %v1343 = vunpack.c.l.b16 %v732
      %v1344 = vunpack.c.l.b16 %v733
      %v1345 = vunpack.c.l.b16 %v734
      %v1346 = vunpack.c.l.b16 %v735
      %v1347 = vunpack.c.l.b16 %v736
      %v1348 = vunpack.c.l.b16 %v737
      %v1349 = vunpack.c.l.b16 %v738
      %v1350 = vunpack.c.l.b16 %v739
      %v1351 = vunpack.c.l.b16 %v740
      %v1352 = vunpack.c.l.b16 %v741
      %v1353 = vunpack.c.l.b16 %v742
      %v1354 = vunpack.c.l.b16 %v743
      %v1355 = vunpack.c.l.b16 %v744
      %v1356 = vunpack.c.l.b16 %v745
      %v1357 = vunpack.c.l.b16 %v746
      %v1358 = vunpack.c.l.b16 %v747
      %v1359 = vunpack.c.l.b16 %v748
      %v1360 = vunpack.c.l.b16 %v749
      %v1361 = vunpack.c.l.b16 %v750
      %v1362 = vunpack.c.l.b16 %v751
      %v1363 = vunpack.c.l.b16 %v752
      %v1364 = vunpack.c.l.b16 %v753
      %v1365 = vunpack.c.l.b16 %v754
      %v1366 = vpack.c.b16 %v1319, %v1318
      %v1367 = vpack.c.b16 %v1321, %v1320
      %v1368 = vpack.c.b16 %v1323, %v1322
      %v1369 = vpack.c.b16 %v1325, %v1324
      %v1370 = vpack.c.b16 %v1327, %v1326
      %v1371 = vpack.c.b16 %v1329, %v1328
      %v1372 = vpack.c.b16 %v1331, %v1330
      %v1373 = vpack.c.b16 %v1333, %v1332
      %v1374 = vpack.c.b16 %v1335, %v1334
      %v1375 = vpack.c.b16 %v1337, %v1336
      %v1376 = vpack.c.b16 %v1339, %v1338
      %v1377 = vpack.c.b16 %v1341, %v1340
      %v1378 = vpack.c.b16 %v1343, %v1342
      %v1379 = vpack.c.b16 %v1345, %v1344
      %v1380 = vpack.c.b16 %v1347, %v1346
      %v1381 = vpack.c.b16 %v1349, %v1348
      %v1382 = vpack.c.b16 %v1351, %v1350
      %v1383 = vpack.c.b16 %v1353, %v1352
      %v1384 = vpack.c.b16 %v1355, %v1354
      %v1385 = vpack.c.b16 %v1357, %v1356
      %v1386 = vpack.c.b16 %v1359, %v1358
      %v1387 = vpack.c.b16 %v1361, %v1360
      %v1388 = vpack.c.b16 %v1363, %v1362
      %v1389 = vpack.c.b16 %v1365, %v1364
      %1414 = vmatprep.subr.bf16.mxu0 0
      %1415 = vmatpush1.bf16.msra.mxu0 %v1366
      %1416 = vmatprep.subr.bf16.mxu0 0
      %1417 = vmatpush1.bf16.msra.mxu0 %v1367
      %1418 = vmatprep.subr.bf16.mxu0 0
      %1419 = vmatpush1.bf16.msra.mxu0 %v1368
      %1420 = vmatprep.subr.bf16.mxu0 0
      %1421 = vmatpush1.bf16.msra.mxu0 %v1369
      %1422 = vmatprep.subr.bf16.mxu0 0
      %1423 = vmatpush1.bf16.msra.mxu0 %v1370
      %1424 = vmatprep.subr.bf16.mxu0 0
      %1425 = vmatpush1.bf16.msra.mxu0 %v1371
      %1426 = vmatprep.subr.bf16.mxu0 0
      %1427 = vmatpush1.bf16.msra.mxu0 %v1372
      %1428 = vmatprep.subr.bf16.mxu0 0
      %1429 = vmatpush1.bf16.msra.mxu0 %v1373
      %1430 = vmatprep.subr.bf16.mxu0 0
      %1431 = vmatpush1.bf16.msra.mxu0 %v1374
      %1432 = vmatprep.subr.bf16.mxu0 0
      %1433 = vmatpush1.bf16.msra.mxu0 %v1375
      %1434 = vmatprep.subr.bf16.mxu0 0
      %1435 = vmatpush1.bf16.msra.mxu0 %v1376
      %1436 = vmatprep.subr.bf16.mxu0 0
      %1437 = vmatpush1.bf16.msra.mxu0 %v1377
      %1438 = vmatprep.subr.bf16.mxu0 0
      %1439 = vmatpush1.bf16.msra.mxu0 %v1378
      %1440 = vmatprep.subr.bf16.mxu0 0
      %1441 = vmatpush1.bf16.msra.mxu0 %v1379
      %1442 = vmatprep.subr.bf16.mxu0 0
      %1443 = vmatpush1.bf16.msra.mxu0 %v1380
      %1444 = vmatprep.subr.bf16.mxu0 0
      %1445 = vmatpush1.bf16.msra.mxu0 %v1381
      %1446 = vmatprep.mubr.bf16.mxu0 %v411
      %1447 = vmatmul.mubr.bf16.gmra.mrb[0].mxu0 %v309
      %v1448 = vpop.f32.mrb[0].mxu0
      %v1449 = vadd.f32 %v1144, %v1448
      %v1450 = vpop.f32.mrb[0].mxu0
      %v1451 = vpop.f32.mrb[0].mxu0
      %v1452 = vadd.f32 %v1147, %v1451
      %v1453 = vpop.f32.mrb[0].mxu0
      %1454 = vmatprep.mubr.bf16.mxu0 %v423
      %1455 = vmatmul.mubr.bf16.gmra.mrb[0].mxu0 %v310
      %v1456 = vpop.f32.mrb[0].mxu0
      %v1457 = vadd.f32 %v1152, %v1456
      %v1458 = vpop.f32.mrb[0].mxu0
      %v1459 = vpop.f32.mrb[0].mxu0
      %v1460 = vadd.f32 %v1155, %v1459
      %v1461 = vpop.f32.mrb[0].mxu0
      %1462 = vmatprep.mubr.bf16.mxu0 %v435
      %1463 = vmatmul.mubr.bf16.gmra.mrb[0].mxu0 %v311
      %v1464 = vpop.f32.mrb[0].mxu0
      %v1465 = vadd.f32 %v1160, %v1464
      %v1466 = vpop.f32.mrb[0].mxu0
      %v1467 = vpop.f32.mrb[0].mxu0
      %v1468 = vadd.f32 %v1163, %v1467
      %v1469 = vpop.f32.mrb[0].mxu0
      %1470 = vmatprep.mubr.bf16.mxu0 %v447
      %1471 = vmatmul.mubr.bf16.gmra.mrb[0].mxu0 %v312
      %v1472 = vpop.f32.mrb[0].mxu0
      %v1473 = vadd.f32 %v1168, %v1472
      %v1474 = vpop.f32.mrb[0].mxu0
      %v1475 = vpop.f32.mrb[0].mxu0
      %v1476 = vadd.f32 %v1171, %v1475
      %v1477 = vpop.f32.mrb[0].mxu0
      %1478 = vmatprep.mubr.bf16.mxu0 %v459
      %1479 = vmatmul.mubr.bf16.gmra.mrb[0].mxu0 %v313
      %v1480 = vpop.f32.mrb[0].mxu0
      %v1481 = vadd.f32 %v1176, %v1480
      %v1482 = vpop.f32.mrb[0].mxu0
      %v1483 = vpop.f32.mrb[0].mxu0
      %v1484 = vadd.f32 %v1179, %v1483
      %v1485 = vpop.f32.mrb[0].mxu0
      %1486 = vmatprep.mubr.bf16.mxu0 %v471
      %1487 = vmatmul.mubr.bf16.gmra.mrb[0].mxu0 %v314
      %v1488 = vpop.f32.mrb[0].mxu0
      %v1489 = vadd.f32 %v1184, %v1488
      %v1490 = vpop.f32.mrb[0].mxu0
      %v1491 = vpop.f32.mrb[0].mxu0
      %v1492 = vadd.f32 %v1187, %v1491
      %v1493 = vpop.f32.mrb[0].mxu0
      %1494 = vmatprep.mubr.bf16.mxu0 %v483
      %1495 = vmatmul.mubr.bf16.gmra.mrb[0].mxu0 %v315
      %v1496 = vpop.f32.mrb[0].mxu0
      %v1497 = vadd.f32 %v1192, %v1496
      %v1498 = vpop.f32.mrb[0].mxu0
      %v1499 = vpop.f32.mrb[0].mxu0
      %v1500 = vadd.f32 %v1195, %v1499
      %v1501 = vpop.f32.mrb[0].mxu0
      %1502 = vmatprep.mubr.bf16.mxu0 %v495
      %1503 = vmatmul.mubr.bf16.gmra.mrb[0].mxu0 %v316
      %v1504 = vpop.f32.mrb[0].mxu0
      %v1505 = vadd.f32 %v1200, %v1504
      %v1506 = vpop.f32.mrb[0].mxu0
      %v1507 = vpop.f32.mrb[0].mxu0
      %v1508 = vadd.f32 %v1203, %v1507
      %v1509 = vpop.f32.mrb[0].mxu0
      %1510 = vmatprep.mubr.bf16.mxu0 %v507
      %1511 = vmatmul.mubr.bf16.gmra.mrb[0].mxu0 %v317
      %v1512 = vpop.f32.mrb[0].mxu0
      %v1513 = vadd.f32 %v1208, %v1512
      %v1514 = vpop.f32.mrb[0].mxu0
      %v1515 = vpop.f32.mrb[0].mxu0
      %v1516 = vadd.f32 %v1211, %v1515
      %v1517 = vpop.f32.mrb[0].mxu0
      %1518 = vmatprep.mubr.bf16.mxu0 %v519
      %1519 = vmatmul.mubr.bf16.gmra.mrb[0].mxu0 %v318
      %v1520 = vpop.f32.mrb[0].mxu0
      %v1521 = vadd.f32 %v1216, %v1520
      %v1522 = vpop.f32.mrb[0].mxu0
      %v1523 = vpop.f32.mrb[0].mxu0
      %v1524 = vadd.f32 %v1219, %v1523
      %v1525 = vpop.f32.mrb[0].mxu0
      %1526 = vmatprep.mubr.bf16.mxu0 %v531
      %1527 = vmatmul.mubr.bf16.gmra.mrb[0].mxu0 %v319
      %v1528 = vpop.f32.mrb[0].mxu0
      %v1529 = vadd.f32 %v1224, %v1528
      %v1530 = vpop.f32.mrb[0].mxu0
      %v1531 = vpop.f32.mrb[0].mxu0
      %v1532 = vadd.f32 %v1227, %v1531
      %v1533 = vpop.f32.mrb[0].mxu0
      %1534 = vmatprep.mubr.bf16.mxu0 %v543
      %1535 = vmatmul.mubr.bf16.gmra.mrb[0].mxu0 %v320
      %v1536 = vpop.f32.mrb[0].mxu0
      %v1537 = vadd.f32 %v1232, %v1536
      %v1538 = vpop.f32.mrb[0].mxu0
      %v1539 = vpop.f32.mrb[0].mxu0
      %v1540 = vadd.f32 %v1235, %v1539
      %v1541 = vpop.f32.mrb[0].mxu0
      %1542 = vmatprep.mubr.bf16.mxu0 %v555
      %1543 = vmatmul.mubr.bf16.gmra.mrb[0].mxu0 %v321
      %v1544 = vpop.f32.mrb[0].mxu0
      %v1545 = vadd.f32 %v1240, %v1544
      %v1546 = vpop.f32.mrb[0].mxu0
      %v1547 = vpop.f32.mrb[0].mxu0
      %v1548 = vadd.f32 %v1243, %v1547
      %v1549 = vpop.f32.mrb[0].mxu0
      %1550 = vmatprep.mubr.bf16.mxu0 %v567
      %1551 = vmatmul.mubr.bf16.gmra.mrb[0].mxu0 %v322
      %v1552 = vpop.f32.mrb[0].mxu0
      %v1553 = vadd.f32 %v1248, %v1552
      %v1554 = vpop.f32.mrb[0].mxu0
      %v1555 = vpop.f32.mrb[0].mxu0
      %v1556 = vadd.f32 %v1251, %v1555
      %v1557 = vpop.f32.mrb[0].mxu0
      %1558 = vmatprep.mubr.bf16.mxu0 %v579
      %1559 = vmatmul.mubr.bf16.gmra.mrb[0].mxu0 %v323
      %v1560 = vpop.f32.mrb[0].mxu0
      %v1561 = vadd.f32 %v1256, %v1560
      %v1562 = vpop.f32.mrb[0].mxu0
      %v1563 = vpop.f32.mrb[0].mxu0
      %v1564 = vadd.f32 %v1259, %v1563
      %v1565 = vpop.f32.mrb[0].mxu0
      %1566 = vmatprep.mubr.bf16.mxu0 %v591
      %1567 = vmatmul.mubr.bf16.gmra.mrb[0].mxu0 %v324
      %v1568 = vpop.f32.mrb[0].mxu0
      %v1569 = vadd.f32 %v1264, %v1568
      %v1570 = vpop.f32.mrb[0].mxu0
      %v1571 = vpop.f32.mrb[0].mxu0
      %v1572 = vadd.f32 %v1267, %v1571
      %v1573 = vpop.f32.mrb[0].mxu0
      %1574 = vdwg.mxu0
      %1575 = vmatprep.subr.bf16.mxu0 0
      %1576 = vmatpush1.bf16.msra.mxu0 %v1382
      %1577 = vmatprep.subr.bf16.mxu0 0
      %1578 = vmatpush1.bf16.msra.mxu0 %v1383
      %1579 = vmatprep.subr.bf16.mxu0 0
      %1580 = vmatpush1.bf16.msra.mxu0 %v1384
      %1581 = vmatprep.subr.bf16.mxu0 0
      %1582 = vmatpush1.bf16.msra.mxu0 %v1385
      %1583 = vmatprep.subr.bf16.mxu0 0
      %1584 = vmatpush1.bf16.msra.mxu0 %v1386
      %1585 = vmatprep.subr.bf16.mxu0 0
      %1586 = vmatpush1.bf16.msra.mxu0 %v1387
      %1587 = vmatprep.subr.bf16.mxu0 0
      %1588 = vmatpush1.bf16.msra.mxu0 %v1388
      %1589 = vmatprep.subr.bf16.mxu0 0
      %1590 = vmatpush1.bf16.msra.mxu0 %v1389
      %1591 = vmatprep.subr.bf16.mxu0 0
      %1592 = vmatpush1.bf16.msra.mxu0 0
      %1593 = vmatprep.subr.bf16.mxu0 0
      %1594 = vmatpush1.bf16.msra.mxu0 0
      %1595 = vmatprep.subr.bf16.mxu0 0
      %1596 = vmatpush1.bf16.msra.mxu0 0
      %1597 = vmatprep.subr.bf16.mxu0 0
      %1598 = vmatpush1.bf16.msra.mxu0 0
      %1599 = vmatprep.subr.bf16.mxu0 0
      %1600 = vmatpush1.bf16.msra.mxu0 0
      %1601 = vmatprep.subr.bf16.mxu0 0
      %1602 = vmatpush1.bf16.msra.mxu0 0
      %1603 = vmatprep.subr.bf16.mxu0 0
      %1604 = vmatpush1.bf16.msra.mxu0 0
      %1605 = vmatprep.subr.bf16.mxu0 0
      %1606 = vmatpush1.bf16.msra.mxu0 0
      %1607 = vmatprep.mubr.bf16.mxu0 0
      %1608 = vmatmul.mubr.bf16.gmra.mrb[0].mxu0 %v637
      %v1609 = vpop.f32.mrb[0].mxu0
      %v1610 = vadd.f32 %v1449, %v1609
      %v1611 = vpop.f32.mrb[0].mxu0
      %v1612 = vpop.f32.mrb[0].mxu0
      %v1613 = vadd.f32 %v1452, %v1612
      %v1614 = vpop.f32.mrb[0].mxu0
      %1615 = vmatprep.mubr.bf16.mxu0 0
      %1616 = vmatmul.mubr.bf16.gmra.mrb[0].mxu0 %v640
      %v1617 = vpop.f32.mrb[0].mxu0
      %v1618 = vadd.f32 %v1457, %v1617
      %v1619 = vpop.f32.mrb[0].mxu0
      %v1620 = vpop.f32.mrb[0].mxu0
      %v1621 = vadd.f32 %v1460, %v1620
      %v1622 = vpop.f32.mrb[0].mxu0
      %1623 = vmatprep.mubr.bf16.mxu0 0
      %1624 = vmatmul.mubr.bf16.gmra.mrb[0].mxu0 %v643
      %v1625 = vpop.f32.mrb[0].mxu0
      %v1626 = vadd.f32 %v1465, %v1625
      %v1627 = vpop.f32.mrb[0].mxu0
      %v1628 = vpop.f32.mrb[0].mxu0
      %v1629 = vadd.f32 %v1468, %v1628
      %v1630 = vpop.f32.mrb[0].mxu0
      %1631 = vmatprep.mubr.bf16.mxu0 0
      %1632 = vmatmul.mubr.bf16.gmra.mrb[0].mxu0 %v646
      %v1633 = vpop.f32.mrb[0].mxu0
      %v1634 = vadd.f32 %v1473, %v1633
      %v1635 = vpop.f32.mrb[0].mxu0
      %v1636 = vpop.f32.mrb[0].mxu0
      %v1637 = vadd.f32 %v1476, %v1636
      %v1638 = vpop.f32.mrb[0].mxu0
      %1639 = vmatprep.mubr.bf16.mxu0 0
      %1640 = vmatmul.mubr.bf16.gmra.mrb[0].mxu0 %v649
      %v1641 = vpop.f32.mrb[0].mxu0
      %v1642 = vadd.f32 %v1481, %v1641
      %v1643 = vpop.f32.mrb[0].mxu0
      %v1644 = vpop.f32.mrb[0].mxu0
      %v1645 = vadd.f32 %v1484, %v1644
      %v1646 = vpop.f32.mrb[0].mxu0
      %1647 = vmatprep.mubr.bf16.mxu0 0
      %1648 = vmatmul.mubr.bf16.gmra.mrb[0].mxu0 %v652
      %v1649 = vpop.f32.mrb[0].mxu0
      %v1650 = vadd.f32 %v1489, %v1649
      %v1651 = vpop.f32.mrb[0].mxu0
      %v1652 = vpop.f32.mrb[0].mxu0
      %v1653 = vadd.f32 %v1492, %v1652
      %v1654 = vpop.f32.mrb[0].mxu0
      %1655 = vmatprep.mubr.bf16.mxu0 0
      %1656 = vmatmul.mubr.bf16.gmra.mrb[0].mxu0 %v655
      %v1657 = vpop.f32.mrb[0].mxu0
      %v1658 = vadd.f32 %v1497, %v1657
      %v1659 = vpop.f32.mrb[0].mxu0
      %v1660 = vpop.f32.mrb[0].mxu0
      %v1661 = vadd.f32 %v1500, %v1660
      %v1662 = vpop.f32.mrb[0].mxu0
      %1663 = vmatprep.mubr.bf16.mxu0 0
      %1664 = vmatmul.mubr.bf16.gmra.mrb[0].mxu0 %v658
      %v1665 = vpop.f32.mrb[0].mxu0
      %v1666 = vadd.f32 %v1505, %v1665
      %v1667 = vpop.f32.mrb[0].mxu0
      %v1668 = vpop.f32.mrb[0].mxu0
      %v1669 = vadd.f32 %v1508, %v1668
      %v1670 = vpop.f32.mrb[0].mxu0
      %1671 = vmatprep.mubr.bf16.mxu0 0
      %1672 = vmatmul.mubr.bf16.gmra.mrb[0].mxu0 %v661
      %v1673 = vpop.f32.mrb[0].mxu0
      %v1674 = vadd.f32 %v1513, %v1673
      %v1675 = vpop.f32.mrb[0].mxu0
      %v1676 = vpop.f32.mrb[0].mxu0
      %v1677 = vadd.f32 %v1516, %v1676
      %v1678 = vpop.f32.mrb[0].mxu0
      %1679 = vmatprep.mubr.bf16.mxu0 0
      %1680 = vmatmul.mubr.bf16.gmra.mrb[0].mxu0 %v664
      %v1681 = vpop.f32.mrb[0].mxu0
      %v1682 = vadd.f32 %v1521, %v1681
      %v1683 = vpop.f32.mrb[0].mxu0
      %v1684 = vpop.f32.mrb[0].mxu0
      %v1685 = vadd.f32 %v1524, %v1684
      %v1686 = vpop.f32.mrb[0].mxu0
      %1687 = vmatprep.mubr.bf16.mxu0 0
      %1688 = vmatmul.mubr.bf16.gmra.mrb[0].mxu0 %v667
      %v1689 = vpop.f32.mrb[0].mxu0
      %v1690 = vadd.f32 %v1529, %v1689
      %v1691 = vpop.f32.mrb[0].mxu0
      %v1692 = vpop.f32.mrb[0].mxu0
      %v1693 = vadd.f32 %v1532, %v1692
      %v1694 = vpop.f32.mrb[0].mxu0
      %1695 = vmatprep.mubr.bf16.mxu0 0
      %1696 = vmatmul.mubr.bf16.gmra.mrb[0].mxu0 %v670
      %v1697 = vpop.f32.mrb[0].mxu0
      %v1698 = vadd.f32 %v1537, %v1697
      %v1699 = vpop.f32.mrb[0].mxu0
      %v1700 = vpop.f32.mrb[0].mxu0
      %v1701 = vadd.f32 %v1540, %v1700
      %v1702 = vpop.f32.mrb[0].mxu0
      %1703 = vmatprep.mubr.bf16.mxu0 0
      %1704 = vmatmul.mubr.bf16.gmra.mrb[0].mxu0 %v673
      %v1705 = vpop.f32.mrb[0].mxu0
      %v1706 = vadd.f32 %v1545, %v1705
      %v1707 = vpop.f32.mrb[0].mxu0
      %v1708 = vpop.f32.mrb[0].mxu0
      %v1709 = vadd.f32 %v1548, %v1708
      %v1710 = vpop.f32.mrb[0].mxu0
      %1711 = vmatprep.mubr.bf16.mxu0 0
      %1712 = vmatmul.mubr.bf16.gmra.mrb[0].mxu0 %v676
      %v1713 = vpop.f32.mrb[0].mxu0
      %v1714 = vadd.f32 %v1553, %v1713
      %v1715 = vpop.f32.mrb[0].mxu0
      %v1716 = vpop.f32.mrb[0].mxu0
      %v1717 = vadd.f32 %v1556, %v1716
      %v1718 = vpop.f32.mrb[0].mxu0
      %1719 = vmatprep.mubr.bf16.mxu0 0
      %1720 = vmatmul.mubr.bf16.gmra.mrb[0].mxu0 %v679
      %v1721 = vpop.f32.mrb[0].mxu0
      %v1722 = vadd.f32 %v1561, %v1721
      %v1723 = vpop.f32.mrb[0].mxu0
      %v1724 = vpop.f32.mrb[0].mxu0
      %v1725 = vadd.f32 %v1564, %v1724
      %v1726 = vpop.f32.mrb[0].mxu0
      %1727 = vmatprep.mubr.bf16.mxu0 0
      %1728 = vmatmul.mubr.bf16.gmra.mrb[0].mxu0 %v682
      %v1729 = vpop.f32.mrb[0].mxu0
      %v1730 = vadd.f32 %v1569, %v1729
      %v1731 = vpop.f32.mrb[0].mxu0
      %v1732 = vpop.f32.mrb[0].mxu0
      %v1733 = vadd.f32 %v1572, %v1732
      %v1734 = vpop.f32.mrb[0].mxu0
      %1735 = vdwg.mxu0
      %s1736 = scalar_lea.vmem %s1, 384
      %v1737 = vld [vmem:[%s1736] sm:$0xf]
      %v1738 = vld [vmem:[%s1736 + $0x4] sm:$0xf]
      %v1739 = vld [vmem:[%s1736 + $0x8] sm:$0xf]
      %v1740 = vld [vmem:[%s1736 + $0xc] sm:$0xf]
      %v1741 = vld [vmem:[%s1736 + $0x10] sm:$0xf]
      %v1742 = vld [vmem:[%s1736 + $0x14] sm:$0xf]
      %v1743 = vld [vmem:[%s1736 + $0x18] sm:$0xf]
      %v1744 = vld [vmem:[%s1736 + $0x1c] sm:$0xf]
      %v1745 = vld [vmem:[%s1736 + $0x20] sm:$0xf]
      %v1746 = vld [vmem:[%s1736 + $0x24] sm:$0xf]
      %v1747 = vld [vmem:[%s1736 + $0x28] sm:$0xf]
      %v1748 = vld [vmem:[%s1736 + $0x2c] sm:$0xf]
      %v1749 = vld [vmem:[%s1736 + $0x30] sm:$0xf]
      %v1750 = vld [vmem:[%s1736 + $0x34] sm:$0xf]
      %v1751 = vld [vmem:[%s1736 + $0x38] sm:$0xf]
      %v1752 = vld [vmem:[%s1736 + $0x3c] sm:$0xf]
      %v1753 = vld [vmem:[%s1736 + $0x40] sm:$0xf]
      %v1754 = vld [vmem:[%s1736 + $0x44] sm:$0xf]
      %v1755 = vld [vmem:[%s1736 + $0x48] sm:$0xf]
      %v1756 = vld [vmem:[%s1736 + $0x4c] sm:$0xf]
      %v1757 = vld [vmem:[%s1736 + $0x50] sm:$0xf]
      %v1758 = vld [vmem:[%s1736 + $0x54] sm:$0xf]
      %v1759 = vld [vmem:[%s1736 + $0x58] sm:$0xf]
      %v1760 = vld [vmem:[%s1736 + $0x5c] sm:$0xf]
      %v1761 = vld [vmem:[%s1736 + $0x60] sm:$0xf]
      %v1762 = vld [vmem:[%s1736 + $0x64] sm:$0xf]
      %v1763 = vld [vmem:[%s1736 + $0x68] sm:$0xf]
      %v1764 = vld [vmem:[%s1736 + $0x6c] sm:$0xf]
      %v1765 = vld [vmem:[%s1736 + $0x70] sm:$0xf]
      %v1766 = vld [vmem:[%s1736 + $0x74] sm:$0xf]
      %v1767 = vld [vmem:[%s1736 + $0x78] sm:$0xf]
      %v1768 = vld [vmem:[%s1736 + $0x7c] sm:$0xf]
      %v1769 = vld [vmem:[%s1736 + $0x80] sm:$0xf]
      %v1770 = vld [vmem:[%s1736 + $0x84] sm:$0xf]
      %v1771 = vld [vmem:[%s1736 + $0x88] sm:$0xf]
      %v1772 = vld [vmem:[%s1736 + $0x8c] sm:$0xf]
      %v1773 = vld [vmem:[%s1736 + $0x90] sm:$0xf]
      %v1774 = vld [vmem:[%s1736 + $0x94] sm:$0xf]
      %v1775 = vld [vmem:[%s1736 + $0x98] sm:$0xf]
      %v1776 = vld [vmem:[%s1736 + $0x9c] sm:$0xf]
      %v1777 = vld [vmem:[%s1736 + $0xa0] sm:$0xf]
      %v1778 = vld [vmem:[%s1736 + $0xa4] sm:$0xf]
      %v1779 = vld [vmem:[%s1736 + $0xa8] sm:$0xf]
      %v1780 = vld [vmem:[%s1736 + $0xac] sm:$0xf]
      %v1781 = vld [vmem:[%s1736 + $0xb0] sm:$0xf]
      %v1782 = vld [vmem:[%s1736 + $0xb4] sm:$0xf]
      %v1783 = vld [vmem:[%s1736 + $0xb8] sm:$0xf]
      %v1784 = vld [vmem:[%s1736 + $0xbc] sm:$0xf]
      %v1833 = vunpack.c.l.b16 %v1737
      %v1834 = vunpack.c.l.b16 %v1738
      %v1835 = vunpack.c.l.b16 %v1739
      %v1836 = vunpack.c.l.b16 %v1740
      %v1837 = vunpack.c.l.b16 %v1741
      %v1838 = vunpack.c.l.b16 %v1742
      %v1839 = vunpack.c.l.b16 %v1743
      %v1840 = vunpack.c.l.b16 %v1744
      %v1841 = vunpack.c.l.b16 %v1745
      %v1842 = vunpack.c.l.b16 %v1746
      %v1843 = vunpack.c.l.b16 %v1747
      %v1844 = vunpack.c.l.b16 %v1748
      %v1845 = vunpack.c.l.b16 %v1749
      %v1846 = vunpack.c.l.b16 %v1750
      %v1847 = vunpack.c.l.b16 %v1751
      %v1848 = vunpack.c.l.b16 %v1752
      %v1849 = vunpack.c.l.b16 %v1753
      %v1850 = vunpack.c.l.b16 %v1754
      %v1851 = vunpack.c.l.b16 %v1755
      %v1852 = vunpack.c.l.b16 %v1756
      %v1853 = vunpack.c.l.b16 %v1757
      %v1854 = vunpack.c.l.b16 %v1758
      %v1855 = vunpack.c.l.b16 %v1759
      %v1856 = vunpack.c.l.b16 %v1760
      %v1857 = vunpack.c.l.b16 %v1761
      %v1858 = vunpack.c.l.b16 %v1762
      %v1859 = vunpack.c.l.b16 %v1763
      %v1860 = vunpack.c.l.b16 %v1764
      %v1861 = vunpack.c.l.b16 %v1765
      %v1862 = vunpack.c.l.b16 %v1766
      %v1863 = vunpack.c.l.b16 %v1767
      %v1864 = vunpack.c.l.b16 %v1768
      %v1865 = vunpack.c.l.b16 %v1769
      %v1866 = vunpack.c.l.b16 %v1770
      %v1867 = vunpack.c.l.b16 %v1771
      %v1868 = vunpack.c.l.b16 %v1772
      %v1869 = vunpack.c.l.b16 %v1773
      %v1870 = vunpack.c.l.b16 %v1774
      %v1871 = vunpack.c.l.b16 %v1775
      %v1872 = vunpack.c.l.b16 %v1776
      %v1873 = vunpack.c.l.b16 %v1777
      %v1874 = vunpack.c.l.b16 %v1778
      %v1875 = vunpack.c.l.b16 %v1779
      %v1876 = vunpack.c.l.b16 %v1780
      %v1877 = vunpack.c.l.b16 %v1781
      %v1878 = vunpack.c.l.b16 %v1782
      %v1879 = vunpack.c.l.b16 %v1783
      %v1880 = vunpack.c.l.b16 %v1784
      %v1881 = vpack.c.b16 %v1834, %v1833
      %v1882 = vpack.c.b16 %v1836, %v1835
      %v1883 = vpack.c.b16 %v1838, %v1837
      %v1884 = vpack.c.b16 %v1840, %v1839
      %v1885 = vpack.c.b16 %v1842, %v1841
      %v1886 = vpack.c.b16 %v1844, %v1843
      %v1887 = vpack.c.b16 %v1846, %v1845
      %v1888 = vpack.c.b16 %v1848, %v1847
      %v1889 = vpack.c.b16 %v1850, %v1849
      %v1890 = vpack.c.b16 %v1852, %v1851
      %v1891 = vpack.c.b16 %v1854, %v1853
      %v1892 = vpack.c.b16 %v1856, %v1855
      %v1893 = vpack.c.b16 %v1858, %v1857
      %v1894 = vpack.c.b16 %v1860, %v1859
      %v1895 = vpack.c.b16 %v1862, %v1861
      %v1896 = vpack.c.b16 %v1864, %v1863
      %v1897 = vpack.c.b16 %v1866, %v1865
      %v1898 = vpack.c.b16 %v1868, %v1867
      %v1899 = vpack.c.b16 %v1870, %v1869
      %v1900 = vpack.c.b16 %v1872, %v1871
      %v1901 = vpack.c.b16 %v1874, %v1873
      %v1902 = vpack.c.b16 %v1876, %v1875
      %v1903 = vpack.c.b16 %v1878, %v1877
      %v1904 = vpack.c.b16 %v1880, %v1879
      %1929 = vmatprep.subr.bf16.mxu0 0
      %1930 = vmatpush1.bf16.msra.mxu0 %v1881
      %1931 = vmatprep.subr.bf16.mxu0 0
      %1932 = vmatpush1.bf16.msra.mxu0 %v1882
      %1933 = vmatprep.subr.bf16.mxu0 0
      %1934 = vmatpush1.bf16.msra.mxu0 %v1883
      %1935 = vmatprep.subr.bf16.mxu0 0
      %1936 = vmatpush1.bf16.msra.mxu0 %v1884
      %1937 = vmatprep.subr.bf16.mxu0 0
      %1938 = vmatpush1.bf16.msra.mxu0 %v1885
      %1939 = vmatprep.subr.bf16.mxu0 0
      %1940 = vmatpush1.bf16.msra.mxu0 %v1886
      %1941 = vmatprep.subr.bf16.mxu0 0
      %1942 = vmatpush1.bf16.msra.mxu0 %v1887
      %1943 = vmatprep.subr.bf16.mxu0 0
      %1944 = vmatpush1.bf16.msra.mxu0 %v1888
      %1945 = vmatprep.subr.bf16.mxu0 0
      %1946 = vmatpush1.bf16.msra.mxu0 %v1889
      %1947 = vmatprep.subr.bf16.mxu0 0
      %1948 = vmatpush1.bf16.msra.mxu0 %v1890
      %1949 = vmatprep.subr.bf16.mxu0 0
      %1950 = vmatpush1.bf16.msra.mxu0 %v1891
      %1951 = vmatprep.subr.bf16.mxu0 0
      %1952 = vmatpush1.bf16.msra.mxu0 %v1892
      %1953 = vmatprep.subr.bf16.mxu0 0
      %1954 = vmatpush1.bf16.msra.mxu0 %v1893
      %1955 = vmatprep.subr.bf16.mxu0 0
      %1956 = vmatpush1.bf16.msra.mxu0 %v1894
      %1957 = vmatprep.subr.bf16.mxu0 0
      %1958 = vmatpush1.bf16.msra.mxu0 %v1895
      %1959 = vmatprep.subr.bf16.mxu0 0
      %1960 = vmatpush1.bf16.msra.mxu0 %v1896
      %1961 = vmatprep.mubr.bf16.mxu0 %v435
      %1962 = vmatmul.mubr.bf16.gmra.mrb[0].mxu0 %v311
      %v1963 = vpop.f32.mrb[0].mxu0
      %v1964 = vadd.f32 0.0, %v1963
      %v1965 = vpop.f32.mrb[0].mxu0
      %v1966 = vpop.f32.mrb[0].mxu0
      %v1967 = vadd.f32 0.0, %v1966
      %v1968 = vpop.f32.mrb[0].mxu0
      %1969 = vmatprep.mubr.bf16.mxu0 %v447
      %1970 = vmatmul.mubr.bf16.gmra.mrb[0].mxu0 %v312
      %v1971 = vpop.f32.mrb[0].mxu0
      %v1972 = vadd.f32 0.0, %v1971
      %v1973 = vpop.f32.mrb[0].mxu0
      %v1974 = vpop.f32.mrb[0].mxu0
      %v1975 = vadd.f32 0.0, %v1974
      %v1976 = vpop.f32.mrb[0].mxu0
      %1977 = vmatprep.mubr.bf16.mxu0 %v459
      %1978 = vmatmul.mubr.bf16.gmra.mrb[0].mxu0 %v313
      %v1979 = vpop.f32.mrb[0].mxu0
      %v1980 = vadd.f32 0.0, %v1979
      %v1981 = vpop.f32.mrb[0].mxu0
      %v1982 = vpop.f32.mrb[0].mxu0
      %v1983 = vadd.f32 0.0, %v1982
      %v1984 = vpop.f32.mrb[0].mxu0
      %1985 = vmatprep.mubr.bf16.mxu0 %v471
      %1986 = vmatmul.mubr.bf16.gmra.mrb[0].mxu0 %v314
      %v1987 = vpop.f32.mrb[0].mxu0
      %v1988 = vadd.f32 0.0, %v1987
      %v1989 = vpop.f32.mrb[0].mxu0
      %v1990 = vpop.f32.mrb[0].mxu0
      %v1991 = vadd.f32 0.0, %v1990
      %v1992 = vpop.f32.mrb[0].mxu0
      %1993 = vmatprep.mubr.bf16.mxu0 %v483
      %1994 = vmatmul.mubr.bf16.gmra.mrb[0].mxu0 %v315
      %v1995 = vpop.f32.mrb[0].mxu0
      %v1996 = vadd.f32 0.0, %v1995
      %v1997 = vpop.f32.mrb[0].mxu0
      %v1998 = vpop.f32.mrb[0].mxu0
      %v1999 = vadd.f32 0.0, %v1998
      %v2000 = vpop.f32.mrb[0].mxu0
      %2001 = vmatprep.mubr.bf16.mxu0 %v495
      %2002 = vmatmul.mubr.bf16.gmra.mrb[0].mxu0 %v316
      %v2003 = vpop.f32.mrb[0].mxu0
      %v2004 = vadd.f32 0.0, %v2003
      %v2005 = vpop.f32.mrb[0].mxu0
      %v2006 = vpop.f32.mrb[0].mxu0
      %v2007 = vadd.f32 0.0, %v2006
      %v2008 = vpop.f32.mrb[0].mxu0
      %2009 = vmatprep.mubr.bf16.mxu0 %v507
      %2010 = vmatmul.mubr.bf16.gmra.mrb[0].mxu0 %v317
      %v2011 = vpop.f32.mrb[0].mxu0
      %v2012 = vadd.f32 0.0, %v2011
      %v2013 = vpop.f32.mrb[0].mxu0
      %v2014 = vpop.f32.mrb[0].mxu0
      %v2015 = vadd.f32 0.0, %v2014
      %v2016 = vpop.f32.mrb[0].mxu0
      %2017 = vmatprep.mubr.bf16.mxu0 %v519
      %2018 = vmatmul.mubr.bf16.gmra.mrb[0].mxu0 %v318
      %v2019 = vpop.f32.mrb[0].mxu0
      %v2020 = vadd.f32 0.0, %v2019
      %v2021 = vpop.f32.mrb[0].mxu0
      %v2022 = vpop.f32.mrb[0].mxu0
      %v2023 = vadd.f32 0.0, %v2022
      %v2024 = vpop.f32.mrb[0].mxu0
      %2025 = vmatprep.mubr.bf16.mxu0 %v531
      %2026 = vmatmul.mubr.bf16.gmra.mrb[0].mxu0 %v319
      %v2027 = vpop.f32.mrb[0].mxu0
      %v2028 = vadd.f32 0.0, %v2027
      %v2029 = vpop.f32.mrb[0].mxu0
      %v2030 = vpop.f32.mrb[0].mxu0
      %v2031 = vadd.f32 0.0, %v2030
      %v2032 = vpop.f32.mrb[0].mxu0
      %2033 = vmatprep.mubr.bf16.mxu0 %v543
      %2034 = vmatmul.mubr.bf16.gmra.mrb[0].mxu0 %v320
      %v2035 = vpop.f32.mrb[0].mxu0
      %v2036 = vadd.f32 0.0, %v2035
      %v2037 = vpop.f32.mrb[0].mxu0
      %v2038 = vpop.f32.mrb[0].mxu0
      %v2039 = vadd.f32 0.0, %v2038
      %v2040 = vpop.f32.mrb[0].mxu0
      %2041 = vmatprep.mubr.bf16.mxu0 %v555
      %2042 = vmatmul.mubr.bf16.gmra.mrb[0].mxu0 %v321
      %v2043 = vpop.f32.mrb[0].mxu0
      %v2044 = vadd.f32 0.0, %v2043
      %v2045 = vpop.f32.mrb[0].mxu0
      %v2046 = vpop.f32.mrb[0].mxu0
      %v2047 = vadd.f32 0.0, %v2046
      %v2048 = vpop.f32.mrb[0].mxu0
      %2049 = vmatprep.mubr.bf16.mxu0 %v567
      %2050 = vmatmul.mubr.bf16.gmra.mrb[0].mxu0 %v322
      %v2051 = vpop.f32.mrb[0].mxu0
      %v2052 = vadd.f32 0.0, %v2051
      %v2053 = vpop.f32.mrb[0].mxu0
      %v2054 = vpop.f32.mrb[0].mxu0
      %v2055 = vadd.f32 0.0, %v2054
      %v2056 = vpop.f32.mrb[0].mxu0
      %2057 = vmatprep.mubr.bf16.mxu0 %v579
      %2058 = vmatmul.mubr.bf16.gmra.mrb[0].mxu0 %v323
      %v2059 = vpop.f32.mrb[0].mxu0
      %v2060 = vadd.f32 0.0, %v2059
      %v2061 = vpop.f32.mrb[0].mxu0
      %v2062 = vpop.f32.mrb[0].mxu0
      %v2063 = vadd.f32 0.0, %v2062
      %v2064 = vpop.f32.mrb[0].mxu0
      %2065 = vmatprep.mubr.bf16.mxu0 %v591
      %2066 = vmatmul.mubr.bf16.gmra.mrb[0].mxu0 %v324
      %v2067 = vpop.f32.mrb[0].mxu0
      %v2068 = vadd.f32 0.0, %v2067
      %v2069 = vpop.f32.mrb[0].mxu0
      %v2070 = vpop.f32.mrb[0].mxu0
      %v2071 = vadd.f32 0.0, %v2070
      %v2072 = vpop.f32.mrb[0].mxu0
      %2073 = vmatprep.mubr.bf16.mxu0 %v603
      %2074 = vmatmul.mubr.bf16.gmra.mrb[0].mxu0 %v325
      %v2075 = vpop.f32.mrb[0].mxu0
      %v2076 = vadd.f32 0.0, %v2075
      %v2077 = vpop.f32.mrb[0].mxu0
      %v2078 = vpop.f32.mrb[0].mxu0
      %v2079 = vadd.f32 0.0, %v2078
      %v2080 = vpop.f32.mrb[0].mxu0
      %2081 = vmatprep.mubr.bf16.mxu0 %v615
      %2082 = vmatmul.mubr.bf16.gmra.mrb[0].mxu0 %v326
      %v2083 = vpop.f32.mrb[0].mxu0
      %v2084 = vadd.f32 0.0, %v2083
      %v2085 = vpop.f32.mrb[0].mxu0
      %v2086 = vpop.f32.mrb[0].mxu0
      %v2087 = vadd.f32 0.0, %v2086
      %v2088 = vpop.f32.mrb[0].mxu0
      %2089 = vdwg.mxu0
      %2090 = vmatprep.subr.bf16.mxu0 0
      %2091 = vmatpush1.bf16.msra.mxu0 %v1897
      %2092 = vmatprep.subr.bf16.mxu0 0
      %2093 = vmatpush1.bf16.msra.mxu0 %v1898
      %2094 = vmatprep.subr.bf16.mxu0 0
      %2095 = vmatpush1.bf16.msra.mxu0 %v1899
      %2096 = vmatprep.subr.bf16.mxu0 0
      %2097 = vmatpush1.bf16.msra.mxu0 %v1900
      %2098 = vmatprep.subr.bf16.mxu0 0
      %2099 = vmatpush1.bf16.msra.mxu0 %v1901
      %2100 = vmatprep.subr.bf16.mxu0 0
      %2101 = vmatpush1.bf16.msra.mxu0 %v1902
      %2102 = vmatprep.subr.bf16.mxu0 0
      %2103 = vmatpush1.bf16.msra.mxu0 %v1903
      %2104 = vmatprep.subr.bf16.mxu0 0
      %2105 = vmatpush1.bf16.msra.mxu0 %v1904
      %2106 = vmatprep.subr.bf16.mxu0 0
      %2107 = vmatpush1.bf16.msra.mxu0 0
      %2108 = vmatprep.subr.bf16.mxu0 0
      %2109 = vmatpush1.bf16.msra.mxu0 0
      %2110 = vmatprep.subr.bf16.mxu0 0
      %2111 = vmatpush1.bf16.msra.mxu0 0
      %2112 = vmatprep.subr.bf16.mxu0 0
      %2113 = vmatpush1.bf16.msra.mxu0 0
      %2114 = vmatprep.subr.bf16.mxu0 0
      %2115 = vmatpush1.bf16.msra.mxu0 0
      %2116 = vmatprep.subr.bf16.mxu0 0
      %2117 = vmatpush1.bf16.msra.mxu0 0
      %2118 = vmatprep.subr.bf16.mxu0 0
      %2119 = vmatpush1.bf16.msra.mxu0 0
      %2120 = vmatprep.subr.bf16.mxu0 0
      %2121 = vmatpush1.bf16.msra.mxu0 0
      %2122 = vmatprep.mubr.bf16.mxu0 0
      %2123 = vmatmul.mubr.bf16.gmra.mrb[0].mxu0 %v643
      %v2124 = vpop.f32.mrb[0].mxu0
      %v2125 = vadd.f32 %v1964, %v2124
      %v2126 = vpop.f32.mrb[0].mxu0
      %v2127 = vpop.f32.mrb[0].mxu0
      %v2128 = vadd.f32 %v1967, %v2127
      %v2129 = vpop.f32.mrb[0].mxu0
      %2130 = vmatprep.mubr.bf16.mxu0 0
      %2131 = vmatmul.mubr.bf16.gmra.mrb[0].mxu0 %v646
      %v2132 = vpop.f32.mrb[0].mxu0
      %v2133 = vadd.f32 %v1972, %v2132
      %v2134 = vpop.f32.mrb[0].mxu0
      %v2135 = vpop.f32.mrb[0].mxu0
      %v2136 = vadd.f32 %v1975, %v2135
      %v2137 = vpop.f32.mrb[0].mxu0
      %2138 = vmatprep.mubr.bf16.mxu0 0
      %2139 = vmatmul.mubr.bf16.gmra.mrb[0].mxu0 %v649
      %v2140 = vpop.f32.mrb[0].mxu0
      %v2141 = vadd.f32 %v1980, %v2140
      %v2142 = vpop.f32.mrb[0].mxu0
      %v2143 = vpop.f32.mrb[0].mxu0
      %v2144 = vadd.f32 %v1983, %v2143
      %v2145 = vpop.f32.mrb[0].mxu0
      %2146 = vmatprep.mubr.bf16.mxu0 0
      %2147 = vmatmul.mubr.bf16.gmra.mrb[0].mxu0 %v652
      %v2148 = vpop.f32.mrb[0].mxu0
      %v2149 = vadd.f32 %v1988, %v2148
      %v2150 = vpop.f32.mrb[0].mxu0
      %v2151 = vpop.f32.mrb[0].mxu0
      %v2152 = vadd.f32 %v1991, %v2151
      %v2153 = vpop.f32.mrb[0].mxu0
      %2154 = vmatprep.mubr.bf16.mxu0 0
      %2155 = vmatmul.mubr.bf16.gmra.mrb[0].mxu0 %v655
      %v2156 = vpop.f32.mrb[0].mxu0
      %v2157 = vadd.f32 %v1996, %v2156
      %v2158 = vpop.f32.mrb[0].mxu0
      %v2159 = vpop.f32.mrb[0].mxu0
      %v2160 = vadd.f32 %v1999, %v2159
      %v2161 = vpop.f32.mrb[0].mxu0
      %2162 = vmatprep.mubr.bf16.mxu0 0
      %2163 = vmatmul.mubr.bf16.gmra.mrb[0].mxu0 %v658
      %v2164 = vpop.f32.mrb[0].mxu0
      %v2165 = vadd.f32 %v2004, %v2164
      %v2166 = vpop.f32.mrb[0].mxu0
      %v2167 = vpop.f32.mrb[0].mxu0
      %v2168 = vadd.f32 %v2007, %v2167
      %v2169 = vpop.f32.mrb[0].mxu0
      %2170 = vmatprep.mubr.bf16.mxu0 0
      %2171 = vmatmul.mubr.bf16.gmra.mrb[0].mxu0 %v661
      %v2172 = vpop.f32.mrb[0].mxu0
      %v2173 = vadd.f32 %v2012, %v2172
      %v2174 = vpop.f32.mrb[0].mxu0
      %v2175 = vpop.f32.mrb[0].mxu0
      %v2176 = vadd.f32 %v2015, %v2175
      %v2177 = vpop.f32.mrb[0].mxu0
      %2178 = vmatprep.mubr.bf16.mxu0 0
      %2179 = vmatmul.mubr.bf16.gmra.mrb[0].mxu0 %v664
      %v2180 = vpop.f32.mrb[0].mxu0
      %v2181 = vadd.f32 %v2020, %v2180
      %v2182 = vpop.f32.mrb[0].mxu0
      %v2183 = vpop.f32.mrb[0].mxu0
      %v2184 = vadd.f32 %v2023, %v2183
      %v2185 = vpop.f32.mrb[0].mxu0
      %2186 = vmatprep.mubr.bf16.mxu0 0
      %2187 = vmatmul.mubr.bf16.gmra.mrb[0].mxu0 %v667
      %v2188 = vpop.f32.mrb[0].mxu0
      %v2189 = vadd.f32 %v2028, %v2188
      %v2190 = vpop.f32.mrb[0].mxu0
      %v2191 = vpop.f32.mrb[0].mxu0
      %v2192 = vadd.f32 %v2031, %v2191
      %v2193 = vpop.f32.mrb[0].mxu0
      %2194 = vmatprep.mubr.bf16.mxu0 0
      %2195 = vmatmul.mubr.bf16.gmra.mrb[0].mxu0 %v670
      %v2196 = vpop.f32.mrb[0].mxu0
      %v2197 = vadd.f32 %v2036, %v2196
      %v2198 = vpop.f32.mrb[0].mxu0
      %v2199 = vpop.f32.mrb[0].mxu0
      %v2200 = vadd.f32 %v2039, %v2199
      %v2201 = vpop.f32.mrb[0].mxu0
      %2202 = vmatprep.mubr.bf16.mxu0 0
      %2203 = vmatmul.mubr.bf16.gmra.mrb[0].mxu0 %v673
      %v2204 = vpop.f32.mrb[0].mxu0
      %v2205 = vadd.f32 %v2044, %v2204
      %v2206 = vpop.f32.mrb[0].mxu0
      %v2207 = vpop.f32.mrb[0].mxu0
      %v2208 = vadd.f32 %v2047, %v2207
      %v2209 = vpop.f32.mrb[0].mxu0
      %2210 = vmatprep.mubr.bf16.mxu0 0
      %2211 = vmatmul.mubr.bf16.gmra.mrb[0].mxu0 %v676
      %v2212 = vpop.f32.mrb[0].mxu0
      %v2213 = vadd.f32 %v2052, %v2212
      %v2214 = vpop.f32.mrb[0].mxu0
      %v2215 = vpop.f32.mrb[0].mxu0
      %v2216 = vadd.f32 %v2055, %v2215
      %v2217 = vpop.f32.mrb[0].mxu0
      %2218 = vmatprep.mubr.bf16.mxu0 0
      %2219 = vmatmul.mubr.bf16.gmra.mrb[0].mxu0 %v679
      %v2220 = vpop.f32.mrb[0].mxu0
      %v2221 = vadd.f32 %v2060, %v2220
      %v2222 = vpop.f32.mrb[0].mxu0
      %v2223 = vpop.f32.mrb[0].mxu0
      %v2224 = vadd.f32 %v2063, %v2223
      %v2225 = vpop.f32.mrb[0].mxu0
      %2226 = vmatprep.mubr.bf16.mxu0 0
      %2227 = vmatmul.mubr.bf16.gmra.mrb[0].mxu0 %v682
      %v2228 = vpop.f32.mrb[0].mxu0
      %v2229 = vadd.f32 %v2068, %v2228
      %v2230 = vpop.f32.mrb[0].mxu0
      %v2231 = vpop.f32.mrb[0].mxu0
      %v2232 = vadd.f32 %v2071, %v2231
      %v2233 = vpop.f32.mrb[0].mxu0
      %2234 = vmatprep.mubr.bf16.mxu0 0
      %2235 = vmatmul.mubr.bf16.gmra.mrb[0].mxu0 %v685
      %v2236 = vpop.f32.mrb[0].mxu0
      %v2237 = vadd.f32 %v2076, %v2236
      %v2238 = vpop.f32.mrb[0].mxu0
      %v2239 = vpop.f32.mrb[0].mxu0
      %v2240 = vadd.f32 %v2079, %v2239
      %v2241 = vpop.f32.mrb[0].mxu0
      %2242 = vmatprep.mubr.bf16.mxu0 0
      %2243 = vmatmul.mubr.bf16.gmra.mrb[0].mxu0 %v688
      %v2244 = vpop.f32.mrb[0].mxu0
      %v2245 = vadd.f32 %v2084, %v2244
      %v2246 = vpop.f32.mrb[0].mxu0
      %v2247 = vpop.f32.mrb[0].mxu0
      %v2248 = vadd.f32 %v2087, %v2247
      %v2249 = vpop.f32.mrb[0].mxu0
      %2250 = vdwg.mxu0
      %v2251 = vadd.f32 %v1610, %v2125
      %v2252 = vadd.f32 %v1613, %v2128
      %v2253 = vadd.f32 %v1618, %v2133
      %v2254 = vadd.f32 %v1621, %v2136
      %v2255 = vadd.f32 %v1626, %v2141
      %v2256 = vadd.f32 %v1629, %v2144
      %v2257 = vadd.f32 %v1634, %v2149
      %v2258 = vadd.f32 %v1637, %v2152
      %v2259 = vadd.f32 %v1642, %v2157
      %v2260 = vadd.f32 %v1645, %v2160
      %v2261 = vadd.f32 %v1650, %v2165
      %v2262 = vadd.f32 %v1653, %v2168
      %v2263 = vadd.f32 %v1658, %v2173
      %v2264 = vadd.f32 %v1661, %v2176
      %v2265 = vadd.f32 %v1666, %v2181
      %v2266 = vadd.f32 %v1669, %v2184
      %v2267 = vadd.f32 %v1674, %v2189
      %v2268 = vadd.f32 %v1677, %v2192
      %v2269 = vadd.f32 %v1682, %v2197
      %v2270 = vadd.f32 %v1685, %v2200
      %v2271 = vadd.f32 %v1690, %v2205
      %v2272 = vadd.f32 %v1693, %v2208
      %v2273 = vadd.f32 %v1698, %v2213
      %v2274 = vadd.f32 %v1701, %v2216
      %v2275 = vadd.f32 %v1706, %v2221
      %v2276 = vadd.f32 %v1709, %v2224
      %v2277 = vadd.f32 %v1714, %v2229
      %v2278 = vadd.f32 %v1717, %v2232
      %v2279 = vadd.f32 %v1722, %v2237
      %v2280 = vadd.f32 %v1725, %v2240
      %v2281 = vadd.f32 %v1730, %v2245
      %v2282 = vadd.f32 %v1733, %v2248
      %v2283 = vpack.c.bf16 %v2252, %v2251
      %v2284 = vpack.c.bf16 %v2254, %v2253
      %v2285 = vpack.c.bf16 %v2256, %v2255
      %v2286 = vpack.c.bf16 %v2258, %v2257
      %v2287 = vpack.c.bf16 %v2260, %v2259
      %v2288 = vpack.c.bf16 %v2262, %v2261
      %v2289 = vpack.c.bf16 %v2264, %v2263
      %v2290 = vpack.c.bf16 %v2266, %v2265
      %v2291 = vpack.c.bf16 %v2268, %v2267
      %v2292 = vpack.c.bf16 %v2270, %v2269
      %v2293 = vpack.c.bf16 %v2272, %v2271
      %v2294 = vpack.c.bf16 %v2274, %v2273
      %v2295 = vpack.c.bf16 %v2276, %v2275
      %v2296 = vpack.c.bf16 %v2278, %v2277
      %v2297 = vpack.c.bf16 %v2280, %v2279
      %v2298 = vpack.c.bf16 %v2282, %v2281
      %v2315 = vunpack.c.l.b16 %v2283
      %v2316 = vunpack.c.h.b16 %v2283
      %v2317 = vunpack.c.l.b16 %v2284
      %v2318 = vunpack.c.h.b16 %v2284
      %v2319 = vunpack.c.l.b16 %v2285
      %v2320 = vunpack.c.h.b16 %v2285
      %v2321 = vunpack.c.l.b16 %v2286
      %v2322 = vunpack.c.h.b16 %v2286
      %v2323 = vunpack.c.l.b16 %v2287
      %v2324 = vunpack.c.h.b16 %v2287
      %v2325 = vunpack.c.l.b16 %v2288
      %v2326 = vunpack.c.h.b16 %v2288
      %v2327 = vunpack.c.l.b16 %v2289
      %v2328 = vunpack.c.h.b16 %v2289
      %v2329 = vunpack.c.l.b16 %v2290
      %v2330 = vunpack.c.h.b16 %v2290
      %v2331 = vunpack.c.l.b16 %v2291
      %v2332 = vunpack.c.h.b16 %v2291
      %v2333 = vunpack.c.l.b16 %v2292
      %v2334 = vunpack.c.h.b16 %v2292
      %v2335 = vunpack.c.l.b16 %v2293
      %v2336 = vunpack.c.h.b16 %v2293
      %v2337 = vunpack.c.l.b16 %v2294
      %v2338 = vunpack.c.h.b16 %v2294
      %v2339 = vunpack.c.l.b16 %v2295
      %v2340 = vunpack.c.h.b16 %v2295
      %v2341 = vunpack.c.l.b16 %v2296
      %v2342 = vunpack.c.h.b16 %v2296
      %v2343 = vunpack.c.l.b16 %v2297
      %v2344 = vunpack.c.h.b16 %v2297
      %v2345 = vunpack.c.l.b16 %v2298
      %v2346 = vunpack.c.h.b16 %v2298
      %v2347 = vpack.c.b16 %v2315, %v2315
      %v2348 = vpack.c.b16 %v2316, %v2316
      %v2349 = vpack.c.b16 %v2317, %v2317
      %v2350 = vpack.c.b16 %v2318, %v2318
      %v2351 = vpack.c.b16 %v2319, %v2319
      %v2352 = vpack.c.b16 %v2320, %v2320
      %v2353 = vpack.c.b16 %v2321, %v2321
      %v2354 = vpack.c.b16 %v2322, %v2322
      %v2355 = vpack.c.b16 %v2323, %v2323
      %v2356 = vpack.c.b16 %v2324, %v2324
      %v2357 = vpack.c.b16 %v2325, %v2325
      %v2358 = vpack.c.b16 %v2326, %v2326
      %v2359 = vpack.c.b16 %v2327, %v2327
      %v2360 = vpack.c.b16 %v2328, %v2328
      %v2361 = vpack.c.b16 %v2329, %v2329
      %v2362 = vpack.c.b16 %v2330, %v2330
      %v2363 = vpack.c.b16 %v2331, %v2331
      %v2364 = vpack.c.b16 %v2332, %v2332
      %v2365 = vpack.c.b16 %v2333, %v2333
      %v2366 = vpack.c.b16 %v2334, %v2334
      %v2367 = vpack.c.b16 %v2335, %v2335
      %v2368 = vpack.c.b16 %v2336, %v2336
      %v2369 = vpack.c.b16 %v2337, %v2337
      %v2370 = vpack.c.b16 %v2338, %v2338
      %v2371 = vpack.c.b16 %v2339, %v2339
      %v2372 = vpack.c.b16 %v2340, %v2340
      %v2373 = vpack.c.b16 %v2341, %v2341
      %v2374 = vpack.c.b16 %v2342, %v2342
      %v2375 = vpack.c.b16 %v2343, %v2343
      %v2376 = vpack.c.b16 %v2344, %v2344
      %v2377 = vpack.c.b16 %v2345, %v2345
      %v2378 = vpack.c.b16 %v2346, %v2346
      %2411 = vst [vmem:[%s177] sm:$0xf] %v2347
      %2412 = vst [vmem:[%s177 + $0x4] sm:$0xf] %v2348
      %2413 = vst [vmem:[%s177 + $0x8] sm:$0xf] %v2349
      %2414 = vst [vmem:[%s177 + $0xc] sm:$0xf] %v2350
      %2415 = vst [vmem:[%s177 + $0x10] sm:$0xf] %v2351
      %2416 = vst [vmem:[%s177 + $0x14] sm:$0xf] %v2352
      %2417 = vst [vmem:[%s177 + $0x18] sm:$0xf] %v2353
      %2418 = vst [vmem:[%s177 + $0x1c] sm:$0xf] %v2354
      %2419 = vst [vmem:[%s177 + $0x20] sm:$0xf] %v2355
      %2420 = vst [vmem:[%s177 + $0x24] sm:$0xf] %v2356
      %2421 = vst [vmem:[%s177 + $0x28] sm:$0xf] %v2357
      %2422 = vst [vmem:[%s177 + $0x2c] sm:$0xf] %v2358
      %2423 = vst [vmem:[%s177 + $0x30] sm:$0xf] %v2359
      %2424 = vst [vmem:[%s177 + $0x34] sm:$0xf] %v2360
      %2425 = vst [vmem:[%s177 + $0x38] sm:$0xf] %v2361
      %2426 = vst [vmem:[%s177 + $0x3c] sm:$0xf] %v2362
      %2427 = vst [vmem:[%s177 + $0x40] sm:$0xf] %v2363
      %2428 = vst [vmem:[%s177 + $0x44] sm:$0xf] %v2364
      %2429 = vst [vmem:[%s177 + $0x48] sm:$0xf] %v2365
      %2430 = vst [vmem:[%s177 + $0x4c] sm:$0xf] %v2366
      %2431 = vst [vmem:[%s177 + $0x50] sm:$0xf] %v2367
      %2432 = vst [vmem:[%s177 + $0x54] sm:$0xf] %v2368
      %2433 = vst [vmem:[%s177 + $0x58] sm:$0xf] %v2369
      %2434 = vst [vmem:[%s177 + $0x5c] sm:$0xf] %v2370
      %2435 = vst [vmem:[%s177 + $0x60] sm:$0xf] %v2371
      %2436 = vst [vmem:[%s177 + $0x64] sm:$0xf] %v2372
      %2437 = vst [vmem:[%s177 + $0x68] sm:$0xf] %v2373
      %2438 = vst [vmem:[%s177 + $0x6c] sm:$0xf] %v2374
      %2439 = vst [vmem:[%s177 + $0x70] sm:$0xf] %v2375
      %2440 = vst [vmem:[%s177 + $0x74] sm:$0xf] %v2376
      %2441 = vst [vmem:[%s177 + $0x78] sm:$0xf] %v2377
      %2442 = vst [vmem:[%s177 + $0x7c] sm:$0xf] %v2378
      %v2443 = vadd.f32 %v2251, %v2252
      %v2444 = vadd.f32 %v2443, %v2253
      %v2445 = vadd.f32 %v2444, %v2254
      %v2446 = vadd.f32 %v2445, %v2255
      %v2447 = vadd.f32 %v2446, %v2256
      %v2448 = vadd.f32 %v2447, %v2257
      %v2449 = vadd.f32 %v2448, %v2258
      %v2450 = vadd.f32 %v2449, %v2259
      %v2451 = vadd.f32 %v2450, %v2260
      %v2452 = vadd.f32 %v2451, %v2261
      %v2453 = vadd.f32 %v2452, %v2262
      %v2454 = vadd.f32 %v2453, %v2263
      %v2455 = vadd.f32 %v2454, %v2264
      %v2456 = vadd.f32 %v2455, %v2265
      %v2457 = vadd.f32 %v2456, %v2266
      %v2458 = vadd.f32 %v2457, %v2267
      %v2459 = vadd.f32 %v2458, %v2268
      %v2460 = vadd.f32 %v2459, %v2269
      %v2461 = vadd.f32 %v2460, %v2270
      %v2462 = vadd.f32 %v2461, %v2271
      %v2463 = vadd.f32 %v2462, %v2272
      %v2464 = vadd.f32 %v2463, %v2273
      %v2465 = vadd.f32 %v2464, %v2274
      %v2466 = vadd.f32 %v2465, %v2275
      %v2467 = vadd.f32 %v2466, %v2276
      %v2468 = vadd.f32 %v2467, %v2277
      %v2469 = vadd.f32 %v2468, %v2278
      %v2470 = vadd.f32 %v2469, %v2279
      %v2471 = vadd.f32 %v2470, %v2280
      %v2472 = vadd.f32 %v2471, %v2281
      %v2473 = vadd.f32 %v2472, %v2282
      %v2474 = vrot.slane %v2473, 4
      %v2475 = vadd.f32 %v2473, %v2474
      %v2476 = vrot.slane %v2475, 2
      %v2477 = vadd.f32 %v2475, %v2476
      %v2478 = vrot.slane %v2477, 1
      %v2479 = vadd.f32 %v2477, %v2478
      %v2480 = vmul.f32 %v2251, %v2251
      %v2481 = vmul.f32 %v2252, %v2252
      %v2482 = vmul.f32 %v2253, %v2253
      %v2483 = vmul.f32 %v2254, %v2254
      %v2484 = vmul.f32 %v2255, %v2255
      %v2485 = vmul.f32 %v2256, %v2256
      %v2486 = vmul.f32 %v2257, %v2257
      %v2487 = vmul.f32 %v2258, %v2258
      %v2488 = vmul.f32 %v2259, %v2259
      %v2489 = vmul.f32 %v2260, %v2260
      %v2490 = vmul.f32 %v2261, %v2261
      %v2491 = vmul.f32 %v2262, %v2262
      %v2492 = vmul.f32 %v2263, %v2263
      %v2493 = vmul.f32 %v2264, %v2264
      %v2494 = vmul.f32 %v2265, %v2265
      %v2495 = vmul.f32 %v2266, %v2266
      %v2496 = vmul.f32 %v2267, %v2267
      %v2497 = vmul.f32 %v2268, %v2268
      %v2498 = vmul.f32 %v2269, %v2269
      %v2499 = vmul.f32 %v2270, %v2270
      %v2500 = vmul.f32 %v2271, %v2271
      %v2501 = vmul.f32 %v2272, %v2272
      %v2502 = vmul.f32 %v2273, %v2273
      %v2503 = vmul.f32 %v2274, %v2274
      %v2504 = vmul.f32 %v2275, %v2275
      %v2505 = vmul.f32 %v2276, %v2276
      %v2506 = vmul.f32 %v2277, %v2277
      %v2507 = vmul.f32 %v2278, %v2278
      %v2508 = vmul.f32 %v2279, %v2279
      %v2509 = vmul.f32 %v2280, %v2280
      %v2510 = vmul.f32 %v2281, %v2281
      %v2511 = vmul.f32 %v2282, %v2282
      %v2512 = vadd.f32 %v2480, %v2481
      %v2513 = vadd.f32 %v2512, %v2482
      %v2514 = vadd.f32 %v2513, %v2483
      %v2515 = vadd.f32 %v2514, %v2484
      %v2516 = vadd.f32 %v2515, %v2485
      %v2517 = vadd.f32 %v2516, %v2486
      %v2518 = vadd.f32 %v2517, %v2487
      %v2519 = vadd.f32 %v2518, %v2488
      %v2520 = vadd.f32 %v2519, %v2489
      %v2521 = vadd.f32 %v2520, %v2490
      %v2522 = vadd.f32 %v2521, %v2491
      %v2523 = vadd.f32 %v2522, %v2492
      %v2524 = vadd.f32 %v2523, %v2493
      %v2525 = vadd.f32 %v2524, %v2494
      %v2526 = vadd.f32 %v2525, %v2495
      %v2527 = vadd.f32 %v2526, %v2496
      %v2528 = vadd.f32 %v2527, %v2497
      %v2529 = vadd.f32 %v2528, %v2498
      %v2530 = vadd.f32 %v2529, %v2499
      %v2531 = vadd.f32 %v2530, %v2500
      %v2532 = vadd.f32 %v2531, %v2501
      %v2533 = vadd.f32 %v2532, %v2502
      %v2534 = vadd.f32 %v2533, %v2503
      %v2535 = vadd.f32 %v2534, %v2504
      %v2536 = vadd.f32 %v2535, %v2505
      %v2537 = vadd.f32 %v2536, %v2506
      %v2538 = vadd.f32 %v2537, %v2507
      %v2539 = vadd.f32 %v2538, %v2508
      %v2540 = vadd.f32 %v2539, %v2509
      %v2541 = vadd.f32 %v2540, %v2510
      %v2542 = vadd.f32 %v2541, %v2511
      %v2543 = vrot.slane %v2542, 4
      %v2544 = vadd.f32 %v2542, %v2543
      %v2545 = vrot.slane %v2544, 2
      %v2546 = vadd.f32 %v2544, %v2545
      %v2547 = vrot.slane %v2546, 1
      %v2548 = vadd.f32 %v2546, %v2547
      %vm2549 = vcmask 1040384
      %v2550 = vsel %vm2549, %v2479, %v2548
      %2551 = vst [vmem:[%s181] sm:$0x3] %v2550
      %p2552 = scmp.lt.s32.totalorder %s15, 1
      %s2553 = scalar_select %p2552, %s15, 1
      %s2554 = smul.addr %s2553, 32
      %s2555 = smul.addr %s2554, 4
      %s2556 = scalar_lea.vmem %s2, %s2555
      %p2557 = scmp.lt.s32.totalorder %s15, 1
      %s2558 = scalar_select %p2557, %s15, 1
      %s2559 = smul.addr %s2558, 2
      %s2560 = scalar_lea.vmem %s3, %s2559
      // Predicated region
      $region29: #{basic_block.3} parent=27 // pred_check
        %p2561 = pneg %p80
      $region30: #{basic_block.3} parent=27 // pred_check_branch
        %2563 = sbr.rel (%p2561) target = $region32
      $region31: #{basic_block.3} parent=27 // pred_region
        _
      $region32: #{basic_block.3} parent=27 // pred_fallthru
        _
      // Predicated region
      $region33: #{basic_block.3} parent=27 // pred_check
        %p2564 = pneg %p106
      $region34: #{basic_block.3} parent=27 // pred_check_branch
        %2566 = sbr.rel (%p2564) target = $region36
      $region35: #{basic_block.3} parent=27 // pred_region
        _
      $region36: #{basic_block.3} parent=27 // pred_fallthru
        _
    $region28: #{basic_block.3} parent=5 // pred_fallthru
      _
    %p2567 = scmp.le.s32.totalorder 2, %s10
    // Predicated region
    $region37: #{basic_block.3} parent=5 // pred_check
      %p2568 = pneg %p2567
    $region38: #{basic_block.3} parent=5 // pred_check_branch
      %2570 = sbr.rel (%p2568) target = $region40
    $region39: #{basic_block.3} parent=5 // pred_region
      %s2571 = ssub.s32 %s10, 2
      // Predicated region
      $region41: #{basic_block.3} parent=39 // pred_check
        %p2572 = pneg %p86
      $region42: #{basic_block.3} parent=39 // pred_check_branch
        %2574 = sbr.rel (%p2572) target = $region44
      $region43: #{basic_block.3} parent=39 // pred_region
        %p2575 = scmp.lt.s32.totalorder %s16, 1
        %s2576 = scalar_select %p2575, %s16, 1
        %s2577 = smul.addr %s2576, 32
        %s2578 = smul.addr %s2577, 4
        %s2579 = scalar_lea.vmem %s2, %s2578
      $region44: #{basic_block.3} parent=39 // pred_fallthru
        _
      // Predicated region
      $region45: #{basic_block.3} parent=39 // pred_check
        %p2580 = pneg %p112
      $region46: #{basic_block.3} parent=39 // pred_check_branch
        %2582 = sbr.rel (%p2580) target = $region48
      $region47: #{basic_block.3} parent=39 // pred_region
        %p2583 = scmp.lt.s32.totalorder %s16, 1
        %s2584 = scalar_select %p2583, %s16, 1
        %s2585 = smul.addr %s2584, 2
        %s2586 = scalar_lea.vmem %s3, %s2585
      $region48: #{basic_block.3} parent=39 // pred_fallthru
        _
    $region40: #{basic_block.3} parent=5 // pred_fallthru
      _
  $region6: #{basic_block.3} parent=0 // loop_footer
    %s14 = sadd.s32 1, %s10
  $region7: #{basic_block.3} parent=0 // loop_footer_branch
    %9 = sbr.rel target = $region3
  $region8: #{basic_block.3} parent=0 // loop_exit
    _

// kernel: basic_block.4
$region0: #{basic_block.4}
  #allocation0 [shape = 'u32[]', space=smem, size = 0x4, offset = 0x4, fixed_abs, tag = 'smem constant byte address 0x4 - core index']
  #allocation1 [shape = 'u32[144,128]{1,0:T(1,128)}', space=vmem, size = 0x12000, scoped, tag = 'internal scratch']
  %s0 = inlined_call_operand.vmem [shape: bf16[2,16,16,128], index: 0, kind: input, shape index: {}]
  %s1 = inlined_call_operand.vmem [shape: f32[1,128], index: 1, kind: input, shape index: {}]
  %s2 = inlined_call_operand.vmem [shape: f32[1,128], index: 2, kind: input, shape index: {}]
  %s3 = inlined_call_operand.vmem [shape: bf16[3,384,128], index: 3, kind: input, shape index: {}]
  %s4 = inlined_call_operand.vmem [shape: bf16[2,16,16,128], index: 4, kind: output, shape index: {0}]
  %s5 = inlined_call_operand.vmem [shape: f32[2,2,128], index: 5, kind: output, shape index: {1}]
  %6 = xla_tuple %s4, %s5
  %s7 = sld [smem:[#allocation0]]
  $region57: #{basic_block.4} parent=0
    _
  %s9 = ssub.s32 1, %s7
  %s10 = scalar_select 0, %s9, %s7
  loop: start=0, step=1, limit=4
  $region2: #{basic_block.4} parent=0 // loop_pre_header
    _
  $region3: #{basic_block.4} parent=0 // loop_header
    %s12 = sphi 0, %s16
    %p13 = scmp.ge.s32.totalorder %s12, 4
    %s22 = sphi 0, %s24
    %s25 = sphi 0, %s22
    %s26 = sphi 0, %s25
    %s42 = sphi 0, %s26
    %s46 = sphi 0, %s46
    %s48 = sphi 0, %s46
    %s49 = sphi 0, %s48
    %s63 = sphi 0, %s49
    %s67 = sphi 0, %s67
    %s69 = sphi 0, %s67
    %s70 = sphi 0, %s69
    %s84 = sphi 0, %s70
    %s88 = sphi 0, %s88
    %s90 = sphi 0, %s88
    %s91 = sphi 0, %s90
    %s105 = sphi 0, %s91
    %s111 = sphi 0, %s113
    %s114 = sphi 0, %s111
    %s115 = sphi 0, %s114
    %s131 = sphi 0, %s115
    %s137 = sphi 0, %s139
    %s140 = sphi 0, %s137
    %s141 = sphi 0, %s140
    %s157 = sphi 0, %s141
  $region4: #{basic_block.4} parent=0 // loop_header_branch
    %15 = sbr.rel (%p13) target = $region8
  $region5: #{basic_block.4} parent=0 // loop_body
    %s17 = ssub.s32 %s12, 1
    %s18 = ssub.s32 %s12, 2
    %s19 = sadd.s32 %s12, 1
    %s20 = ssub.s32 %s12, %s19
    %p21 = scmp.eq.s32.totalorder %s20, 0
    %s23 = sadd.s32 %s22, 1
    %s24 = scalar_select %p21, %s22, %s23
    %p27 = pneg %p21
    %p28 = scmp.eq.s32.totalorder %s12, 1
    %p29 = por %p27, %p28
    %p30 = scmp.ne.s32.totalorder %s22, %s25
    %p31 = scmp.eq.s32.totalorder %s12, 0
    %p32 = por %p30, %p31
    %p33 = scmp.ne.s32.totalorder %s22, %s25
    %p34 = scmp.eq.s32.totalorder %s17, 1
    %p35 = por %p33, %p34
    %p36 = scmp.ne.s32.totalorder %s25, %s26
    %p37 = scmp.eq.s32.totalorder %s17, 0
    %p38 = por %p36, %p37
    %p39 = scmp.ne.s32.totalorder %s25, %s26
    %p40 = scmp.eq.s32.totalorder %s18, 1
    %p41 = por %p39, %p40
    %p43 = scmp.ne.s32.totalorder %s26, %s42
    %p44 = scmp.eq.s32.totalorder %s18, 0
    %p45 = por %p43, %p44
    %s47 = sadd.s32 %s46, 1
    %p50 = scmp.eq.s32.totalorder %s12, 1
    %p51 = scmp.ne.s32.totalorder %s46, %s48
    %p52 = scmp.eq.s32.totalorder %s12, 0
    %p53 = por %p51, %p52
    %p54 = scmp.ne.s32.totalorder %s46, %s48
    %p55 = scmp.eq.s32.totalorder %s17, 1
    %p56 = por %p54, %p55
    %p57 = scmp.ne.s32.totalorder %s48, %s49
    %p58 = scmp.eq.s32.totalorder %s17, 0
    %p59 = por %p57, %p58
    %p60 = scmp.ne.s32.totalorder %s48, %s49
    %p61 = scmp.eq.s32.totalorder %s18, 1
    %p62 = por %p60, %p61
    %p64 = scmp.ne.s32.totalorder %s49, %s63
    %p65 = scmp.eq.s32.totalorder %s18, 0
    %p66 = por %p64, %p65
    %s68 = sadd.s32 %s67, 1
    %p71 = scmp.eq.s32.totalorder %s12, 1
    %p72 = scmp.ne.s32.totalorder %s67, %s69
    %p73 = scmp.eq.s32.totalorder %s12, 0
    %p74 = por %p72, %p73
    %p75 = scmp.ne.s32.totalorder %s67, %s69
    %p76 = scmp.eq.s32.totalorder %s17, 1
    %p77 = por %p75, %p76
    %p78 = scmp.ne.s32.totalorder %s69, %s70
    %p79 = scmp.eq.s32.totalorder %s17, 0
    %p80 = por %p78, %p79
    %p81 = scmp.ne.s32.totalorder %s69, %s70
    %p82 = scmp.eq.s32.totalorder %s18, 1
    %p83 = por %p81, %p82
    %p85 = scmp.ne.s32.totalorder %s70, %s84
    %p86 = scmp.eq.s32.totalorder %s18, 0
    %p87 = por %p85, %p86
    %s89 = sadd.s32 %s88, 1
    %p92 = scmp.eq.s32.totalorder %s12, 1
    %p93 = scmp.ne.s32.totalorder %s88, %s90
    %p94 = scmp.eq.s32.totalorder %s12, 0
    %p95 = por %p93, %p94
    %p96 = scmp.ne.s32.totalorder %s88, %s90
    %p97 = scmp.eq.s32.totalorder %s17, 1
    %p98 = por %p96, %p97
    %p99 = scmp.ne.s32.totalorder %s90, %s91
    %p100 = scmp.eq.s32.totalorder %s17, 0
    %p101 = por %p99, %p100
    %p102 = scmp.ne.s32.totalorder %s90, %s91
    %p103 = scmp.eq.s32.totalorder %s18, 1
    %p104 = por %p102, %p103
    %p106 = scmp.ne.s32.totalorder %s91, %s105
    %p107 = scmp.eq.s32.totalorder %s18, 0
    %p108 = por %p106, %p107
    %s109 = ssub.s32 %s12, %s19
    %p110 = scmp.eq.s32.totalorder %s109, 0
    %s112 = sadd.s32 %s111, 1
    %s113 = scalar_select %p110, %s111, %s112
    %p116 = pneg %p110
    %p117 = scmp.eq.s32.totalorder %s12, 1
    %p118 = por %p116, %p117
    %p119 = scmp.ne.s32.totalorder %s111, %s114
    %p120 = scmp.eq.s32.totalorder %s12, 0
    %p121 = por %p119, %p120
    %p122 = scmp.ne.s32.totalorder %s111, %s114
    %p123 = scmp.eq.s32.totalorder %s17, 1
    %p124 = por %p122, %p123
    %p125 = scmp.ne.s32.totalorder %s114, %s115
    %p126 = scmp.eq.s32.totalorder %s17, 0
    %p127 = por %p125, %p126
    %p128 = scmp.ne.s32.totalorder %s114, %s115
    %p129 = scmp.eq.s32.totalorder %s18, 1
    %p130 = por %p128, %p129
    %p132 = scmp.ne.s32.totalorder %s115, %s131
    %p133 = scmp.eq.s32.totalorder %s18, 0
    %p134 = por %p132, %p133
    %s135 = ssub.s32 %s12, %s19
    %p136 = scmp.eq.s32.totalorder %s135, 0
    %s138 = sadd.s32 %s137, 1
    %s139 = scalar_select %p136, %s137, %s138
    %p142 = pneg %p136
    %p143 = scmp.eq.s32.totalorder %s12, 1
    %p144 = por %p142, %p143
    %p145 = scmp.ne.s32.totalorder %s137, %s140
    %p146 = scmp.eq.s32.totalorder %s12, 0
    %p147 = por %p145, %p146
    %p148 = scmp.ne.s32.totalorder %s137, %s140
    %p149 = scmp.eq.s32.totalorder %s17, 1
    %p150 = por %p148, %p149
    %p151 = scmp.ne.s32.totalorder %s140, %s141
    %p152 = scmp.eq.s32.totalorder %s17, 0
    %p153 = por %p151, %p152
    %p154 = scmp.ne.s32.totalorder %s140, %s141
    %p155 = scmp.eq.s32.totalorder %s18, 1
    %p156 = por %p154, %p155
    %p158 = scmp.ne.s32.totalorder %s141, %s157
    %p159 = scmp.eq.s32.totalorder %s18, 0
    %p160 = por %p158, %p159
    %p161 = scmp.le.s32.totalorder 1, %s12
    %p162 = scmp.lt.s32.totalorder %s12, 3
    %p163 = pnand %p161, %p162
    %p164 = pneg %p163
    // Predicated region
    $region9: #{basic_block.4} parent=5 // pred_check
      _
    $region10: #{basic_block.4} parent=5 // pred_check_branch
      %166 = sbr.rel (%p163) target = $region12
    $region11: #{basic_block.4} parent=5 // pred_region
      %s167 = ssub.s32 %s12, 1
      // Predicated region
      $region13: #{basic_block.4} parent=11 // pred_check
        %p168 = pneg %p59
      $region14: #{basic_block.4} parent=11 // pred_check_branch
        %170 = sbr.rel (%p168) target = $region16
      $region15: #{basic_block.4} parent=11 // pred_region
        _
      $region16: #{basic_block.4} parent=11 // pred_fallthru
        _
      // Predicated region
      $region17: #{basic_block.4} parent=11 // pred_check
        %p171 = pneg %p80
      $region18: #{basic_block.4} parent=11 // pred_check_branch
        %173 = sbr.rel (%p171) target = $region20
      $region19: #{basic_block.4} parent=11 // pred_region
        _
      $region20: #{basic_block.4} parent=11 // pred_fallthru
        _
      // Predicated region
      $region21: #{basic_block.4} parent=11 // pred_check
        %p174 = pneg %p101
      $region22: #{basic_block.4} parent=11 // pred_check_branch
        %176 = sbr.rel (%p174) target = $region24
      $region23: #{basic_block.4} parent=11 // pred_region
        _
      $region24: #{basic_block.4} parent=11 // pred_fallthru
        _
    $region12: #{basic_block.4} parent=5 // pred_fallthru
      _
    %p177 = scmp.lt.s32.totalorder %s12, 2
    // Predicated region
    $region25: #{basic_block.4} parent=5 // pred_check
      %p178 = pneg %p177
    $region26: #{basic_block.4} parent=5 // pred_check_branch
      %180 = sbr.rel (%p178) target = $region28
    $region27: #{basic_block.4} parent=5 // pred_region
      // Predicated region
      $region29: #{basic_block.4} parent=27 // pred_check
        %p181 = pneg %p32
      $region30: #{basic_block.4} parent=27 // pred_check_branch
        %183 = sbr.rel (%p181) target = $region32
      $region31: #{basic_block.4} parent=27 // pred_region
        %p184 = scmp.lt.s32.totalorder %s12, 1
        %s185 = scalar_select %p184, %s12, 1
        %s186 = smul.addr %s185, 32
        %s187 = smul.addr %s186, 4
        %s188 = scalar_lea.vmem %s0, %s187
      $region32: #{basic_block.4} parent=27 // pred_fallthru
        _
    $region28: #{basic_block.4} parent=5 // pred_fallthru
      _
    %p189 = scmp.le.s32.totalorder 1, %s12
    %p190 = scmp.lt.s32.totalorder %s12, 3
    %p191 = pnand %p189, %p190
    %p192 = pneg %p191
    // Predicated region
    $region33: #{basic_block.4} parent=5 // pred_check
      _
    $region34: #{basic_block.4} parent=5 // pred_check_branch
      %194 = sbr.rel (%p191) target = $region36
    $region35: #{basic_block.4} parent=5 // pred_region
      %s195 = ssub.s32 %s12, 1
      %p196 = scmp.lt.s32.totalorder %s17, 1
      %s197 = scalar_select %p196, %s17, 1
      %s198 = smul.addr %s197, 32
      %s199 = smul.addr %s198, 4
      %s200 = scalar_lea.vmem %s0, %s199
      %p201 = pneg %p38
      %p202 = pneg %p35
      %p203 = pneg %p59
      %p204 = pneg %p56
      %p205 = pneg %p80
      %p206 = pneg %p77
      %p207 = pneg %p101
      %p208 = pneg %p98
      %p209 = pneg %p127
      %p210 = pneg %p124
      %p211 = scmp.lt.s32.totalorder %s17, 1
      %s212 = scalar_select %p211, %s17, 1
      %s213 = smul.addr %s212, 32
      %s214 = smul.addr %s213, 4
      %s215 = scalar_lea.vmem %s4, %s214
      %p216 = pneg %p153
      %p217 = pneg %p150
      %p218 = scmp.lt.s32.totalorder %s17, 1
      %s219 = scalar_select %p218, %s17, 1
      %s220 = smul.addr %s219, 2
      %s221 = scalar_lea.vmem %s5, %s220
      %p222 = scmp.lt.s32.totalorder %s17, 1
      %s223 = scalar_select %p222, %s17, 1
      %s224 = smul.addr %s223, 32
      %s225 = smul.addr %s224, 4
      %s226 = scalar_lea.vmem %s0, %s225
      %p227 = scmp.lt.s32.totalorder %s17, 1
      %s228 = scalar_select %p227, %s17, 1
      %s229 = smul.addr %s228, 32
      %s230 = smul.addr %s229, 4
      %s231 = scalar_lea.vmem %s4, %s230
      %p232 = scmp.lt.s32.totalorder %s17, 1
      %s233 = scalar_select %p232, %s17, 1
      %s234 = smul.addr %s233, 2
      %s235 = scalar_lea.vmem %s5, %s234
      %v237 = vld [vmem:[%s226] sm:$0xf]
      %v238 = vld [vmem:[%s226 + $0x4] sm:$0xf]
      %v239 = vld [vmem:[%s226 + $0x8] sm:$0xf]
      %v240 = vld [vmem:[%s226 + $0xc] sm:$0xf]
      %v241 = vld [vmem:[%s226 + $0x10] sm:$0xf]
      %v242 = vld [vmem:[%s226 + $0x14] sm:$0xf]
      %v243 = vld [vmem:[%s226 + $0x18] sm:$0xf]
      %v244 = vld [vmem:[%s226 + $0x1c] sm:$0xf]
      %v245 = vld [vmem:[%s226 + $0x20] sm:$0xf]
      %v246 = vld [vmem:[%s226 + $0x24] sm:$0xf]
      %v247 = vld [vmem:[%s226 + $0x28] sm:$0xf]
      %v248 = vld [vmem:[%s226 + $0x2c] sm:$0xf]
      %v249 = vld [vmem:[%s226 + $0x30] sm:$0xf]
      %v250 = vld [vmem:[%s226 + $0x34] sm:$0xf]
      %v251 = vld [vmem:[%s226 + $0x38] sm:$0xf]
      %v252 = vld [vmem:[%s226 + $0x3c] sm:$0xf]
      %v253 = vld [vmem:[%s226 + $0x40] sm:$0xf]
      %v254 = vld [vmem:[%s226 + $0x44] sm:$0xf]
      %v255 = vld [vmem:[%s226 + $0x48] sm:$0xf]
      %v256 = vld [vmem:[%s226 + $0x4c] sm:$0xf]
      %v257 = vld [vmem:[%s226 + $0x50] sm:$0xf]
      %v258 = vld [vmem:[%s226 + $0x54] sm:$0xf]
      %v259 = vld [vmem:[%s226 + $0x58] sm:$0xf]
      %v260 = vld [vmem:[%s226 + $0x5c] sm:$0xf]
      %v261 = vld [vmem:[%s226 + $0x60] sm:$0xf]
      %v262 = vld [vmem:[%s226 + $0x64] sm:$0xf]
      %v263 = vld [vmem:[%s226 + $0x68] sm:$0xf]
      %v264 = vld [vmem:[%s226 + $0x6c] sm:$0xf]
      %v265 = vld [vmem:[%s226 + $0x70] sm:$0xf]
      %v266 = vld [vmem:[%s226 + $0x74] sm:$0xf]
      %v267 = vld [vmem:[%s226 + $0x78] sm:$0xf]
      %v268 = vld [vmem:[%s226 + $0x7c] sm:$0xf]
      %v269 = vunpack.c.l.bf16 %v237
      %v270 = vunpack.c.l.bf16 %v238
      %v271 = vunpack.c.l.bf16 %v239
      %v272 = vunpack.c.l.bf16 %v240
      %v273 = vunpack.c.l.bf16 %v241
      %v274 = vunpack.c.l.bf16 %v242
      %v275 = vunpack.c.l.bf16 %v243
      %v276 = vunpack.c.l.bf16 %v244
      %v277 = vunpack.c.l.bf16 %v245
      %v278 = vunpack.c.l.bf16 %v246
      %v279 = vunpack.c.l.bf16 %v247
      %v280 = vunpack.c.l.bf16 %v248
      %v281 = vunpack.c.l.bf16 %v249
      %v282 = vunpack.c.l.bf16 %v250
      %v283 = vunpack.c.l.bf16 %v251
      %v284 = vunpack.c.l.bf16 %v252
      %v285 = vunpack.c.l.bf16 %v253
      %v286 = vunpack.c.l.bf16 %v254
      %v287 = vunpack.c.l.bf16 %v255
      %v288 = vunpack.c.l.bf16 %v256
      %v289 = vunpack.c.l.bf16 %v257
      %v290 = vunpack.c.l.bf16 %v258
      %v291 = vunpack.c.l.bf16 %v259
      %v292 = vunpack.c.l.bf16 %v260
      %v293 = vunpack.c.l.bf16 %v261
      %v294 = vunpack.c.l.bf16 %v262
      %v295 = vunpack.c.l.bf16 %v263
      %v296 = vunpack.c.l.bf16 %v264
      %v297 = vunpack.c.l.bf16 %v265
      %v298 = vunpack.c.l.bf16 %v266
      %v299 = vunpack.c.l.bf16 %v267
      %v300 = vunpack.c.l.bf16 %v268
      %v301 = vld [vmem:[%s1] sm:$0x1]
      %v303 = vlaneseq
      %v304 = vshrl.u32 %v303, 7
      %v305 = vsub.s32 0, %v304
      %v306 = vrot.slane %v301, %v305
      %v308 = vmul.f32 %v269, %v306
      %v309 = vmul.f32 %v270, %v306
      %v310 = vmul.f32 %v271, %v306
      %v311 = vmul.f32 %v272, %v306
      %v312 = vmul.f32 %v273, %v306
      %v313 = vmul.f32 %v274, %v306
      %v314 = vmul.f32 %v275, %v306
      %v315 = vmul.f32 %v276, %v306
      %v316 = vmul.f32 %v277, %v306
      %v317 = vmul.f32 %v278, %v306
      %v318 = vmul.f32 %v279, %v306
      %v319 = vmul.f32 %v280, %v306
      %v320 = vmul.f32 %v281, %v306
      %v321 = vmul.f32 %v282, %v306
      %v322 = vmul.f32 %v283, %v306
      %v323 = vmul.f32 %v284, %v306
      %v324 = vmul.f32 %v285, %v306
      %v325 = vmul.f32 %v286, %v306
      %v326 = vmul.f32 %v287, %v306
      %v327 = vmul.f32 %v288, %v306
      %v328 = vmul.f32 %v289, %v306
      %v329 = vmul.f32 %v290, %v306
      %v330 = vmul.f32 %v291, %v306
      %v331 = vmul.f32 %v292, %v306
      %v332 = vmul.f32 %v293, %v306
      %v333 = vmul.f32 %v294, %v306
      %v334 = vmul.f32 %v295, %v306
      %v335 = vmul.f32 %v296, %v306
      %v336 = vmul.f32 %v297, %v306
      %v337 = vmul.f32 %v298, %v306
      %v338 = vmul.f32 %v299, %v306
      %v339 = vmul.f32 %v300, %v306
      %v340 = vld [vmem:[%s2] sm:$0x1]
      %v342 = vlaneseq
      %v343 = vshrl.u32 %v342, 7
      %v344 = vsub.s32 0, %v343
      %v345 = vrot.slane %v340, %v344
      %v347 = vadd.f32 %v308, %v345
      %v348 = vadd.f32 %v309, %v345
      %v349 = vadd.f32 %v310, %v345
      %v350 = vadd.f32 %v311, %v345
      %v351 = vadd.f32 %v312, %v345
      %v352 = vadd.f32 %v313, %v345
      %v353 = vadd.f32 %v314, %v345
      %v354 = vadd.f32 %v315, %v345
      %v355 = vadd.f32 %v316, %v345
      %v356 = vadd.f32 %v317, %v345
      %v357 = vadd.f32 %v318, %v345
      %v358 = vadd.f32 %v319, %v345
      %v359 = vadd.f32 %v320, %v345
      %v360 = vadd.f32 %v321, %v345
      %v361 = vadd.f32 %v322, %v345
      %v362 = vadd.f32 %v323, %v345
      %v363 = vadd.f32 %v324, %v345
      %v364 = vadd.f32 %v325, %v345
      %v365 = vadd.f32 %v326, %v345
      %v366 = vadd.f32 %v327, %v345
      %v367 = vadd.f32 %v328, %v345
      %v368 = vadd.f32 %v329, %v345
      %v369 = vadd.f32 %v330, %v345
      %v370 = vadd.f32 %v331, %v345
      %v371 = vadd.f32 %v332, %v345
      %v372 = vadd.f32 %v333, %v345
      %v373 = vadd.f32 %v334, %v345
      %v374 = vadd.f32 %v335, %v345
      %v375 = vadd.f32 %v336, %v345
      %v376 = vadd.f32 %v337, %v345
      %v377 = vadd.f32 %v338, %v345
      %v378 = vadd.f32 %v339, %v345
      %v379 = vmax.f32 %v347, 0.0
      %v380 = vmax.f32 %v348, 0.0
      %v381 = vmax.f32 %v349, 0.0
      %v382 = vmax.f32 %v350, 0.0
      %v383 = vmax.f32 %v351, 0.0
      %v384 = vmax.f32 %v352, 0.0
      %v385 = vmax.f32 %v353, 0.0
      %v386 = vmax.f32 %v354, 0.0
      %v387 = vmax.f32 %v355, 0.0
      %v388 = vmax.f32 %v356, 0.0
      %v389 = vmax.f32 %v357, 0.0
      %v390 = vmax.f32 %v358, 0.0
      %v391 = vmax.f32 %v359, 0.0
      %v392 = vmax.f32 %v360, 0.0
      %v393 = vmax.f32 %v361, 0.0
      %v394 = vmax.f32 %v362, 0.0
      %v395 = vmax.f32 %v363, 0.0
      %v396 = vmax.f32 %v364, 0.0
      %v397 = vmax.f32 %v365, 0.0
      %v398 = vmax.f32 %v366, 0.0
      %v399 = vmax.f32 %v367, 0.0
      %v400 = vmax.f32 %v368, 0.0
      %v401 = vmax.f32 %v369, 0.0
      %v402 = vmax.f32 %v370, 0.0
      %v403 = vmax.f32 %v371, 0.0
      %v404 = vmax.f32 %v372, 0.0
      %v405 = vmax.f32 %v373, 0.0
      %v406 = vmax.f32 %v374, 0.0
      %v407 = vmax.f32 %v375, 0.0
      %v408 = vmax.f32 %v376, 0.0
      %v409 = vmax.f32 %v377, 0.0
      %v410 = vmax.f32 %v378, 0.0
      %v411 = vpack.c.bf16 %v380, %v379
      %v412 = vpack.c.bf16 %v382, %v381
      %v413 = vpack.c.bf16 %v384, %v383
      %v414 = vpack.c.bf16 %v386, %v385
      %v415 = vpack.c.bf16 %v388, %v387
      %v416 = vpack.c.bf16 %v390, %v389
      %v417 = vpack.c.bf16 %v392, %v391
      %v418 = vpack.c.bf16 %v394, %v393
      %v419 = vpack.c.bf16 %v396, %v395
      %v420 = vpack.c.bf16 %v398, %v397
      %v421 = vpack.c.bf16 %v400, %v399
      %v422 = vpack.c.bf16 %v402, %v401
      %v423 = vpack.c.bf16 %v404, %v403
      %v424 = vpack.c.bf16 %v406, %v405
      %v425 = vpack.c.bf16 %v408, %v407
      %v426 = vpack.c.bf16 %v410, %v409
      %v428 = vshrl.u32 %v411, 16
      %v430 = vrot.slane %v428, 7
      %v431 = vshll.u32 %v411, 16
      %v433 = vor.u32 %v430, %v431
      %v435 = vshrl.u32 %v412, 16
      %v437 = vrot.slane %v435, 7
      %v438 = vshll.u32 %v412, 16
      %v440 = vor.u32 %v437, %v438
      %v442 = vshrl.u32 %v413, 16
      %v444 = vrot.slane %v442, 7
      %v445 = vshll.u32 %v413, 16
      %v447 = vor.u32 %v444, %v445
      %v449 = vshrl.u32 %v414, 16
      %v451 = vrot.slane %v449, 7
      %v452 = vshll.u32 %v414, 16
      %v454 = vor.u32 %v451, %v452
      %v456 = vshrl.u32 %v415, 16
      %v458 = vrot.slane %v456, 7
      %v459 = vshll.u32 %v415, 16
      %v461 = vor.u32 %v458, %v459
      %v463 = vshrl.u32 %v416, 16
      %v465 = vrot.slane %v463, 7
      %v466 = vshll.u32 %v416, 16
      %v468 = vor.u32 %v465, %v466
      %v470 = vshrl.u32 %v417, 16
      %v472 = vrot.slane %v470, 7
      %v473 = vshll.u32 %v417, 16
      %v475 = vor.u32 %v472, %v473
      %v477 = vshrl.u32 %v418, 16
      %v479 = vrot.slane %v477, 7
      %v480 = vshll.u32 %v418, 16
      %v482 = vor.u32 %v479, %v480
      %v484 = vshrl.u32 %v419, 16
      %v486 = vrot.slane %v484, 7
      %v487 = vshll.u32 %v419, 16
      %v489 = vor.u32 %v486, %v487
      %v491 = vshrl.u32 %v420, 16
      %v493 = vrot.slane %v491, 7
      %v494 = vshll.u32 %v420, 16
      %v496 = vor.u32 %v493, %v494
      %v498 = vshrl.u32 %v421, 16
      %v500 = vrot.slane %v498, 7
      %v501 = vshll.u32 %v421, 16
      %v503 = vor.u32 %v500, %v501
      %v505 = vshrl.u32 %v422, 16
      %v507 = vrot.slane %v505, 7
      %v508 = vshll.u32 %v422, 16
      %v510 = vor.u32 %v507, %v508
      %v512 = vshrl.u32 %v423, 16
      %v514 = vrot.slane %v512, 7
      %v515 = vshll.u32 %v423, 16
      %v517 = vor.u32 %v514, %v515
      %v519 = vshrl.u32 %v424, 16
      %v521 = vrot.slane %v519, 7
      %v522 = vshll.u32 %v424, 16
      %v524 = vor.u32 %v521, %v522
      %v526 = vshrl.u32 %v425, 16
      %v528 = vrot.slane %v526, 7
      %v529 = vshll.u32 %v425, 16
      %v531 = vor.u32 %v528, %v529
      %v533 = vshrl.u32 %v426, 16
      %v535 = vrot.slane %v533, 7
      %v536 = vshll.u32 %v426, 16
      %v538 = vor.u32 %v535, %v536
      %vm571 = vcmask 1040384
      %vm572 = vsmask.f32 256
      %vm573 = vmand %vm571, %vm572
      %v574 = vsel %vm573, 0, %v433
      %v575 = vsel %vm573, 0, %v440
      %v576 = vsel %vm573, 0, %v447
      %v577 = vsel %vm573, 0, %v454
      %v578 = vsel %vm573, 0, %v461
      %v579 = vsel %vm573, 0, %v468
      %v580 = vsel %vm573, 0, %v475
      %v581 = vsel %vm573, 0, %v482
      %v582 = vsel %vm573, 0, %v489
      %v583 = vsel %vm573, 0, %v496
      %v584 = vsel %vm573, 0, %v503
      %v585 = vsel %vm573, 0, %v510
      %v586 = vsel %vm573, 0, %v517
      %v587 = vsel %vm573, 0, %v524
      %v588 = vsel %vm573, 0, %v531
      %v589 = vsel %vm573, 0, %v538
      %v590 = vsel %vm573, %v430, 0
      %v591 = vsel %vm573, %v437, 0
      %v592 = vsel %vm573, %v444, 0
      %v593 = vsel %vm573, %v451, 0
      %v594 = vsel %vm573, %v458, 0
      %v595 = vsel %vm573, %v465, 0
      %v596 = vsel %vm573, %v472, 0
      %v597 = vsel %vm573, %v479, 0
      %v598 = vsel %vm573, %v486, 0
      %v599 = vsel %vm573, %v493, 0
      %v600 = vsel %vm573, %v500, 0
      %v601 = vsel %vm573, %v507, 0
      %v602 = vsel %vm573, %v514, 0
      %v603 = vsel %vm573, %v521, 0
      %v604 = vsel %vm573, %v528, 0
      %v605 = vsel %vm573, %v535, 0
      %vm606 = vsmask.f32 7424
      %v608 = vshrl.u32 0, 16
      %v610 = vshll.u32 0, 16
      %v612 = vrot.slane %v610, 1
      %v613 = vor.u32 %v608, %v612
      %v614 = vsel %vm606, %v613, %v612
      %v616 = vshrl.u32 %v574, 16
      %v618 = vshll.u32 %v574, 16
      %v620 = vrot.slane %v618, 1
      %v621 = vor.u32 %v616, %v620
      %v623 = vshll.u32 %v590, 16
      %v625 = vrot.slane %v623, 1
      %v626 = vsel %vm606, %v621, %v625
      %v628 = vshrl.u32 %v575, 16
      %v630 = vshll.u32 %v575, 16
      %v632 = vrot.slane %v630, 1
      %v633 = vor.u32 %v628, %v632
      %v635 = vshll.u32 %v591, 16
      %v637 = vrot.slane %v635, 1
      %v638 = vsel %vm606, %v633, %v637
      %v640 = vshrl.u32 %v576, 16
      %v642 = vshll.u32 %v576, 16
      %v644 = vrot.slane %v642, 1
      %v645 = vor.u32 %v640, %v644
      %v647 = vshll.u32 %v592, 16
      %v649 = vrot.slane %v647, 1
      %v650 = vsel %vm606, %v645, %v649
      %v652 = vshrl.u32 %v577, 16
      %v654 = vshll.u32 %v577, 16
      %v656 = vrot.slane %v654, 1
      %v657 = vor.u32 %v652, %v656
      %v659 = vshll.u32 %v593, 16
      %v661 = vrot.slane %v659, 1
      %v662 = vsel %vm606, %v657, %v661
      %v664 = vshrl.u32 %v578, 16
      %v666 = vshll.u32 %v578, 16
      %v668 = vrot.slane %v666, 1
      %v669 = vor.u32 %v664, %v668
      %v671 = vshll.u32 %v594, 16
      %v673 = vrot.slane %v671, 1
      %v674 = vsel %vm606, %v669, %v673
      %v676 = vshrl.u32 %v579, 16
      %v678 = vshll.u32 %v579, 16
      %v680 = vrot.slane %v678, 1
      %v681 = vor.u32 %v676, %v680
      %v683 = vshll.u32 %v595, 16
      %v685 = vrot.slane %v683, 1
      %v686 = vsel %vm606, %v681, %v685
      %v688 = vshrl.u32 %v580, 16
      %v690 = vshll.u32 %v580, 16
      %v692 = vrot.slane %v690, 1
      %v693 = vor.u32 %v688, %v692
      %v695 = vshll.u32 %v596, 16
      %v697 = vrot.slane %v695, 1
      %v698 = vsel %vm606, %v693, %v697
      %v700 = vshrl.u32 %v581, 16
      %v702 = vshll.u32 %v581, 16
      %v704 = vrot.slane %v702, 1
      %v705 = vor.u32 %v700, %v704
      %v707 = vshll.u32 %v597, 16
      %v709 = vrot.slane %v707, 1
      %v710 = vsel %vm606, %v705, %v709
      %v712 = vshrl.u32 %v582, 16
      %v714 = vshll.u32 %v582, 16
      %v716 = vrot.slane %v714, 1
      %v717 = vor.u32 %v712, %v716
      %v719 = vshll.u32 %v598, 16
      %v721 = vrot.slane %v719, 1
      %v722 = vsel %vm606, %v717, %v721
      %v724 = vshrl.u32 %v583, 16
      %v726 = vshll.u32 %v583, 16
      %v728 = vrot.slane %v726, 1
      %v729 = vor.u32 %v724, %v728
      %v731 = vshll.u32 %v599, 16
      %v733 = vrot.slane %v731, 1
      %v734 = vsel %vm606, %v729, %v733
      %v736 = vshrl.u32 %v584, 16
      %v738 = vshll.u32 %v584, 16
      %v740 = vrot.slane %v738, 1
      %v741 = vor.u32 %v736, %v740
      %v743 = vshll.u32 %v600, 16
      %v745 = vrot.slane %v743, 1
      %v746 = vsel %vm606, %v741, %v745
      %v748 = vshrl.u32 %v585, 16
      %v750 = vshll.u32 %v585, 16
      %v752 = vrot.slane %v750, 1
      %v753 = vor.u32 %v748, %v752
      %v755 = vshll.u32 %v601, 16
      %v757 = vrot.slane %v755, 1
      %v758 = vsel %vm606, %v753, %v757
      %v760 = vshrl.u32 %v586, 16
      %v762 = vshll.u32 %v586, 16
      %v764 = vrot.slane %v762, 1
      %v765 = vor.u32 %v760, %v764
      %v767 = vshll.u32 %v602, 16
      %v769 = vrot.slane %v767, 1
      %v770 = vsel %vm606, %v765, %v769
      %v772 = vshrl.u32 %v587, 16
      %v774 = vshll.u32 %v587, 16
      %v776 = vrot.slane %v774, 1
      %v777 = vor.u32 %v772, %v776
      %v779 = vshll.u32 %v603, 16
      %v781 = vrot.slane %v779, 1
      %v782 = vsel %vm606, %v777, %v781
      %v784 = vshrl.u32 %v588, 16
      %v786 = vshll.u32 %v588, 16
      %v788 = vrot.slane %v786, 1
      %v789 = vor.u32 %v784, %v788
      %v791 = vshll.u32 %v604, 16
      %v793 = vrot.slane %v791, 1
      %v794 = vsel %vm606, %v789, %v793
      %v796 = vshrl.u32 %v589, 16
      %v798 = vshll.u32 %v589, 16
      %v800 = vrot.slane %v798, 1
      %v801 = vor.u32 %v796, %v800
      %v803 = vshll.u32 %v605, 16
      %v805 = vrot.slane %v803, 1
      %v806 = vsel %vm606, %v801, %v805
      %vm857 = vcmask 1046528
      %v858 = vrot.slane 0, 1
      %v859 = vsel %vm857, %v858, %v858
      %v860 = vrot.slane %v574, 1
      %v861 = vrot.slane %v590, 1
      %v862 = vsel %vm857, %v860, %v861
      %v863 = vrot.slane %v575, 1
      %v864 = vrot.slane %v591, 1
      %v865 = vsel %vm857, %v863, %v864
      %v866 = vrot.slane %v576, 1
      %v867 = vrot.slane %v592, 1
      %v868 = vsel %vm857, %v866, %v867
      %v869 = vrot.slane %v577, 1
      %v870 = vrot.slane %v593, 1
      %v871 = vsel %vm857, %v869, %v870
      %v872 = vrot.slane %v578, 1
      %v873 = vrot.slane %v594, 1
      %v874 = vsel %vm857, %v872, %v873
      %v875 = vrot.slane %v579, 1
      %v876 = vrot.slane %v595, 1
      %v877 = vsel %vm857, %v875, %v876
      %v878 = vrot.slane %v580, 1
      %v879 = vrot.slane %v596, 1
      %v880 = vsel %vm857, %v878, %v879
      %v881 = vrot.slane %v581, 1
      %v882 = vrot.slane %v597, 1
      %v883 = vsel %vm857, %v881, %v882
      %v884 = vrot.slane %v582, 1
      %v885 = vrot.slane %v598, 1
      %v886 = vsel %vm857, %v884, %v885
      %v887 = vrot.slane %v583, 1
      %v888 = vrot.slane %v599, 1
      %v889 = vsel %vm857, %v887, %v888
      %v890 = vrot.slane %v584, 1
      %v891 = vrot.slane %v600, 1
      %v892 = vsel %vm857, %v890, %v891
      %v893 = vrot.slane %v585, 1
      %v894 = vrot.slane %v601, 1
      %v895 = vsel %vm857, %v893, %v894
      %v896 = vrot.slane %v586, 1
      %v897 = vrot.slane %v602, 1
      %v898 = vsel %vm857, %v896, %v897
      %v899 = vrot.slane %v587, 1
      %v900 = vrot.slane %v603, 1
      %v901 = vsel %vm857, %v899, %v900
      %v902 = vrot.slane %v588, 1
      %v903 = vrot.slane %v604, 1
      %v904 = vsel %vm857, %v902, %v903
      %v905 = vrot.slane %v589, 1
      %v906 = vrot.slane %v605, 1
      %v907 = vsel %vm857, %v905, %v906
      %v925 = vld [vmem:[%s3] sm:$0xf]
      %v926 = vld [vmem:[%s3 + $0x4] sm:$0xf]
      %v927 = vld [vmem:[%s3 + $0x8] sm:$0xf]
      %v928 = vld [vmem:[%s3 + $0xc] sm:$0xf]
      %v929 = vld [vmem:[%s3 + $0x10] sm:$0xf]
      %v930 = vld [vmem:[%s3 + $0x14] sm:$0xf]
      %v931 = vld [vmem:[%s3 + $0x18] sm:$0xf]
      %v932 = vld [vmem:[%s3 + $0x1c] sm:$0xf]
      %v933 = vld [vmem:[%s3 + $0x20] sm:$0xf]
      %v934 = vld [vmem:[%s3 + $0x24] sm:$0xf]
      %v935 = vld [vmem:[%s3 + $0x28] sm:$0xf]
      %v936 = vld [vmem:[%s3 + $0x2c] sm:$0xf]
      %v937 = vld [vmem:[%s3 + $0x30] sm:$0xf]
      %v938 = vld [vmem:[%s3 + $0x34] sm:$0xf]
      %v939 = vld [vmem:[%s3 + $0x38] sm:$0xf]
      %v940 = vld [vmem:[%s3 + $0x3c] sm:$0xf]
      %v941 = vld [vmem:[%s3 + $0x40] sm:$0xf]
      %v942 = vld [vmem:[%s3 + $0x44] sm:$0xf]
      %v943 = vld [vmem:[%s3 + $0x48] sm:$0xf]
      %v944 = vld [vmem:[%s3 + $0x4c] sm:$0xf]
      %v945 = vld [vmem:[%s3 + $0x50] sm:$0xf]
      %v946 = vld [vmem:[%s3 + $0x54] sm:$0xf]
      %v947 = vld [vmem:[%s3 + $0x58] sm:$0xf]
      %v948 = vld [vmem:[%s3 + $0x5c] sm:$0xf]
      %v949 = vld [vmem:[%s3 + $0x60] sm:$0xf]
      %v950 = vld [vmem:[%s3 + $0x64] sm:$0xf]
      %v951 = vld [vmem:[%s3 + $0x68] sm:$0xf]
      %v952 = vld [vmem:[%s3 + $0x6c] sm:$0xf]
      %v953 = vld [vmem:[%s3 + $0x70] sm:$0xf]
      %v954 = vld [vmem:[%s3 + $0x74] sm:$0xf]
      %v955 = vld [vmem:[%s3 + $0x78] sm:$0xf]
      %v956 = vld [vmem:[%s3 + $0x7c] sm:$0xf]
      %v957 = vld [vmem:[%s3 + $0x80] sm:$0xf]
      %v958 = vld [vmem:[%s3 + $0x84] sm:$0xf]
      %v959 = vld [vmem:[%s3 + $0x88] sm:$0xf]
      %v960 = vld [vmem:[%s3 + $0x8c] sm:$0xf]
      %v961 = vld [vmem:[%s3 + $0x90] sm:$0xf]
      %v962 = vld [vmem:[%s3 + $0x94] sm:$0xf]
      %v963 = vld [vmem:[%s3 + $0x98] sm:$0xf]
      %v964 = vld [vmem:[%s3 + $0x9c] sm:$0xf]
      %v965 = vld [vmem:[%s3 + $0xa0] sm:$0xf]
      %v966 = vld [vmem:[%s3 + $0xa4] sm:$0xf]
      %v967 = vld [vmem:[%s3 + $0xa8] sm:$0xf]
      %v968 = vld [vmem:[%s3 + $0xac] sm:$0xf]
      %v969 = vld [vmem:[%s3 + $0xb0] sm:$0xf]
      %v970 = vld [vmem:[%s3 + $0xb4] sm:$0xf]
      %v971 = vld [vmem:[%s3 + $0xb8] sm:$0xf]
      %v972 = vld [vmem:[%s3 + $0xbc] sm:$0xf]
      %s973 = scalar_lea.vmem %s3, 192
      %v974 = vld [vmem:[%s973] sm:$0xf]
      %v975 = vld [vmem:[%s973 + $0x4] sm:$0xf]
      %v976 = vld [vmem:[%s973 + $0x8] sm:$0xf]
      %v977 = vld [vmem:[%s973 + $0xc] sm:$0xf]
      %v978 = vld [vmem:[%s973 + $0x10] sm:$0xf]
      %v979 = vld [vmem:[%s973 + $0x14] sm:$0xf]
      %v980 = vld [vmem:[%s973 + $0x18] sm:$0xf]
      %v981 = vld [vmem:[%s973 + $0x1c] sm:$0xf]
      %v982 = vld [vmem:[%s973 + $0x20] sm:$0xf]
      %v983 = vld [vmem:[%s973 + $0x24] sm:$0xf]
      %v984 = vld [vmem:[%s973 + $0x28] sm:$0xf]
      %v985 = vld [vmem:[%s973 + $0x2c] sm:$0xf]
      %v986 = vld [vmem:[%s973 + $0x30] sm:$0xf]
      %v987 = vld [vmem:[%s973 + $0x34] sm:$0xf]
      %v988 = vld [vmem:[%s973 + $0x38] sm:$0xf]
      %v989 = vld [vmem:[%s973 + $0x3c] sm:$0xf]
      %v990 = vld [vmem:[%s973 + $0x40] sm:$0xf]
      %v991 = vld [vmem:[%s973 + $0x44] sm:$0xf]
      %v992 = vld [vmem:[%s973 + $0x48] sm:$0xf]
      %v993 = vld [vmem:[%s973 + $0x4c] sm:$0xf]
      %v994 = vld [vmem:[%s973 + $0x50] sm:$0xf]
      %v995 = vld [vmem:[%s973 + $0x54] sm:$0xf]
      %v996 = vld [vmem:[%s973 + $0x58] sm:$0xf]
      %v997 = vld [vmem:[%s973 + $0x5c] sm:$0xf]
      %v998 = vld [vmem:[%s973 + $0x60] sm:$0xf]
      %v999 = vld [vmem:[%s973 + $0x64] sm:$0xf]
      %v1000 = vld [vmem:[%s973 + $0x68] sm:$0xf]
      %v1001 = vld [vmem:[%s973 + $0x6c] sm:$0xf]
      %v1002 = vld [vmem:[%s973 + $0x70] sm:$0xf]
      %v1003 = vld [vmem:[%s973 + $0x74] sm:$0xf]
      %v1004 = vld [vmem:[%s973 + $0x78] sm:$0xf]
      %v1005 = vld [vmem:[%s973 + $0x7c] sm:$0xf]
      %v1006 = vld [vmem:[%s973 + $0x80] sm:$0xf]
      %v1007 = vld [vmem:[%s973 + $0x84] sm:$0xf]
      %v1008 = vld [vmem:[%s973 + $0x88] sm:$0xf]
      %v1009 = vld [vmem:[%s973 + $0x8c] sm:$0xf]
      %v1010 = vld [vmem:[%s973 + $0x90] sm:$0xf]
      %v1011 = vld [vmem:[%s973 + $0x94] sm:$0xf]
      %v1012 = vld [vmem:[%s973 + $0x98] sm:$0xf]
      %v1013 = vld [vmem:[%s973 + $0x9c] sm:$0xf]
      %v1014 = vld [vmem:[%s973 + $0xa0] sm:$0xf]
      %v1015 = vld [vmem:[%s973 + $0xa4] sm:$0xf]
      %v1016 = vld [vmem:[%s973 + $0xa8] sm:$0xf]
      %v1017 = vld [vmem:[%s973 + $0xac] sm:$0xf]
      %v1018 = vld [vmem:[%s973 + $0xb0] sm:$0xf]
      %v1019 = vld [vmem:[%s973 + $0xb4] sm:$0xf]
      %v1020 = vld [vmem:[%s973 + $0xb8] sm:$0xf]
      %v1021 = vld [vmem:[%s973 + $0xbc] sm:$0xf]
      %v1070 = vunpack.c.l.b16 %v974
      %v1071 = vunpack.c.l.b16 %v975
      %v1072 = vunpack.c.l.b16 %v976
      %v1073 = vunpack.c.l.b16 %v977
      %v1074 = vunpack.c.l.b16 %v978
      %v1075 = vunpack.c.l.b16 %v979
      %v1076 = vunpack.c.l.b16 %v980
      %v1077 = vunpack.c.l.b16 %v981
      %v1078 = vunpack.c.l.b16 %v982
      %v1079 = vunpack.c.l.b16 %v983
      %v1080 = vunpack.c.l.b16 %v984
      %v1081 = vunpack.c.l.b16 %v985
      %v1082 = vunpack.c.l.b16 %v986
      %v1083 = vunpack.c.l.b16 %v987
      %v1084 = vunpack.c.l.b16 %v988
      %v1085 = vunpack.c.l.b16 %v989
      %v1086 = vunpack.c.l.b16 %v990
      %v1087 = vunpack.c.l.b16 %v991
      %v1088 = vunpack.c.l.b16 %v992
      %v1089 = vunpack.c.l.b16 %v993
      %v1090 = vunpack.c.l.b16 %v994
      %v1091 = vunpack.c.l.b16 %v995
      %v1092 = vunpack.c.l.b16 %v996
      %v1093 = vunpack.c.l.b16 %v997
      %v1094 = vunpack.c.l.b16 %v998
      %v1095 = vunpack.c.l.b16 %v999
      %v1096 = vunpack.c.l.b16 %v1000
      %v1097 = vunpack.c.l.b16 %v1001
      %v1098 = vunpack.c.l.b16 %v1002
      %v1099 = vunpack.c.l.b16 %v1003
      %v1100 = vunpack.c.l.b16 %v1004
      %v1101 = vunpack.c.l.b16 %v1005
      %v1102 = vunpack.c.l.b16 %v1006
      %v1103 = vunpack.c.l.b16 %v1007
      %v1104 = vunpack.c.l.b16 %v1008
      %v1105 = vunpack.c.l.b16 %v1009
      %v1106 = vunpack.c.l.b16 %v1010
      %v1107 = vunpack.c.l.b16 %v1011
      %v1108 = vunpack.c.l.b16 %v1012
      %v1109 = vunpack.c.l.b16 %v1013
      %v1110 = vunpack.c.l.b16 %v1014
      %v1111 = vunpack.c.l.b16 %v1015
      %v1112 = vunpack.c.l.b16 %v1016
      %v1113 = vunpack.c.l.b16 %v1017
      %v1114 = vunpack.c.l.b16 %v1018
      %v1115 = vunpack.c.l.b16 %v1019
      %v1116 = vunpack.c.l.b16 %v1020
      %v1117 = vunpack.c.l.b16 %v1021
      %v1118 = vpack.c.b16 %v1071, %v1070
      %v1119 = vpack.c.b16 %v1073, %v1072
      %v1120 = vpack.c.b16 %v1075, %v1074
      %v1121 = vpack.c.b16 %v1077, %v1076
      %v1122 = vpack.c.b16 %v1079, %v1078
      %v1123 = vpack.c.b16 %v1081, %v1080
      %v1124 = vpack.c.b16 %v1083, %v1082
      %v1125 = vpack.c.b16 %v1085, %v1084
      %v1126 = vpack.c.b16 %v1087, %v1086
      %v1127 = vpack.c.b16 %v1089, %v1088
      %v1128 = vpack.c.b16 %v1091, %v1090
      %v1129 = vpack.c.b16 %v1093, %v1092
      %v1130 = vpack.c.b16 %v1095, %v1094
      %v1131 = vpack.c.b16 %v1097, %v1096
      %v1132 = vpack.c.b16 %v1099, %v1098
      %v1133 = vpack.c.b16 %v1101, %v1100
      %v1134 = vpack.c.b16 %v1103, %v1102
      %v1135 = vpack.c.b16 %v1105, %v1104
      %v1136 = vpack.c.b16 %v1107, %v1106
      %v1137 = vpack.c.b16 %v1109, %v1108
      %v1138 = vpack.c.b16 %v1111, %v1110
      %v1139 = vpack.c.b16 %v1113, %v1112
      %v1140 = vpack.c.b16 %v1115, %v1114
      %v1141 = vpack.c.b16 %v1117, %v1116
      %1166 = vmatprep.subr.bf16.mxu0 0
      %1167 = vmatpush1.bf16.msra.mxu0 %v1118
      %1168 = vmatprep.subr.bf16.mxu0 0
      %1169 = vmatpush1.bf16.msra.mxu0 %v1119
      %1170 = vmatprep.subr.bf16.mxu0 0
      %1171 = vmatpush1.bf16.msra.mxu0 %v1120
      %1172 = vmatprep.subr.bf16.mxu0 0
      %1173 = vmatpush1.bf16.msra.mxu0 %v1121
      %1174 = vmatprep.subr.bf16.mxu0 0
      %1175 = vmatpush1.bf16.msra.mxu0 %v1122
      %1176 = vmatprep.subr.bf16.mxu0 0
      %1177 = vmatpush1.bf16.msra.mxu0 %v1123
      %1178 = vmatprep.subr.bf16.mxu0 0
      %1179 = vmatpush1.bf16.msra.mxu0 %v1124
      %1180 = vmatprep.subr.bf16.mxu0 0
      %1181 = vmatpush1.bf16.msra.mxu0 %v1125
      %1182 = vmatprep.subr.bf16.mxu0 0
      %1183 = vmatpush1.bf16.msra.mxu0 %v1126
      %1184 = vmatprep.subr.bf16.mxu0 0
      %1185 = vmatpush1.bf16.msra.mxu0 %v1127
      %1186 = vmatprep.subr.bf16.mxu0 0
      %1187 = vmatpush1.bf16.msra.mxu0 %v1128
      %1188 = vmatprep.subr.bf16.mxu0 0
      %1189 = vmatpush1.bf16.msra.mxu0 %v1129
      %1190 = vmatprep.subr.bf16.mxu0 0
      %1191 = vmatpush1.bf16.msra.mxu0 %v1130
      %1192 = vmatprep.subr.bf16.mxu0 0
      %1193 = vmatpush1.bf16.msra.mxu0 %v1131
      %1194 = vmatprep.subr.bf16.mxu0 0
      %1195 = vmatpush1.bf16.msra.mxu0 %v1132
      %1196 = vmatprep.subr.bf16.mxu0 0
      %1197 = vmatpush1.bf16.msra.mxu0 %v1133
      %1198 = vmatprep.mubr.bf16.mxu0 %v626
      %1199 = vmatmul.mubr.bf16.gmra.mrb[0].mxu0 %v574
      %v1200 = vpop.f32.mrb[0].mxu0
      %v1201 = vadd.f32 0.0, %v1200
      %v1202 = vpop.f32.mrb[0].mxu0
      %v1203 = vpop.f32.mrb[0].mxu0
      %v1204 = vadd.f32 0.0, %v1203
      %v1205 = vpop.f32.mrb[0].mxu0
      %1206 = vmatprep.mubr.bf16.mxu0 %v638
      %1207 = vmatmul.mubr.bf16.gmra.mrb[0].mxu0 %v575
      %v1208 = vpop.f32.mrb[0].mxu0
      %v1209 = vadd.f32 0.0, %v1208
      %v1210 = vpop.f32.mrb[0].mxu0
      %v1211 = vpop.f32.mrb[0].mxu0
      %v1212 = vadd.f32 0.0, %v1211
      %v1213 = vpop.f32.mrb[0].mxu0
      %1214 = vmatprep.mubr.bf16.mxu0 %v650
      %1215 = vmatmul.mubr.bf16.gmra.mrb[0].mxu0 %v576
      %v1216 = vpop.f32.mrb[0].mxu0
      %v1217 = vadd.f32 0.0, %v1216
      %v1218 = vpop.f32.mrb[0].mxu0
      %v1219 = vpop.f32.mrb[0].mxu0
      %v1220 = vadd.f32 0.0, %v1219
      %v1221 = vpop.f32.mrb[0].mxu0
      %1222 = vmatprep.mubr.bf16.mxu0 %v662
      %1223 = vmatmul.mubr.bf16.gmra.mrb[0].mxu0 %v577
      %v1224 = vpop.f32.mrb[0].mxu0
      %v1225 = vadd.f32 0.0, %v1224
      %v1226 = vpop.f32.mrb[0].mxu0
      %v1227 = vpop.f32.mrb[0].mxu0
      %v1228 = vadd.f32 0.0, %v1227
      %v1229 = vpop.f32.mrb[0].mxu0
      %1230 = vmatprep.mubr.bf16.mxu0 %v674
      %1231 = vmatmul.mubr.bf16.gmra.mrb[0].mxu0 %v578
      %v1232 = vpop.f32.mrb[0].mxu0
      %v1233 = vadd.f32 0.0, %v1232
      %v1234 = vpop.f32.mrb[0].mxu0
      %v1235 = vpop.f32.mrb[0].mxu0
      %v1236 = vadd.f32 0.0, %v1235
      %v1237 = vpop.f32.mrb[0].mxu0
      %1238 = vmatprep.mubr.bf16.mxu0 %v686
      %1239 = vmatmul.mubr.bf16.gmra.mrb[0].mxu0 %v579
      %v1240 = vpop.f32.mrb[0].mxu0
      %v1241 = vadd.f32 0.0, %v1240
      %v1242 = vpop.f32.mrb[0].mxu0
      %v1243 = vpop.f32.mrb[0].mxu0
      %v1244 = vadd.f32 0.0, %v1243
      %v1245 = vpop.f32.mrb[0].mxu0
      %1246 = vmatprep.mubr.bf16.mxu0 %v698
      %1247 = vmatmul.mubr.bf16.gmra.mrb[0].mxu0 %v580
      %v1248 = vpop.f32.mrb[0].mxu0
      %v1249 = vadd.f32 0.0, %v1248
      %v1250 = vpop.f32.mrb[0].mxu0
      %v1251 = vpop.f32.mrb[0].mxu0
      %v1252 = vadd.f32 0.0, %v1251
      %v1253 = vpop.f32.mrb[0].mxu0
      %1254 = vmatprep.mubr.bf16.mxu0 %v710
      %1255 = vmatmul.mubr.bf16.gmra.mrb[0].mxu0 %v581
      %v1256 = vpop.f32.mrb[0].mxu0
      %v1257 = vadd.f32 0.0, %v1256
      %v1258 = vpop.f32.mrb[0].mxu0
      %v1259 = vpop.f32.mrb[0].mxu0
      %v1260 = vadd.f32 0.0, %v1259
      %v1261 = vpop.f32.mrb[0].mxu0
      %1262 = vmatprep.mubr.bf16.mxu0 %v722
      %1263 = vmatmul.mubr.bf16.gmra.mrb[0].mxu0 %v582
      %v1264 = vpop.f32.mrb[0].mxu0
      %v1265 = vadd.f32 0.0, %v1264
      %v1266 = vpop.f32.mrb[0].mxu0
      %v1267 = vpop.f32.mrb[0].mxu0
      %v1268 = vadd.f32 0.0, %v1267
      %v1269 = vpop.f32.mrb[0].mxu0
      %1270 = vmatprep.mubr.bf16.mxu0 %v734
      %1271 = vmatmul.mubr.bf16.gmra.mrb[0].mxu0 %v583
      %v1272 = vpop.f32.mrb[0].mxu0
      %v1273 = vadd.f32 0.0, %v1272
      %v1274 = vpop.f32.mrb[0].mxu0
      %v1275 = vpop.f32.mrb[0].mxu0
      %v1276 = vadd.f32 0.0, %v1275
      %v1277 = vpop.f32.mrb[0].mxu0
      %1278 = vmatprep.mubr.bf16.mxu0 %v746
      %1279 = vmatmul.mubr.bf16.gmra.mrb[0].mxu0 %v584
      %v1280 = vpop.f32.mrb[0].mxu0
      %v1281 = vadd.f32 0.0, %v1280
      %v1282 = vpop.f32.mrb[0].mxu0
      %v1283 = vpop.f32.mrb[0].mxu0
      %v1284 = vadd.f32 0.0, %v1283
      %v1285 = vpop.f32.mrb[0].mxu0
      %1286 = vmatprep.mubr.bf16.mxu0 %v758
      %1287 = vmatmul.mubr.bf16.gmra.mrb[0].mxu0 %v585
      %v1288 = vpop.f32.mrb[0].mxu0
      %v1289 = vadd.f32 0.0, %v1288
      %v1290 = vpop.f32.mrb[0].mxu0
      %v1291 = vpop.f32.mrb[0].mxu0
      %v1292 = vadd.f32 0.0, %v1291
      %v1293 = vpop.f32.mrb[0].mxu0
      %1294 = vmatprep.mubr.bf16.mxu0 %v770
      %1295 = vmatmul.mubr.bf16.gmra.mrb[0].mxu0 %v586
      %v1296 = vpop.f32.mrb[0].mxu0
      %v1297 = vadd.f32 0.0, %v1296
      %v1298 = vpop.f32.mrb[0].mxu0
      %v1299 = vpop.f32.mrb[0].mxu0
      %v1300 = vadd.f32 0.0, %v1299
      %v1301 = vpop.f32.mrb[0].mxu0
      %1302 = vmatprep.mubr.bf16.mxu0 %v782
      %1303 = vmatmul.mubr.bf16.gmra.mrb[0].mxu0 %v587
      %v1304 = vpop.f32.mrb[0].mxu0
      %v1305 = vadd.f32 0.0, %v1304
      %v1306 = vpop.f32.mrb[0].mxu0
      %v1307 = vpop.f32.mrb[0].mxu0
      %v1308 = vadd.f32 0.0, %v1307
      %v1309 = vpop.f32.mrb[0].mxu0
      %1310 = vmatprep.mubr.bf16.mxu0 %v794
      %1311 = vmatmul.mubr.bf16.gmra.mrb[0].mxu0 %v588
      %v1312 = vpop.f32.mrb[0].mxu0
      %v1313 = vadd.f32 0.0, %v1312
      %v1314 = vpop.f32.mrb[0].mxu0
      %v1315 = vpop.f32.mrb[0].mxu0
      %v1316 = vadd.f32 0.0, %v1315
      %v1317 = vpop.f32.mrb[0].mxu0
      %1318 = vmatprep.mubr.bf16.mxu0 %v806
      %1319 = vmatmul.mubr.bf16.gmra.mrb[0].mxu0 %v589
      %v1320 = vpop.f32.mrb[0].mxu0
      %v1321 = vadd.f32 0.0, %v1320
      %v1322 = vpop.f32.mrb[0].mxu0
      %v1323 = vpop.f32.mrb[0].mxu0
      %v1324 = vadd.f32 0.0, %v1323
      %v1325 = vpop.f32.mrb[0].mxu0
      %1326 = vdwg.mxu0
      %1327 = vmatprep.subr.bf16.mxu0 0
      %1328 = vmatpush1.bf16.msra.mxu0 %v1134
      %1329 = vmatprep.subr.bf16.mxu0 0
      %1330 = vmatpush1.bf16.msra.mxu0 %v1135
      %1331 = vmatprep.subr.bf16.mxu0 0
      %1332 = vmatpush1.bf16.msra.mxu0 %v1136
      %1333 = vmatprep.subr.bf16.mxu0 0
      %1334 = vmatpush1.bf16.msra.mxu0 %v1137
      %1335 = vmatprep.subr.bf16.mxu0 0
      %1336 = vmatpush1.bf16.msra.mxu0 %v1138
      %1337 = vmatprep.subr.bf16.mxu0 0
      %1338 = vmatpush1.bf16.msra.mxu0 %v1139
      %1339 = vmatprep.subr.bf16.mxu0 0
      %1340 = vmatpush1.bf16.msra.mxu0 %v1140
      %1341 = vmatprep.subr.bf16.mxu0 0
      %1342 = vmatpush1.bf16.msra.mxu0 %v1141
      %1343 = vmatprep.subr.bf16.mxu0 0
      %1344 = vmatpush1.bf16.msra.mxu0 0
      %1345 = vmatprep.subr.bf16.mxu0 0
      %1346 = vmatpush1.bf16.msra.mxu0 0
      %1347 = vmatprep.subr.bf16.mxu0 0
      %1348 = vmatpush1.bf16.msra.mxu0 0
      %1349 = vmatprep.subr.bf16.mxu0 0
      %1350 = vmatpush1.bf16.msra.mxu0 0
      %1351 = vmatprep.subr.bf16.mxu0 0
      %1352 = vmatpush1.bf16.msra.mxu0 0
      %1353 = vmatprep.subr.bf16.mxu0 0
      %1354 = vmatpush1.bf16.msra.mxu0 0
      %1355 = vmatprep.subr.bf16.mxu0 0
      %1356 = vmatpush1.bf16.msra.mxu0 0
      %1357 = vmatprep.subr.bf16.mxu0 0
      %1358 = vmatpush1.bf16.msra.mxu0 0
      %1359 = vmatprep.mubr.bf16.mxu0 0
      %1360 = vmatmul.mubr.bf16.gmra.mrb[0].mxu0 %v862
      %v1361 = vpop.f32.mrb[0].mxu0
      %v1362 = vadd.f32 %v1201, %v1361
      %v1363 = vpop.f32.mrb[0].mxu0
      %v1364 = vpop.f32.mrb[0].mxu0
      %v1365 = vadd.f32 %v1204, %v1364
      %v1366 = vpop.f32.mrb[0].mxu0
      %1367 = vmatprep.mubr.bf16.mxu0 0
      %1368 = vmatmul.mubr.bf16.gmra.mrb[0].mxu0 %v865
      %v1369 = vpop.f32.mrb[0].mxu0
      %v1370 = vadd.f32 %v1209, %v1369
      %v1371 = vpop.f32.mrb[0].mxu0
      %v1372 = vpop.f32.mrb[0].mxu0
      %v1373 = vadd.f32 %v1212, %v1372
      %v1374 = vpop.f32.mrb[0].mxu0
      %1375 = vmatprep.mubr.bf16.mxu0 0
      %1376 = vmatmul.mubr.bf16.gmra.mrb[0].mxu0 %v868
      %v1377 = vpop.f32.mrb[0].mxu0
      %v1378 = vadd.f32 %v1217, %v1377
      %v1379 = vpop.f32.mrb[0].mxu0
      %v1380 = vpop.f32.mrb[0].mxu0
      %v1381 = vadd.f32 %v1220, %v1380
      %v1382 = vpop.f32.mrb[0].mxu0
      %1383 = vmatprep.mubr.bf16.mxu0 0
      %1384 = vmatmul.mubr.bf16.gmra.mrb[0].mxu0 %v871
      %v1385 = vpop.f32.mrb[0].mxu0
      %v1386 = vadd.f32 %v1225, %v1385
      %v1387 = vpop.f32.mrb[0].mxu0
      %v1388 = vpop.f32.mrb[0].mxu0
      %v1389 = vadd.f32 %v1228, %v1388
      %v1390 = vpop.f32.mrb[0].mxu0
      %1391 = vmatprep.mubr.bf16.mxu0 0
      %1392 = vmatmul.mubr.bf16.gmra.mrb[0].mxu0 %v874
      %v1393 = vpop.f32.mrb[0].mxu0
      %v1394 = vadd.f32 %v1233, %v1393
      %v1395 = vpop.f32.mrb[0].mxu0
      %v1396 = vpop.f32.mrb[0].mxu0
      %v1397 = vadd.f32 %v1236, %v1396
      %v1398 = vpop.f32.mrb[0].mxu0
      %1399 = vmatprep.mubr.bf16.mxu0 0
      %1400 = vmatmul.mubr.bf16.gmra.mrb[0].mxu0 %v877
      %v1401 = vpop.f32.mrb[0].mxu0
      %v1402 = vadd.f32 %v1241, %v1401
      %v1403 = vpop.f32.mrb[0].mxu0
      %v1404 = vpop.f32.mrb[0].mxu0
      %v1405 = vadd.f32 %v1244, %v1404
      %v1406 = vpop.f32.mrb[0].mxu0
      %1407 = vmatprep.mubr.bf16.mxu0 0
      %1408 = vmatmul.mubr.bf16.gmra.mrb[0].mxu0 %v880
      %v1409 = vpop.f32.mrb[0].mxu0
      %v1410 = vadd.f32 %v1249, %v1409
      %v1411 = vpop.f32.mrb[0].mxu0
      %v1412 = vpop.f32.mrb[0].mxu0
      %v1413 = vadd.f32 %v1252, %v1412
      %v1414 = vpop.f32.mrb[0].mxu0
      %1415 = vmatprep.mubr.bf16.mxu0 0
      %1416 = vmatmul.mubr.bf16.gmra.mrb[0].mxu0 %v883
      %v1417 = vpop.f32.mrb[0].mxu0
      %v1418 = vadd.f32 %v1257, %v1417
      %v1419 = vpop.f32.mrb[0].mxu0
      %v1420 = vpop.f32.mrb[0].mxu0
      %v1421 = vadd.f32 %v1260, %v1420
      %v1422 = vpop.f32.mrb[0].mxu0
      %1423 = vmatprep.mubr.bf16.mxu0 0
      %1424 = vmatmul.mubr.bf16.gmra.mrb[0].mxu0 %v886
      %v1425 = vpop.f32.mrb[0].mxu0
      %v1426 = vadd.f32 %v1265, %v1425
      %v1427 = vpop.f32.mrb[0].mxu0
      %v1428 = vpop.f32.mrb[0].mxu0
      %v1429 = vadd.f32 %v1268, %v1428
      %v1430 = vpop.f32.mrb[0].mxu0
      %1431 = vmatprep.mubr.bf16.mxu0 0
      %1432 = vmatmul.mubr.bf16.gmra.mrb[0].mxu0 %v889
      %v1433 = vpop.f32.mrb[0].mxu0
      %v1434 = vadd.f32 %v1273, %v1433
      %v1435 = vpop.f32.mrb[0].mxu0
      %v1436 = vpop.f32.mrb[0].mxu0
      %v1437 = vadd.f32 %v1276, %v1436
      %v1438 = vpop.f32.mrb[0].mxu0
      %1439 = vmatprep.mubr.bf16.mxu0 0
      %1440 = vmatmul.mubr.bf16.gmra.mrb[0].mxu0 %v892
      %v1441 = vpop.f32.mrb[0].mxu0
      %v1442 = vadd.f32 %v1281, %v1441
      %v1443 = vpop.f32.mrb[0].mxu0
      %v1444 = vpop.f32.mrb[0].mxu0
      %v1445 = vadd.f32 %v1284, %v1444
      %v1446 = vpop.f32.mrb[0].mxu0
      %1447 = vmatprep.mubr.bf16.mxu0 0
      %1448 = vmatmul.mubr.bf16.gmra.mrb[0].mxu0 %v895
      %v1449 = vpop.f32.mrb[0].mxu0
      %v1450 = vadd.f32 %v1289, %v1449
      %v1451 = vpop.f32.mrb[0].mxu0
      %v1452 = vpop.f32.mrb[0].mxu0
      %v1453 = vadd.f32 %v1292, %v1452
      %v1454 = vpop.f32.mrb[0].mxu0
      %1455 = vmatprep.mubr.bf16.mxu0 0
      %1456 = vmatmul.mubr.bf16.gmra.mrb[0].mxu0 %v898
      %v1457 = vpop.f32.mrb[0].mxu0
      %v1458 = vadd.f32 %v1297, %v1457
      %v1459 = vpop.f32.mrb[0].mxu0
      %v1460 = vpop.f32.mrb[0].mxu0
      %v1461 = vadd.f32 %v1300, %v1460
      %v1462 = vpop.f32.mrb[0].mxu0
      %1463 = vmatprep.mubr.bf16.mxu0 0
      %1464 = vmatmul.mubr.bf16.gmra.mrb[0].mxu0 %v901
      %v1465 = vpop.f32.mrb[0].mxu0
      %v1466 = vadd.f32 %v1305, %v1465
      %v1467 = vpop.f32.mrb[0].mxu0
      %v1468 = vpop.f32.mrb[0].mxu0
      %v1469 = vadd.f32 %v1308, %v1468
      %v1470 = vpop.f32.mrb[0].mxu0
      %1471 = vmatprep.mubr.bf16.mxu0 0
      %1472 = vmatmul.mubr.bf16.gmra.mrb[0].mxu0 %v904
      %v1473 = vpop.f32.mrb[0].mxu0
      %v1474 = vadd.f32 %v1313, %v1473
      %v1475 = vpop.f32.mrb[0].mxu0
      %v1476 = vpop.f32.mrb[0].mxu0
      %v1477 = vadd.f32 %v1316, %v1476
      %v1478 = vpop.f32.mrb[0].mxu0
      %1479 = vmatprep.mubr.bf16.mxu0 0
      %1480 = vmatmul.mubr.bf16.gmra.mrb[0].mxu0 %v907
      %v1481 = vpop.f32.mrb[0].mxu0
      %v1482 = vadd.f32 %v1321, %v1481
      %v1483 = vpop.f32.mrb[0].mxu0
      %v1484 = vpop.f32.mrb[0].mxu0
      %v1485 = vadd.f32 %v1324, %v1484
      %v1486 = vpop.f32.mrb[0].mxu0
      %1487 = vdwg.mxu0
      %v1536 = vunpack.c.l.b16 %v925
      %v1537 = vunpack.c.l.b16 %v926
      %v1538 = vunpack.c.l.b16 %v927
      %v1539 = vunpack.c.l.b16 %v928
      %v1540 = vunpack.c.l.b16 %v929
      %v1541 = vunpack.c.l.b16 %v930
      %v1542 = vunpack.c.l.b16 %v931
      %v1543 = vunpack.c.l.b16 %v932
      %v1544 = vunpack.c.l.b16 %v933
      %v1545 = vunpack.c.l.b16 %v934
      %v1546 = vunpack.c.l.b16 %v935
      %v1547 = vunpack.c.l.b16 %v936
      %v1548 = vunpack.c.l.b16 %v937
      %v1549 = vunpack.c.l.b16 %v938
      %v1550 = vunpack.c.l.b16 %v939
      %v1551 = vunpack.c.l.b16 %v940
      %v1552 = vunpack.c.l.b16 %v941
      %v1553 = vunpack.c.l.b16 %v942
      %v1554 = vunpack.c.l.b16 %v943
      %v1555 = vunpack.c.l.b16 %v944
      %v1556 = vunpack.c.l.b16 %v945
      %v1557 = vunpack.c.l.b16 %v946
      %v1558 = vunpack.c.l.b16 %v947
      %v1559 = vunpack.c.l.b16 %v948
      %v1560 = vunpack.c.l.b16 %v949
      %v1561 = vunpack.c.l.b16 %v950
      %v1562 = vunpack.c.l.b16 %v951
      %v1563 = vunpack.c.l.b16 %v952
      %v1564 = vunpack.c.l.b16 %v953
      %v1565 = vunpack.c.l.b16 %v954
      %v1566 = vunpack.c.l.b16 %v955
      %v1567 = vunpack.c.l.b16 %v956
      %v1568 = vunpack.c.l.b16 %v957
      %v1569 = vunpack.c.l.b16 %v958
      %v1570 = vunpack.c.l.b16 %v959
      %v1571 = vunpack.c.l.b16 %v960
      %v1572 = vunpack.c.l.b16 %v961
      %v1573 = vunpack.c.l.b16 %v962
      %v1574 = vunpack.c.l.b16 %v963
      %v1575 = vunpack.c.l.b16 %v964
      %v1576 = vunpack.c.l.b16 %v965
      %v1577 = vunpack.c.l.b16 %v966
      %v1578 = vunpack.c.l.b16 %v967
      %v1579 = vunpack.c.l.b16 %v968
      %v1580 = vunpack.c.l.b16 %v969
      %v1581 = vunpack.c.l.b16 %v970
      %v1582 = vunpack.c.l.b16 %v971
      %v1583 = vunpack.c.l.b16 %v972
      %v1584 = vpack.c.b16 %v1537, %v1536
      %v1585 = vpack.c.b16 %v1539, %v1538
      %v1586 = vpack.c.b16 %v1541, %v1540
      %v1587 = vpack.c.b16 %v1543, %v1542
      %v1588 = vpack.c.b16 %v1545, %v1544
      %v1589 = vpack.c.b16 %v1547, %v1546
      %v1590 = vpack.c.b16 %v1549, %v1548
      %v1591 = vpack.c.b16 %v1551, %v1550
      %v1592 = vpack.c.b16 %v1553, %v1552
      %v1593 = vpack.c.b16 %v1555, %v1554
      %v1594 = vpack.c.b16 %v1557, %v1556
      %v1595 = vpack.c.b16 %v1559, %v1558
      %v1596 = vpack.c.b16 %v1561, %v1560
      %v1597 = vpack.c.b16 %v1563, %v1562
      %v1598 = vpack.c.b16 %v1565, %v1564
      %v1599 = vpack.c.b16 %v1567, %v1566
      %v1600 = vpack.c.b16 %v1569, %v1568
      %v1601 = vpack.c.b16 %v1571, %v1570
      %v1602 = vpack.c.b16 %v1573, %v1572
      %v1603 = vpack.c.b16 %v1575, %v1574
      %v1604 = vpack.c.b16 %v1577, %v1576
      %v1605 = vpack.c.b16 %v1579, %v1578
      %v1606 = vpack.c.b16 %v1581, %v1580
      %v1607 = vpack.c.b16 %v1583, %v1582
      %1632 = vmatprep.subr.bf16.mxu0 0
      %1633 = vmatpush1.bf16.msra.mxu0 %v1584
      %1634 = vmatprep.subr.bf16.mxu0 0
      %1635 = vmatpush1.bf16.msra.mxu0 %v1585
      %1636 = vmatprep.subr.bf16.mxu0 0
      %1637 = vmatpush1.bf16.msra.mxu0 %v1586
      %1638 = vmatprep.subr.bf16.mxu0 0
      %1639 = vmatpush1.bf16.msra.mxu0 %v1587
      %1640 = vmatprep.subr.bf16.mxu0 0
      %1641 = vmatpush1.bf16.msra.mxu0 %v1588
      %1642 = vmatprep.subr.bf16.mxu0 0
      %1643 = vmatpush1.bf16.msra.mxu0 %v1589
      %1644 = vmatprep.subr.bf16.mxu0 0
      %1645 = vmatpush1.bf16.msra.mxu0 %v1590
      %1646 = vmatprep.subr.bf16.mxu0 0
      %1647 = vmatpush1.bf16.msra.mxu0 %v1591
      %1648 = vmatprep.subr.bf16.mxu0 0
      %1649 = vmatpush1.bf16.msra.mxu0 %v1592
      %1650 = vmatprep.subr.bf16.mxu0 0
      %1651 = vmatpush1.bf16.msra.mxu0 %v1593
      %1652 = vmatprep.subr.bf16.mxu0 0
      %1653 = vmatpush1.bf16.msra.mxu0 %v1594
      %1654 = vmatprep.subr.bf16.mxu0 0
      %1655 = vmatpush1.bf16.msra.mxu0 %v1595
      %1656 = vmatprep.subr.bf16.mxu0 0
      %1657 = vmatpush1.bf16.msra.mxu0 %v1596
      %1658 = vmatprep.subr.bf16.mxu0 0
      %1659 = vmatpush1.bf16.msra.mxu0 %v1597
      %1660 = vmatprep.subr.bf16.mxu0 0
      %1661 = vmatpush1.bf16.msra.mxu0 %v1598
      %1662 = vmatprep.subr.bf16.mxu0 0
      %1663 = vmatpush1.bf16.msra.mxu0 %v1599
      %1664 = vmatprep.mubr.bf16.mxu0 %v614
      %1665 = vmatmul.mubr.bf16.gmra.mrb[0].mxu0 0
      %v1666 = vpop.f32.mrb[0].mxu0
      %v1667 = vadd.f32 %v1362, %v1666
      %v1668 = vpop.f32.mrb[0].mxu0
      %v1669 = vpop.f32.mrb[0].mxu0
      %v1670 = vadd.f32 %v1365, %v1669
      %v1671 = vpop.f32.mrb[0].mxu0
      %1672 = vmatprep.mubr.bf16.mxu0 %v626
      %1673 = vmatmul.mubr.bf16.gmra.mrb[0].mxu0 %v574
      %v1674 = vpop.f32.mrb[0].mxu0
      %v1675 = vadd.f32 %v1370, %v1674
      %v1676 = vpop.f32.mrb[0].mxu0
      %v1677 = vpop.f32.mrb[0].mxu0
      %v1678 = vadd.f32 %v1373, %v1677
      %v1679 = vpop.f32.mrb[0].mxu0
      %1680 = vmatprep.mubr.bf16.mxu0 %v638
      %1681 = vmatmul.mubr.bf16.gmra.mrb[0].mxu0 %v575
      %v1682 = vpop.f32.mrb[0].mxu0
      %v1683 = vadd.f32 %v1378, %v1682
      %v1684 = vpop.f32.mrb[0].mxu0
      %v1685 = vpop.f32.mrb[0].mxu0
      %v1686 = vadd.f32 %v1381, %v1685
      %v1687 = vpop.f32.mrb[0].mxu0
      %1688 = vmatprep.mubr.bf16.mxu0 %v650
      %1689 = vmatmul.mubr.bf16.gmra.mrb[0].mxu0 %v576
      %v1690 = vpop.f32.mrb[0].mxu0
      %v1691 = vadd.f32 %v1386, %v1690
      %v1692 = vpop.f32.mrb[0].mxu0
      %v1693 = vpop.f32.mrb[0].mxu0
      %v1694 = vadd.f32 %v1389, %v1693
      %v1695 = vpop.f32.mrb[0].mxu0
      %1696 = vmatprep.mubr.bf16.mxu0 %v662
      %1697 = vmatmul.mubr.bf16.gmra.mrb[0].mxu0 %v577
      %v1698 = vpop.f32.mrb[0].mxu0
      %v1699 = vadd.f32 %v1394, %v1698
      %v1700 = vpop.f32.mrb[0].mxu0
      %v1701 = vpop.f32.mrb[0].mxu0
      %v1702 = vadd.f32 %v1397, %v1701
      %v1703 = vpop.f32.mrb[0].mxu0
      %1704 = vmatprep.mubr.bf16.mxu0 %v674
      %1705 = vmatmul.mubr.bf16.gmra.mrb[0].mxu0 %v578
      %v1706 = vpop.f32.mrb[0].mxu0
      %v1707 = vadd.f32 %v1402, %v1706
      %v1708 = vpop.f32.mrb[0].mxu0
      %v1709 = vpop.f32.mrb[0].mxu0
      %v1710 = vadd.f32 %v1405, %v1709
      %v1711 = vpop.f32.mrb[0].mxu0
      %1712 = vmatprep.mubr.bf16.mxu0 %v686
      %1713 = vmatmul.mubr.bf16.gmra.mrb[0].mxu0 %v579
      %v1714 = vpop.f32.mrb[0].mxu0
      %v1715 = vadd.f32 %v1410, %v1714
      %v1716 = vpop.f32.mrb[0].mxu0
      %v1717 = vpop.f32.mrb[0].mxu0
      %v1718 = vadd.f32 %v1413, %v1717
      %v1719 = vpop.f32.mrb[0].mxu0
      %1720 = vmatprep.mubr.bf16.mxu0 %v698
      %1721 = vmatmul.mubr.bf16.gmra.mrb[0].mxu0 %v580
      %v1722 = vpop.f32.mrb[0].mxu0
      %v1723 = vadd.f32 %v1418, %v1722
      %v1724 = vpop.f32.mrb[0].mxu0
      %v1725 = vpop.f32.mrb[0].mxu0
      %v1726 = vadd.f32 %v1421, %v1725
      %v1727 = vpop.f32.mrb[0].mxu0
      %1728 = vmatprep.mubr.bf16.mxu0 %v710
      %1729 = vmatmul.mubr.bf16.gmra.mrb[0].mxu0 %v581
      %v1730 = vpop.f32.mrb[0].mxu0
      %v1731 = vadd.f32 %v1426, %v1730
      %v1732 = vpop.f32.mrb[0].mxu0
      %v1733 = vpop.f32.mrb[0].mxu0
      %v1734 = vadd.f32 %v1429, %v1733
      %v1735 = vpop.f32.mrb[0].mxu0
      %1736 = vmatprep.mubr.bf16.mxu0 %v722
      %1737 = vmatmul.mubr.bf16.gmra.mrb[0].mxu0 %v582
      %v1738 = vpop.f32.mrb[0].mxu0
      %v1739 = vadd.f32 %v1434, %v1738
      %v1740 = vpop.f32.mrb[0].mxu0
      %v1741 = vpop.f32.mrb[0].mxu0
      %v1742 = vadd.f32 %v1437, %v1741
      %v1743 = vpop.f32.mrb[0].mxu0
      %1744 = vmatprep.mubr.bf16.mxu0 %v734
      %1745 = vmatmul.mubr.bf16.gmra.mrb[0].mxu0 %v583
      %v1746 = vpop.f32.mrb[0].mxu0
      %v1747 = vadd.f32 %v1442, %v1746
      %v1748 = vpop.f32.mrb[0].mxu0
      %v1749 = vpop.f32.mrb[0].mxu0
      %v1750 = vadd.f32 %v1445, %v1749
      %v1751 = vpop.f32.mrb[0].mxu0
      %1752 = vmatprep.mubr.bf16.mxu0 %v746
      %1753 = vmatmul.mubr.bf16.gmra.mrb[0].mxu0 %v584
      %v1754 = vpop.f32.mrb[0].mxu0
      %v1755 = vadd.f32 %v1450, %v1754
      %v1756 = vpop.f32.mrb[0].mxu0
      %v1757 = vpop.f32.mrb[0].mxu0
      %v1758 = vadd.f32 %v1453, %v1757
      %v1759 = vpop.f32.mrb[0].mxu0
      %1760 = vmatprep.mubr.bf16.mxu0 %v758
      %1761 = vmatmul.mubr.bf16.gmra.mrb[0].mxu0 %v585
      %v1762 = vpop.f32.mrb[0].mxu0
      %v1763 = vadd.f32 %v1458, %v1762
      %v1764 = vpop.f32.mrb[0].mxu0
      %v1765 = vpop.f32.mrb[0].mxu0
      %v1766 = vadd.f32 %v1461, %v1765
      %v1767 = vpop.f32.mrb[0].mxu0
      %1768 = vmatprep.mubr.bf16.mxu0 %v770
      %1769 = vmatmul.mubr.bf16.gmra.mrb[0].mxu0 %v586
      %v1770 = vpop.f32.mrb[0].mxu0
      %v1771 = vadd.f32 %v1466, %v1770
      %v1772 = vpop.f32.mrb[0].mxu0
      %v1773 = vpop.f32.mrb[0].mxu0
      %v1774 = vadd.f32 %v1469, %v1773
      %v1775 = vpop.f32.mrb[0].mxu0
      %1776 = vmatprep.mubr.bf16.mxu0 %v782
      %1777 = vmatmul.mubr.bf16.gmra.mrb[0].mxu0 %v587
      %v1778 = vpop.f32.mrb[0].mxu0
      %v1779 = vadd.f32 %v1474, %v1778
      %v1780 = vpop.f32.mrb[0].mxu0
      %v1781 = vpop.f32.mrb[0].mxu0
      %v1782 = vadd.f32 %v1477, %v1781
      %v1783 = vpop.f32.mrb[0].mxu0
      %1784 = vmatprep.mubr.bf16.mxu0 %v794
      %1785 = vmatmul.mubr.bf16.gmra.mrb[0].mxu0 %v588
      %v1786 = vpop.f32.mrb[0].mxu0
      %v1787 = vadd.f32 %v1482, %v1786
      %v1788 = vpop.f32.mrb[0].mxu0
      %v1789 = vpop.f32.mrb[0].mxu0
      %v1790 = vadd.f32 %v1485, %v1789
      %v1791 = vpop.f32.mrb[0].mxu0
      %1792 = vdwg.mxu0
      %1793 = vmatprep.subr.bf16.mxu0 0
      %1794 = vmatpush1.bf16.msra.mxu0 %v1600
      %1795 = vmatprep.subr.bf16.mxu0 0
      %1796 = vmatpush1.bf16.msra.mxu0 %v1601
      %1797 = vmatprep.subr.bf16.mxu0 0
      %1798 = vmatpush1.bf16.msra.mxu0 %v1602
      %1799 = vmatprep.subr.bf16.mxu0 0
      %1800 = vmatpush1.bf16.msra.mxu0 %v1603
      %1801 = vmatprep.subr.bf16.mxu0 0
      %1802 = vmatpush1.bf16.msra.mxu0 %v1604
      %1803 = vmatprep.subr.bf16.mxu0 0
      %1804 = vmatpush1.bf16.msra.mxu0 %v1605
      %1805 = vmatprep.subr.bf16.mxu0 0
      %1806 = vmatpush1.bf16.msra.mxu0 %v1606
      %1807 = vmatprep.subr.bf16.mxu0 0
      %1808 = vmatpush1.bf16.msra.mxu0 %v1607
      %1809 = vmatprep.subr.bf16.mxu0 0
      %1810 = vmatpush1.bf16.msra.mxu0 0
      %1811 = vmatprep.subr.bf16.mxu0 0
      %1812 = vmatpush1.bf16.msra.mxu0 0
      %1813 = vmatprep.subr.bf16.mxu0 0
      %1814 = vmatpush1.bf16.msra.mxu0 0
      %1815 = vmatprep.subr.bf16.mxu0 0
      %1816 = vmatpush1.bf16.msra.mxu0 0
      %1817 = vmatprep.subr.bf16.mxu0 0
      %1818 = vmatpush1.bf16.msra.mxu0 0
      %1819 = vmatprep.subr.bf16.mxu0 0
      %1820 = vmatpush1.bf16.msra.mxu0 0
      %1821 = vmatprep.subr.bf16.mxu0 0
      %1822 = vmatpush1.bf16.msra.mxu0 0
      %1823 = vmatprep.subr.bf16.mxu0 0
      %1824 = vmatpush1.bf16.msra.mxu0 0
      %1825 = vmatprep.mubr.bf16.mxu0 0
      %1826 = vmatmul.mubr.bf16.gmra.mrb[0].mxu0 %v859
      %v1827 = vpop.f32.mrb[0].mxu0
      %v1828 = vadd.f32 %v1667, %v1827
      %v1829 = vpop.f32.mrb[0].mxu0
      %v1830 = vpop.f32.mrb[0].mxu0
      %v1831 = vadd.f32 %v1670, %v1830
      %v1832 = vpop.f32.mrb[0].mxu0
      %1833 = vmatprep.mubr.bf16.mxu0 0
      %1834 = vmatmul.mubr.bf16.gmra.mrb[0].mxu0 %v862
      %v1835 = vpop.f32.mrb[0].mxu0
      %v1836 = vadd.f32 %v1675, %v1835
      %v1837 = vpop.f32.mrb[0].mxu0
      %v1838 = vpop.f32.mrb[0].mxu0
      %v1839 = vadd.f32 %v1678, %v1838
      %v1840 = vpop.f32.mrb[0].mxu0
      %1841 = vmatprep.mubr.bf16.mxu0 0
      %1842 = vmatmul.mubr.bf16.gmra.mrb[0].mxu0 %v865
      %v1843 = vpop.f32.mrb[0].mxu0
      %v1844 = vadd.f32 %v1683, %v1843
      %v1845 = vpop.f32.mrb[0].mxu0
      %v1846 = vpop.f32.mrb[0].mxu0
      %v1847 = vadd.f32 %v1686, %v1846
      %v1848 = vpop.f32.mrb[0].mxu0
      %1849 = vmatprep.mubr.bf16.mxu0 0
      %1850 = vmatmul.mubr.bf16.gmra.mrb[0].mxu0 %v868
      %v1851 = vpop.f32.mrb[0].mxu0
      %v1852 = vadd.f32 %v1691, %v1851
      %v1853 = vpop.f32.mrb[0].mxu0
      %v1854 = vpop.f32.mrb[0].mxu0
      %v1855 = vadd.f32 %v1694, %v1854
      %v1856 = vpop.f32.mrb[0].mxu0
      %1857 = vmatprep.mubr.bf16.mxu0 0
      %1858 = vmatmul.mubr.bf16.gmra.mrb[0].mxu0 %v871
      %v1859 = vpop.f32.mrb[0].mxu0
      %v1860 = vadd.f32 %v1699, %v1859
      %v1861 = vpop.f32.mrb[0].mxu0
      %v1862 = vpop.f32.mrb[0].mxu0
      %v1863 = vadd.f32 %v1702, %v1862
      %v1864 = vpop.f32.mrb[0].mxu0
      %1865 = vmatprep.mubr.bf16.mxu0 0
      %1866 = vmatmul.mubr.bf16.gmra.mrb[0].mxu0 %v874
      %v1867 = vpop.f32.mrb[0].mxu0
      %v1868 = vadd.f32 %v1707, %v1867
      %v1869 = vpop.f32.mrb[0].mxu0
      %v1870 = vpop.f32.mrb[0].mxu0
      %v1871 = vadd.f32 %v1710, %v1870
      %v1872 = vpop.f32.mrb[0].mxu0
      %1873 = vmatprep.mubr.bf16.mxu0 0
      %1874 = vmatmul.mubr.bf16.gmra.mrb[0].mxu0 %v877
      %v1875 = vpop.f32.mrb[0].mxu0
      %v1876 = vadd.f32 %v1715, %v1875
      %v1877 = vpop.f32.mrb[0].mxu0
      %v1878 = vpop.f32.mrb[0].mxu0
      %v1879 = vadd.f32 %v1718, %v1878
      %v1880 = vpop.f32.mrb[0].mxu0
      %1881 = vmatprep.mubr.bf16.mxu0 0
      %1882 = vmatmul.mubr.bf16.gmra.mrb[0].mxu0 %v880
      %v1883 = vpop.f32.mrb[0].mxu0
      %v1884 = vadd.f32 %v1723, %v1883
      %v1885 = vpop.f32.mrb[0].mxu0
      %v1886 = vpop.f32.mrb[0].mxu0
      %v1887 = vadd.f32 %v1726, %v1886
      %v1888 = vpop.f32.mrb[0].mxu0
      %1889 = vmatprep.mubr.bf16.mxu0 0
      %1890 = vmatmul.mubr.bf16.gmra.mrb[0].mxu0 %v883
      %v1891 = vpop.f32.mrb[0].mxu0
      %v1892 = vadd.f32 %v1731, %v1891
      %v1893 = vpop.f32.mrb[0].mxu0
      %v1894 = vpop.f32.mrb[0].mxu0
      %v1895 = vadd.f32 %v1734, %v1894
      %v1896 = vpop.f32.mrb[0].mxu0
      %1897 = vmatprep.mubr.bf16.mxu0 0
      %1898 = vmatmul.mubr.bf16.gmra.mrb[0].mxu0 %v886
      %v1899 = vpop.f32.mrb[0].mxu0
      %v1900 = vadd.f32 %v1739, %v1899
      %v1901 = vpop.f32.mrb[0].mxu0
      %v1902 = vpop.f32.mrb[0].mxu0
      %v1903 = vadd.f32 %v1742, %v1902
      %v1904 = vpop.f32.mrb[0].mxu0
      %1905 = vmatprep.mubr.bf16.mxu0 0
      %1906 = vmatmul.mubr.bf16.gmra.mrb[0].mxu0 %v889
      %v1907 = vpop.f32.mrb[0].mxu0
      %v1908 = vadd.f32 %v1747, %v1907
      %v1909 = vpop.f32.mrb[0].mxu0
      %v1910 = vpop.f32.mrb[0].mxu0
      %v1911 = vadd.f32 %v1750, %v1910
      %v1912 = vpop.f32.mrb[0].mxu0
      %1913 = vmatprep.mubr.bf16.mxu0 0
      %1914 = vmatmul.mubr.bf16.gmra.mrb[0].mxu0 %v892
      %v1915 = vpop.f32.mrb[0].mxu0
      %v1916 = vadd.f32 %v1755, %v1915
      %v1917 = vpop.f32.mrb[0].mxu0
      %v1918 = vpop.f32.mrb[0].mxu0
      %v1919 = vadd.f32 %v1758, %v1918
      %v1920 = vpop.f32.mrb[0].mxu0
      %1921 = vmatprep.mubr.bf16.mxu0 0
      %1922 = vmatmul.mubr.bf16.gmra.mrb[0].mxu0 %v895
      %v1923 = vpop.f32.mrb[0].mxu0
      %v1924 = vadd.f32 %v1763, %v1923
      %v1925 = vpop.f32.mrb[0].mxu0
      %v1926 = vpop.f32.mrb[0].mxu0
      %v1927 = vadd.f32 %v1766, %v1926
      %v1928 = vpop.f32.mrb[0].mxu0
      %1929 = vmatprep.mubr.bf16.mxu0 0
      %1930 = vmatmul.mubr.bf16.gmra.mrb[0].mxu0 %v898
      %v1931 = vpop.f32.mrb[0].mxu0
      %v1932 = vadd.f32 %v1771, %v1931
      %v1933 = vpop.f32.mrb[0].mxu0
      %v1934 = vpop.f32.mrb[0].mxu0
      %v1935 = vadd.f32 %v1774, %v1934
      %v1936 = vpop.f32.mrb[0].mxu0
      %1937 = vmatprep.mubr.bf16.mxu0 0
      %1938 = vmatmul.mubr.bf16.gmra.mrb[0].mxu0 %v901
      %v1939 = vpop.f32.mrb[0].mxu0
      %v1940 = vadd.f32 %v1779, %v1939
      %v1941 = vpop.f32.mrb[0].mxu0
      %v1942 = vpop.f32.mrb[0].mxu0
      %v1943 = vadd.f32 %v1782, %v1942
      %v1944 = vpop.f32.mrb[0].mxu0
      %1945 = vmatprep.mubr.bf16.mxu0 0
      %1946 = vmatmul.mubr.bf16.gmra.mrb[0].mxu0 %v904
      %v1947 = vpop.f32.mrb[0].mxu0
      %v1948 = vadd.f32 %v1787, %v1947
      %v1949 = vpop.f32.mrb[0].mxu0
      %v1950 = vpop.f32.mrb[0].mxu0
      %v1951 = vadd.f32 %v1790, %v1950
      %v1952 = vpop.f32.mrb[0].mxu0
      %1953 = vdwg.mxu0
      %s1954 = scalar_lea.vmem %s3, 384
      %v1955 = vld [vmem:[%s1954] sm:$0xf]
      %v1956 = vld [vmem:[%s1954 + $0x4] sm:$0xf]
      %v1957 = vld [vmem:[%s1954 + $0x8] sm:$0xf]
      %v1958 = vld [vmem:[%s1954 + $0xc] sm:$0xf]
      %v1959 = vld [vmem:[%s1954 + $0x10] sm:$0xf]
      %v1960 = vld [vmem:[%s1954 + $0x14] sm:$0xf]
      %v1961 = vld [vmem:[%s1954 + $0x18] sm:$0xf]
      %v1962 = vld [vmem:[%s1954 + $0x1c] sm:$0xf]
      %v1963 = vld [vmem:[%s1954 + $0x20] sm:$0xf]
      %v1964 = vld [vmem:[%s1954 + $0x24] sm:$0xf]
      %v1965 = vld [vmem:[%s1954 + $0x28] sm:$0xf]
      %v1966 = vld [vmem:[%s1954 + $0x2c] sm:$0xf]
      %v1967 = vld [vmem:[%s1954 + $0x30] sm:$0xf]
      %v1968 = vld [vmem:[%s1954 + $0x34] sm:$0xf]
      %v1969 = vld [vmem:[%s1954 + $0x38] sm:$0xf]
      %v1970 = vld [vmem:[%s1954 + $0x3c] sm:$0xf]
      %v1971 = vld [vmem:[%s1954 + $0x40] sm:$0xf]
      %v1972 = vld [vmem:[%s1954 + $0x44] sm:$0xf]
      %v1973 = vld [vmem:[%s1954 + $0x48] sm:$0xf]
      %v1974 = vld [vmem:[%s1954 + $0x4c] sm:$0xf]
      %v1975 = vld [vmem:[%s1954 + $0x50] sm:$0xf]
      %v1976 = vld [vmem:[%s1954 + $0x54] sm:$0xf]
      %v1977 = vld [vmem:[%s1954 + $0x58] sm:$0xf]
      %v1978 = vld [vmem:[%s1954 + $0x5c] sm:$0xf]
      %v1979 = vld [vmem:[%s1954 + $0x60] sm:$0xf]
      %v1980 = vld [vmem:[%s1954 + $0x64] sm:$0xf]
      %v1981 = vld [vmem:[%s1954 + $0x68] sm:$0xf]
      %v1982 = vld [vmem:[%s1954 + $0x6c] sm:$0xf]
      %v1983 = vld [vmem:[%s1954 + $0x70] sm:$0xf]
      %v1984 = vld [vmem:[%s1954 + $0x74] sm:$0xf]
      %v1985 = vld [vmem:[%s1954 + $0x78] sm:$0xf]
      %v1986 = vld [vmem:[%s1954 + $0x7c] sm:$0xf]
      %v1987 = vld [vmem:[%s1954 + $0x80] sm:$0xf]
      %v1988 = vld [vmem:[%s1954 + $0x84] sm:$0xf]
      %v1989 = vld [vmem:[%s1954 + $0x88] sm:$0xf]
      %v1990 = vld [vmem:[%s1954 + $0x8c] sm:$0xf]
      %v1991 = vld [vmem:[%s1954 + $0x90] sm:$0xf]
      %v1992 = vld [vmem:[%s1954 + $0x94] sm:$0xf]
      %v1993 = vld [vmem:[%s1954 + $0x98] sm:$0xf]
      %v1994 = vld [vmem:[%s1954 + $0x9c] sm:$0xf]
      %v1995 = vld [vmem:[%s1954 + $0xa0] sm:$0xf]
      %v1996 = vld [vmem:[%s1954 + $0xa4] sm:$0xf]
      %v1997 = vld [vmem:[%s1954 + $0xa8] sm:$0xf]
      %v1998 = vld [vmem:[%s1954 + $0xac] sm:$0xf]
      %v1999 = vld [vmem:[%s1954 + $0xb0] sm:$0xf]
      %v2000 = vld [vmem:[%s1954 + $0xb4] sm:$0xf]
      %v2001 = vld [vmem:[%s1954 + $0xb8] sm:$0xf]
      %v2002 = vld [vmem:[%s1954 + $0xbc] sm:$0xf]
      %v2051 = vunpack.c.l.b16 %v1955
      %v2052 = vunpack.c.l.b16 %v1956
      %v2053 = vunpack.c.l.b16 %v1957
      %v2054 = vunpack.c.l.b16 %v1958
      %v2055 = vunpack.c.l.b16 %v1959
      %v2056 = vunpack.c.l.b16 %v1960
      %v2057 = vunpack.c.l.b16 %v1961
      %v2058 = vunpack.c.l.b16 %v1962
      %v2059 = vunpack.c.l.b16 %v1963
      %v2060 = vunpack.c.l.b16 %v1964
      %v2061 = vunpack.c.l.b16 %v1965
      %v2062 = vunpack.c.l.b16 %v1966
      %v2063 = vunpack.c.l.b16 %v1967
      %v2064 = vunpack.c.l.b16 %v1968
      %v2065 = vunpack.c.l.b16 %v1969
      %v2066 = vunpack.c.l.b16 %v1970
      %v2067 = vunpack.c.l.b16 %v1971
      %v2068 = vunpack.c.l.b16 %v1972
      %v2069 = vunpack.c.l.b16 %v1973
      %v2070 = vunpack.c.l.b16 %v1974
      %v2071 = vunpack.c.l.b16 %v1975
      %v2072 = vunpack.c.l.b16 %v1976
      %v2073 = vunpack.c.l.b16 %v1977
      %v2074 = vunpack.c.l.b16 %v1978
      %v2075 = vunpack.c.l.b16 %v1979
      %v2076 = vunpack.c.l.b16 %v1980
      %v2077 = vunpack.c.l.b16 %v1981
      %v2078 = vunpack.c.l.b16 %v1982
      %v2079 = vunpack.c.l.b16 %v1983
      %v2080 = vunpack.c.l.b16 %v1984
      %v2081 = vunpack.c.l.b16 %v1985
      %v2082 = vunpack.c.l.b16 %v1986
      %v2083 = vunpack.c.l.b16 %v1987
      %v2084 = vunpack.c.l.b16 %v1988
      %v2085 = vunpack.c.l.b16 %v1989
      %v2086 = vunpack.c.l.b16 %v1990
      %v2087 = vunpack.c.l.b16 %v1991
      %v2088 = vunpack.c.l.b16 %v1992
      %v2089 = vunpack.c.l.b16 %v1993
      %v2090 = vunpack.c.l.b16 %v1994
      %v2091 = vunpack.c.l.b16 %v1995
      %v2092 = vunpack.c.l.b16 %v1996
      %v2093 = vunpack.c.l.b16 %v1997
      %v2094 = vunpack.c.l.b16 %v1998
      %v2095 = vunpack.c.l.b16 %v1999
      %v2096 = vunpack.c.l.b16 %v2000
      %v2097 = vunpack.c.l.b16 %v2001
      %v2098 = vunpack.c.l.b16 %v2002
      %v2099 = vpack.c.b16 %v2052, %v2051
      %v2100 = vpack.c.b16 %v2054, %v2053
      %v2101 = vpack.c.b16 %v2056, %v2055
      %v2102 = vpack.c.b16 %v2058, %v2057
      %v2103 = vpack.c.b16 %v2060, %v2059
      %v2104 = vpack.c.b16 %v2062, %v2061
      %v2105 = vpack.c.b16 %v2064, %v2063
      %v2106 = vpack.c.b16 %v2066, %v2065
      %v2107 = vpack.c.b16 %v2068, %v2067
      %v2108 = vpack.c.b16 %v2070, %v2069
      %v2109 = vpack.c.b16 %v2072, %v2071
      %v2110 = vpack.c.b16 %v2074, %v2073
      %v2111 = vpack.c.b16 %v2076, %v2075
      %v2112 = vpack.c.b16 %v2078, %v2077
      %v2113 = vpack.c.b16 %v2080, %v2079
      %v2114 = vpack.c.b16 %v2082, %v2081
      %v2115 = vpack.c.b16 %v2084, %v2083
      %v2116 = vpack.c.b16 %v2086, %v2085
      %v2117 = vpack.c.b16 %v2088, %v2087
      %v2118 = vpack.c.b16 %v2090, %v2089
      %v2119 = vpack.c.b16 %v2092, %v2091
      %v2120 = vpack.c.b16 %v2094, %v2093
      %v2121 = vpack.c.b16 %v2096, %v2095
      %v2122 = vpack.c.b16 %v2098, %v2097
      %2147 = vmatprep.subr.bf16.mxu0 0
      %2148 = vmatpush1.bf16.msra.mxu0 %v2099
      %2149 = vmatprep.subr.bf16.mxu0 0
      %2150 = vmatpush1.bf16.msra.mxu0 %v2100
      %2151 = vmatprep.subr.bf16.mxu0 0
      %2152 = vmatpush1.bf16.msra.mxu0 %v2101
      %2153 = vmatprep.subr.bf16.mxu0 0
      %2154 = vmatpush1.bf16.msra.mxu0 %v2102
      %2155 = vmatprep.subr.bf16.mxu0 0
      %2156 = vmatpush1.bf16.msra.mxu0 %v2103
      %2157 = vmatprep.subr.bf16.mxu0 0
      %2158 = vmatpush1.bf16.msra.mxu0 %v2104
      %2159 = vmatprep.subr.bf16.mxu0 0
      %2160 = vmatpush1.bf16.msra.mxu0 %v2105
      %2161 = vmatprep.subr.bf16.mxu0 0
      %2162 = vmatpush1.bf16.msra.mxu0 %v2106
      %2163 = vmatprep.subr.bf16.mxu0 0
      %2164 = vmatpush1.bf16.msra.mxu0 %v2107
      %2165 = vmatprep.subr.bf16.mxu0 0
      %2166 = vmatpush1.bf16.msra.mxu0 %v2108
      %2167 = vmatprep.subr.bf16.mxu0 0
      %2168 = vmatpush1.bf16.msra.mxu0 %v2109
      %2169 = vmatprep.subr.bf16.mxu0 0
      %2170 = vmatpush1.bf16.msra.mxu0 %v2110
      %2171 = vmatprep.subr.bf16.mxu0 0
      %2172 = vmatpush1.bf16.msra.mxu0 %v2111
      %2173 = vmatprep.subr.bf16.mxu0 0
      %2174 = vmatpush1.bf16.msra.mxu0 %v2112
      %2175 = vmatprep.subr.bf16.mxu0 0
      %2176 = vmatpush1.bf16.msra.mxu0 %v2113
      %2177 = vmatprep.subr.bf16.mxu0 0
      %2178 = vmatpush1.bf16.msra.mxu0 %v2114
      %2179 = vmatprep.mubr.bf16.mxu0 %v638
      %2180 = vmatmul.mubr.bf16.gmra.mrb[0].mxu0 %v575
      %v2181 = vpop.f32.mrb[0].mxu0
      %v2182 = vadd.f32 0.0, %v2181
      %v2183 = vpop.f32.mrb[0].mxu0
      %v2184 = vpop.f32.mrb[0].mxu0
      %v2185 = vadd.f32 0.0, %v2184
      %v2186 = vpop.f32.mrb[0].mxu0
      %2187 = vmatprep.mubr.bf16.mxu0 %v650
      %2188 = vmatmul.mubr.bf16.gmra.mrb[0].mxu0 %v576
      %v2189 = vpop.f32.mrb[0].mxu0
      %v2190 = vadd.f32 0.0, %v2189
      %v2191 = vpop.f32.mrb[0].mxu0
      %v2192 = vpop.f32.mrb[0].mxu0
      %v2193 = vadd.f32 0.0, %v2192
      %v2194 = vpop.f32.mrb[0].mxu0
      %2195 = vmatprep.mubr.bf16.mxu0 %v662
      %2196 = vmatmul.mubr.bf16.gmra.mrb[0].mxu0 %v577
      %v2197 = vpop.f32.mrb[0].mxu0
      %v2198 = vadd.f32 0.0, %v2197
      %v2199 = vpop.f32.mrb[0].mxu0
      %v2200 = vpop.f32.mrb[0].mxu0
      %v2201 = vadd.f32 0.0, %v2200
      %v2202 = vpop.f32.mrb[0].mxu0
      %2203 = vmatprep.mubr.bf16.mxu0 %v674
      %2204 = vmatmul.mubr.bf16.gmra.mrb[0].mxu0 %v578
      %v2205 = vpop.f32.mrb[0].mxu0
      %v2206 = vadd.f32 0.0, %v2205
      %v2207 = vpop.f32.mrb[0].mxu0
      %v2208 = vpop.f32.mrb[0].mxu0
      %v2209 = vadd.f32 0.0, %v2208
      %v2210 = vpop.f32.mrb[0].mxu0
      %2211 = vmatprep.mubr.bf16.mxu0 %v686
      %2212 = vmatmul.mubr.bf16.gmra.mrb[0].mxu0 %v579
      %v2213 = vpop.f32.mrb[0].mxu0
      %v2214 = vadd.f32 0.0, %v2213
      %v2215 = vpop.f32.mrb[0].mxu0
      %v2216 = vpop.f32.mrb[0].mxu0
      %v2217 = vadd.f32 0.0, %v2216
      %v2218 = vpop.f32.mrb[0].mxu0
      %2219 = vmatprep.mubr.bf16.mxu0 %v698
      %2220 = vmatmul.mubr.bf16.gmra.mrb[0].mxu0 %v580
      %v2221 = vpop.f32.mrb[0].mxu0
      %v2222 = vadd.f32 0.0, %v2221
      %v2223 = vpop.f32.mrb[0].mxu0
      %v2224 = vpop.f32.mrb[0].mxu0
      %v2225 = vadd.f32 0.0, %v2224
      %v2226 = vpop.f32.mrb[0].mxu0
      %2227 = vmatprep.mubr.bf16.mxu0 %v710
      %2228 = vmatmul.mubr.bf16.gmra.mrb[0].mxu0 %v581
      %v2229 = vpop.f32.mrb[0].mxu0
      %v2230 = vadd.f32 0.0, %v2229
      %v2231 = vpop.f32.mrb[0].mxu0
      %v2232 = vpop.f32.mrb[0].mxu0
      %v2233 = vadd.f32 0.0, %v2232
      %v2234 = vpop.f32.mrb[0].mxu0
      %2235 = vmatprep.mubr.bf16.mxu0 %v722
      %2236 = vmatmul.mubr.bf16.gmra.mrb[0].mxu0 %v582
      %v2237 = vpop.f32.mrb[0].mxu0
      %v2238 = vadd.f32 0.0, %v2237
      %v2239 = vpop.f32.mrb[0].mxu0
      %v2240 = vpop.f32.mrb[0].mxu0
      %v2241 = vadd.f32 0.0, %v2240
      %v2242 = vpop.f32.mrb[0].mxu0
      %2243 = vmatprep.mubr.bf16.mxu0 %v734
      %2244 = vmatmul.mubr.bf16.gmra.mrb[0].mxu0 %v583
      %v2245 = vpop.f32.mrb[0].mxu0
      %v2246 = vadd.f32 0.0, %v2245
      %v2247 = vpop.f32.mrb[0].mxu0
      %v2248 = vpop.f32.mrb[0].mxu0
      %v2249 = vadd.f32 0.0, %v2248
      %v2250 = vpop.f32.mrb[0].mxu0
      %2251 = vmatprep.mubr.bf16.mxu0 %v746
      %2252 = vmatmul.mubr.bf16.gmra.mrb[0].mxu0 %v584
      %v2253 = vpop.f32.mrb[0].mxu0
      %v2254 = vadd.f32 0.0, %v2253
      %v2255 = vpop.f32.mrb[0].mxu0
      %v2256 = vpop.f32.mrb[0].mxu0
      %v2257 = vadd.f32 0.0, %v2256
      %v2258 = vpop.f32.mrb[0].mxu0
      %2259 = vmatprep.mubr.bf16.mxu0 %v758
      %2260 = vmatmul.mubr.bf16.gmra.mrb[0].mxu0 %v585
      %v2261 = vpop.f32.mrb[0].mxu0
      %v2262 = vadd.f32 0.0, %v2261
      %v2263 = vpop.f32.mrb[0].mxu0
      %v2264 = vpop.f32.mrb[0].mxu0
      %v2265 = vadd.f32 0.0, %v2264
      %v2266 = vpop.f32.mrb[0].mxu0
      %2267 = vmatprep.mubr.bf16.mxu0 %v770
      %2268 = vmatmul.mubr.bf16.gmra.mrb[0].mxu0 %v586
      %v2269 = vpop.f32.mrb[0].mxu0
      %v2270 = vadd.f32 0.0, %v2269
      %v2271 = vpop.f32.mrb[0].mxu0
      %v2272 = vpop.f32.mrb[0].mxu0
      %v2273 = vadd.f32 0.0, %v2272
      %v2274 = vpop.f32.mrb[0].mxu0
      %2275 = vmatprep.mubr.bf16.mxu0 %v782
      %2276 = vmatmul.mubr.bf16.gmra.mrb[0].mxu0 %v587
      %v2277 = vpop.f32.mrb[0].mxu0
      %v2278 = vadd.f32 0.0, %v2277
      %v2279 = vpop.f32.mrb[0].mxu0
      %v2280 = vpop.f32.mrb[0].mxu0
      %v2281 = vadd.f32 0.0, %v2280
      %v2282 = vpop.f32.mrb[0].mxu0
      %2283 = vmatprep.mubr.bf16.mxu0 %v794
      %2284 = vmatmul.mubr.bf16.gmra.mrb[0].mxu0 %v588
      %v2285 = vpop.f32.mrb[0].mxu0
      %v2286 = vadd.f32 0.0, %v2285
      %v2287 = vpop.f32.mrb[0].mxu0
      %v2288 = vpop.f32.mrb[0].mxu0
      %v2289 = vadd.f32 0.0, %v2288
      %v2290 = vpop.f32.mrb[0].mxu0
      %2291 = vmatprep.mubr.bf16.mxu0 %v806
      %2292 = vmatmul.mubr.bf16.gmra.mrb[0].mxu0 %v589
      %v2293 = vpop.f32.mrb[0].mxu0
      %v2294 = vadd.f32 0.0, %v2293
      %v2295 = vpop.f32.mrb[0].mxu0
      %v2296 = vpop.f32.mrb[0].mxu0
      %v2297 = vadd.f32 0.0, %v2296
      %v2298 = vpop.f32.mrb[0].mxu0
      %2299 = vmatprep.mubr.bf16.mxu0 %v614
      %2300 = vmatmul.mubr.bf16.gmra.mrb[0].mxu0 0
      %v2301 = vpop.f32.mrb[0].mxu0
      %v2302 = vadd.f32 0.0, %v2301
      %v2303 = vpop.f32.mrb[0].mxu0
      %v2304 = vpop.f32.mrb[0].mxu0
      %v2305 = vadd.f32 0.0, %v2304
      %v2306 = vpop.f32.mrb[0].mxu0
      %2307 = vdwg.mxu0
      %2308 = vmatprep.subr.bf16.mxu0 0
      %2309 = vmatpush1.bf16.msra.mxu0 %v2115
      %2310 = vmatprep.subr.bf16.mxu0 0
      %2311 = vmatpush1.bf16.msra.mxu0 %v2116
      %2312 = vmatprep.subr.bf16.mxu0 0
      %2313 = vmatpush1.bf16.msra.mxu0 %v2117
      %2314 = vmatprep.subr.bf16.mxu0 0
      %2315 = vmatpush1.bf16.msra.mxu0 %v2118
      %2316 = vmatprep.subr.bf16.mxu0 0
      %2317 = vmatpush1.bf16.msra.mxu0 %v2119
      %2318 = vmatprep.subr.bf16.mxu0 0
      %2319 = vmatpush1.bf16.msra.mxu0 %v2120
      %2320 = vmatprep.subr.bf16.mxu0 0
      %2321 = vmatpush1.bf16.msra.mxu0 %v2121
      %2322 = vmatprep.subr.bf16.mxu0 0
      %2323 = vmatpush1.bf16.msra.mxu0 %v2122
      %2324 = vmatprep.subr.bf16.mxu0 0
      %2325 = vmatpush1.bf16.msra.mxu0 0
      %2326 = vmatprep.subr.bf16.mxu0 0
      %2327 = vmatpush1.bf16.msra.mxu0 0
      %2328 = vmatprep.subr.bf16.mxu0 0
      %2329 = vmatpush1.bf16.msra.mxu0 0
      %2330 = vmatprep.subr.bf16.mxu0 0
      %2331 = vmatpush1.bf16.msra.mxu0 0
      %2332 = vmatprep.subr.bf16.mxu0 0
      %2333 = vmatpush1.bf16.msra.mxu0 0
      %2334 = vmatprep.subr.bf16.mxu0 0
      %2335 = vmatpush1.bf16.msra.mxu0 0
      %2336 = vmatprep.subr.bf16.mxu0 0
      %2337 = vmatpush1.bf16.msra.mxu0 0
      %2338 = vmatprep.subr.bf16.mxu0 0
      %2339 = vmatpush1.bf16.msra.mxu0 0
      %2340 = vmatprep.mubr.bf16.mxu0 0
      %2341 = vmatmul.mubr.bf16.gmra.mrb[0].mxu0 %v865
      %v2342 = vpop.f32.mrb[0].mxu0
      %v2343 = vadd.f32 %v2182, %v2342
      %v2344 = vpop.f32.mrb[0].mxu0
      %v2345 = vpop.f32.mrb[0].mxu0
      %v2346 = vadd.f32 %v2185, %v2345
      %v2347 = vpop.f32.mrb[0].mxu0
      %2348 = vmatprep.mubr.bf16.mxu0 0
      %2349 = vmatmul.mubr.bf16.gmra.mrb[0].mxu0 %v868
      %v2350 = vpop.f32.mrb[0].mxu0
      %v2351 = vadd.f32 %v2190, %v2350
      %v2352 = vpop.f32.mrb[0].mxu0
      %v2353 = vpop.f32.mrb[0].mxu0
      %v2354 = vadd.f32 %v2193, %v2353
      %v2355 = vpop.f32.mrb[0].mxu0
      %2356 = vmatprep.mubr.bf16.mxu0 0
      %2357 = vmatmul.mubr.bf16.gmra.mrb[0].mxu0 %v871
      %v2358 = vpop.f32.mrb[0].mxu0
      %v2359 = vadd.f32 %v2198, %v2358
      %v2360 = vpop.f32.mrb[0].mxu0
      %v2361 = vpop.f32.mrb[0].mxu0
      %v2362 = vadd.f32 %v2201, %v2361
      %v2363 = vpop.f32.mrb[0].mxu0
      %2364 = vmatprep.mubr.bf16.mxu0 0
      %2365 = vmatmul.mubr.bf16.gmra.mrb[0].mxu0 %v874
      %v2366 = vpop.f32.mrb[0].mxu0
      %v2367 = vadd.f32 %v2206, %v2366
      %v2368 = vpop.f32.mrb[0].mxu0
      %v2369 = vpop.f32.mrb[0].mxu0
      %v2370 = vadd.f32 %v2209, %v2369
      %v2371 = vpop.f32.mrb[0].mxu0
      %2372 = vmatprep.mubr.bf16.mxu0 0
      %2373 = vmatmul.mubr.bf16.gmra.mrb[0].mxu0 %v877
      %v2374 = vpop.f32.mrb[0].mxu0
      %v2375 = vadd.f32 %v2214, %v2374
      %v2376 = vpop.f32.mrb[0].mxu0
      %v2377 = vpop.f32.mrb[0].mxu0
      %v2378 = vadd.f32 %v2217, %v2377
      %v2379 = vpop.f32.mrb[0].mxu0
      %2380 = vmatprep.mubr.bf16.mxu0 0
      %2381 = vmatmul.mubr.bf16.gmra.mrb[0].mxu0 %v880
      %v2382 = vpop.f32.mrb[0].mxu0
      %v2383 = vadd.f32 %v2222, %v2382
      %v2384 = vpop.f32.mrb[0].mxu0
      %v2385 = vpop.f32.mrb[0].mxu0
      %v2386 = vadd.f32 %v2225, %v2385
      %v2387 = vpop.f32.mrb[0].mxu0
      %2388 = vmatprep.mubr.bf16.mxu0 0
      %2389 = vmatmul.mubr.bf16.gmra.mrb[0].mxu0 %v883
      %v2390 = vpop.f32.mrb[0].mxu0
      %v2391 = vadd.f32 %v2230, %v2390
      %v2392 = vpop.f32.mrb[0].mxu0
      %v2393 = vpop.f32.mrb[0].mxu0
      %v2394 = vadd.f32 %v2233, %v2393
      %v2395 = vpop.f32.mrb[0].mxu0
      %2396 = vmatprep.mubr.bf16.mxu0 0
      %2397 = vmatmul.mubr.bf16.gmra.mrb[0].mxu0 %v886
      %v2398 = vpop.f32.mrb[0].mxu0
      %v2399 = vadd.f32 %v2238, %v2398
      %v2400 = vpop.f32.mrb[0].mxu0
      %v2401 = vpop.f32.mrb[0].mxu0
      %v2402 = vadd.f32 %v2241, %v2401
      %v2403 = vpop.f32.mrb[0].mxu0
      %2404 = vmatprep.mubr.bf16.mxu0 0
      %2405 = vmatmul.mubr.bf16.gmra.mrb[0].mxu0 %v889
      %v2406 = vpop.f32.mrb[0].mxu0
      %v2407 = vadd.f32 %v2246, %v2406
      %v2408 = vpop.f32.mrb[0].mxu0
      %v2409 = vpop.f32.mrb[0].mxu0
      %v2410 = vadd.f32 %v2249, %v2409
      %v2411 = vpop.f32.mrb[0].mxu0
      %2412 = vmatprep.mubr.bf16.mxu0 0
      %2413 = vmatmul.mubr.bf16.gmra.mrb[0].mxu0 %v892
      %v2414 = vpop.f32.mrb[0].mxu0
      %v2415 = vadd.f32 %v2254, %v2414
      %v2416 = vpop.f32.mrb[0].mxu0
      %v2417 = vpop.f32.mrb[0].mxu0
      %v2418 = vadd.f32 %v2257, %v2417
      %v2419 = vpop.f32.mrb[0].mxu0
      %2420 = vmatprep.mubr.bf16.mxu0 0
      %2421 = vmatmul.mubr.bf16.gmra.mrb[0].mxu0 %v895
      %v2422 = vpop.f32.mrb[0].mxu0
      %v2423 = vadd.f32 %v2262, %v2422
      %v2424 = vpop.f32.mrb[0].mxu0
      %v2425 = vpop.f32.mrb[0].mxu0
      %v2426 = vadd.f32 %v2265, %v2425
      %v2427 = vpop.f32.mrb[0].mxu0
      %2428 = vmatprep.mubr.bf16.mxu0 0
      %2429 = vmatmul.mubr.bf16.gmra.mrb[0].mxu0 %v898
      %v2430 = vpop.f32.mrb[0].mxu0
      %v2431 = vadd.f32 %v2270, %v2430
      %v2432 = vpop.f32.mrb[0].mxu0
      %v2433 = vpop.f32.mrb[0].mxu0
      %v2434 = vadd.f32 %v2273, %v2433
      %v2435 = vpop.f32.mrb[0].mxu0
      %2436 = vmatprep.mubr.bf16.mxu0 0
      %2437 = vmatmul.mubr.bf16.gmra.mrb[0].mxu0 %v901
      %v2438 = vpop.f32.mrb[0].mxu0
      %v2439 = vadd.f32 %v2278, %v2438
      %v2440 = vpop.f32.mrb[0].mxu0
      %v2441 = vpop.f32.mrb[0].mxu0
      %v2442 = vadd.f32 %v2281, %v2441
      %v2443 = vpop.f32.mrb[0].mxu0
      %2444 = vmatprep.mubr.bf16.mxu0 0
      %2445 = vmatmul.mubr.bf16.gmra.mrb[0].mxu0 %v904
      %v2446 = vpop.f32.mrb[0].mxu0
      %v2447 = vadd.f32 %v2286, %v2446
      %v2448 = vpop.f32.mrb[0].mxu0
      %v2449 = vpop.f32.mrb[0].mxu0
      %v2450 = vadd.f32 %v2289, %v2449
      %v2451 = vpop.f32.mrb[0].mxu0
      %2452 = vmatprep.mubr.bf16.mxu0 0
      %2453 = vmatmul.mubr.bf16.gmra.mrb[0].mxu0 %v907
      %v2454 = vpop.f32.mrb[0].mxu0
      %v2455 = vadd.f32 %v2294, %v2454
      %v2456 = vpop.f32.mrb[0].mxu0
      %v2457 = vpop.f32.mrb[0].mxu0
      %v2458 = vadd.f32 %v2297, %v2457
      %v2459 = vpop.f32.mrb[0].mxu0
      %2460 = vmatprep.mubr.bf16.mxu0 0
      %2461 = vmatmul.mubr.bf16.gmra.mrb[0].mxu0 %v859
      %v2462 = vpop.f32.mrb[0].mxu0
      %v2463 = vadd.f32 %v2302, %v2462
      %v2464 = vpop.f32.mrb[0].mxu0
      %v2465 = vpop.f32.mrb[0].mxu0
      %v2466 = vadd.f32 %v2305, %v2465
      %v2467 = vpop.f32.mrb[0].mxu0
      %2468 = vdwg.mxu0
      %v2469 = vadd.f32 %v1828, %v2343
      %v2470 = vadd.f32 %v1831, %v2346
      %v2471 = vadd.f32 %v1836, %v2351
      %v2472 = vadd.f32 %v1839, %v2354
      %v2473 = vadd.f32 %v1844, %v2359
      %v2474 = vadd.f32 %v1847, %v2362
      %v2475 = vadd.f32 %v1852, %v2367
      %v2476 = vadd.f32 %v1855, %v2370
      %v2477 = vadd.f32 %v1860, %v2375
      %v2478 = vadd.f32 %v1863, %v2378
      %v2479 = vadd.f32 %v1868, %v2383
      %v2480 = vadd.f32 %v1871, %v2386
      %v2481 = vadd.f32 %v1876, %v2391
      %v2482 = vadd.f32 %v1879, %v2394
      %v2483 = vadd.f32 %v1884, %v2399
      %v2484 = vadd.f32 %v1887, %v2402
      %v2485 = vadd.f32 %v1892, %v2407
      %v2486 = vadd.f32 %v1895, %v2410
      %v2487 = vadd.f32 %v1900, %v2415
      %v2488 = vadd.f32 %v1903, %v2418
      %v2489 = vadd.f32 %v1908, %v2423
      %v2490 = vadd.f32 %v1911, %v2426
      %v2491 = vadd.f32 %v1916, %v2431
      %v2492 = vadd.f32 %v1919, %v2434
      %v2493 = vadd.f32 %v1924, %v2439
      %v2494 = vadd.f32 %v1927, %v2442
      %v2495 = vadd.f32 %v1932, %v2447
      %v2496 = vadd.f32 %v1935, %v2450
      %v2497 = vadd.f32 %v1940, %v2455
      %v2498 = vadd.f32 %v1943, %v2458
      %v2499 = vadd.f32 %v1948, %v2463
      %v2500 = vadd.f32 %v1951, %v2466
      %v2501 = vpack.c.bf16 %v2470, %v2469
      %v2502 = vpack.c.bf16 %v2472, %v2471
      %v2503 = vpack.c.bf16 %v2474, %v2473
      %v2504 = vpack.c.bf16 %v2476, %v2475
      %v2505 = vpack.c.bf16 %v2478, %v2477
      %v2506 = vpack.c.bf16 %v2480, %v2479
      %v2507 = vpack.c.bf16 %v2482, %v2481
      %v2508 = vpack.c.bf16 %v2484, %v2483
      %v2509 = vpack.c.bf16 %v2486, %v2485
      %v2510 = vpack.c.bf16 %v2488, %v2487
      %v2511 = vpack.c.bf16 %v2490, %v2489
      %v2512 = vpack.c.bf16 %v2492, %v2491
      %v2513 = vpack.c.bf16 %v2494, %v2493
      %v2514 = vpack.c.bf16 %v2496, %v2495
      %v2515 = vpack.c.bf16 %v2498, %v2497
      %v2516 = vpack.c.bf16 %v2500, %v2499
      %v2533 = vunpack.c.l.b16 %v2501
      %v2534 = vunpack.c.h.b16 %v2501
      %v2535 = vunpack.c.l.b16 %v2502
      %v2536 = vunpack.c.h.b16 %v2502
      %v2537 = vunpack.c.l.b16 %v2503
      %v2538 = vunpack.c.h.b16 %v2503
      %v2539 = vunpack.c.l.b16 %v2504
      %v2540 = vunpack.c.h.b16 %v2504
      %v2541 = vunpack.c.l.b16 %v2505
      %v2542 = vunpack.c.h.b16 %v2505
      %v2543 = vunpack.c.l.b16 %v2506
      %v2544 = vunpack.c.h.b16 %v2506
      %v2545 = vunpack.c.l.b16 %v2507
      %v2546 = vunpack.c.h.b16 %v2507
      %v2547 = vunpack.c.l.b16 %v2508
      %v2548 = vunpack.c.h.b16 %v2508
      %v2549 = vunpack.c.l.b16 %v2509
      %v2550 = vunpack.c.h.b16 %v2509
      %v2551 = vunpack.c.l.b16 %v2510
      %v2552 = vunpack.c.h.b16 %v2510
      %v2553 = vunpack.c.l.b16 %v2511
      %v2554 = vunpack.c.h.b16 %v2511
      %v2555 = vunpack.c.l.b16 %v2512
      %v2556 = vunpack.c.h.b16 %v2512
      %v2557 = vunpack.c.l.b16 %v2513
      %v2558 = vunpack.c.h.b16 %v2513
      %v2559 = vunpack.c.l.b16 %v2514
      %v2560 = vunpack.c.h.b16 %v2514
      %v2561 = vunpack.c.l.b16 %v2515
      %v2562 = vunpack.c.h.b16 %v2515
      %v2563 = vunpack.c.l.b16 %v2516
      %v2564 = vunpack.c.h.b16 %v2516
      %v2565 = vpack.c.b16 %v2533, %v2533
      %v2566 = vpack.c.b16 %v2534, %v2534
      %v2567 = vpack.c.b16 %v2535, %v2535
      %v2568 = vpack.c.b16 %v2536, %v2536
      %v2569 = vpack.c.b16 %v2537, %v2537
      %v2570 = vpack.c.b16 %v2538, %v2538
      %v2571 = vpack.c.b16 %v2539, %v2539
      %v2572 = vpack.c.b16 %v2540, %v2540
      %v2573 = vpack.c.b16 %v2541, %v2541
      %v2574 = vpack.c.b16 %v2542, %v2542
      %v2575 = vpack.c.b16 %v2543, %v2543
      %v2576 = vpack.c.b16 %v2544, %v2544
      %v2577 = vpack.c.b16 %v2545, %v2545
      %v2578 = vpack.c.b16 %v2546, %v2546
      %v2579 = vpack.c.b16 %v2547, %v2547
      %v2580 = vpack.c.b16 %v2548, %v2548
      %v2581 = vpack.c.b16 %v2549, %v2549
      %v2582 = vpack.c.b16 %v2550, %v2550
      %v2583 = vpack.c.b16 %v2551, %v2551
      %v2584 = vpack.c.b16 %v2552, %v2552
      %v2585 = vpack.c.b16 %v2553, %v2553
      %v2586 = vpack.c.b16 %v2554, %v2554
      %v2587 = vpack.c.b16 %v2555, %v2555
      %v2588 = vpack.c.b16 %v2556, %v2556
      %v2589 = vpack.c.b16 %v2557, %v2557
      %v2590 = vpack.c.b16 %v2558, %v2558
      %v2591 = vpack.c.b16 %v2559, %v2559
      %v2592 = vpack.c.b16 %v2560, %v2560
      %v2593 = vpack.c.b16 %v2561, %v2561
      %v2594 = vpack.c.b16 %v2562, %v2562
      %v2595 = vpack.c.b16 %v2563, %v2563
      %v2596 = vpack.c.b16 %v2564, %v2564
      %2629 = vst [vmem:[%s231] sm:$0xf] %v2565
      %2630 = vst [vmem:[%s231 + $0x4] sm:$0xf] %v2566
      %2631 = vst [vmem:[%s231 + $0x8] sm:$0xf] %v2567
      %2632 = vst [vmem:[%s231 + $0xc] sm:$0xf] %v2568
      %2633 = vst [vmem:[%s231 + $0x10] sm:$0xf] %v2569
      %2634 = vst [vmem:[%s231 + $0x14] sm:$0xf] %v2570
      %2635 = vst [vmem:[%s231 + $0x18] sm:$0xf] %v2571
      %2636 = vst [vmem:[%s231 + $0x1c] sm:$0xf] %v2572
      %2637 = vst [vmem:[%s231 + $0x20] sm:$0xf] %v2573
      %2638 = vst [vmem:[%s231 + $0x24] sm:$0xf] %v2574
      %2639 = vst [vmem:[%s231 + $0x28] sm:$0xf] %v2575
      %2640 = vst [vmem:[%s231 + $0x2c] sm:$0xf] %v2576
      %2641 = vst [vmem:[%s231 + $0x30] sm:$0xf] %v2577
      %2642 = vst [vmem:[%s231 + $0x34] sm:$0xf] %v2578
      %2643 = vst [vmem:[%s231 + $0x38] sm:$0xf] %v2579
      %2644 = vst [vmem:[%s231 + $0x3c] sm:$0xf] %v2580
      %2645 = vst [vmem:[%s231 + $0x40] sm:$0xf] %v2581
      %2646 = vst [vmem:[%s231 + $0x44] sm:$0xf] %v2582
      %2647 = vst [vmem:[%s231 + $0x48] sm:$0xf] %v2583
      %2648 = vst [vmem:[%s231 + $0x4c] sm:$0xf] %v2584
      %2649 = vst [vmem:[%s231 + $0x50] sm:$0xf] %v2585
      %2650 = vst [vmem:[%s231 + $0x54] sm:$0xf] %v2586
      %2651 = vst [vmem:[%s231 + $0x58] sm:$0xf] %v2587
      %2652 = vst [vmem:[%s231 + $0x5c] sm:$0xf] %v2588
      %2653 = vst [vmem:[%s231 + $0x60] sm:$0xf] %v2589
      %2654 = vst [vmem:[%s231 + $0x64] sm:$0xf] %v2590
      %2655 = vst [vmem:[%s231 + $0x68] sm:$0xf] %v2591
      %2656 = vst [vmem:[%s231 + $0x6c] sm:$0xf] %v2592
      %2657 = vst [vmem:[%s231 + $0x70] sm:$0xf] %v2593
      %2658 = vst [vmem:[%s231 + $0x74] sm:$0xf] %v2594
      %2659 = vst [vmem:[%s231 + $0x78] sm:$0xf] %v2595
      %2660 = vst [vmem:[%s231 + $0x7c] sm:$0xf] %v2596
      %v2661 = vadd.f32 %v2469, %v2470
      %v2662 = vadd.f32 %v2661, %v2471
      %v2663 = vadd.f32 %v2662, %v2472
      %v2664 = vadd.f32 %v2663, %v2473
      %v2665 = vadd.f32 %v2664, %v2474
      %v2666 = vadd.f32 %v2665, %v2475
      %v2667 = vadd.f32 %v2666, %v2476
      %v2668 = vadd.f32 %v2667, %v2477
      %v2669 = vadd.f32 %v2668, %v2478
      %v2670 = vadd.f32 %v2669, %v2479
      %v2671 = vadd.f32 %v2670, %v2480
      %v2672 = vadd.f32 %v2671, %v2481
      %v2673 = vadd.f32 %v2672, %v2482
      %v2674 = vadd.f32 %v2673, %v2483
      %v2675 = vadd.f32 %v2674, %v2484
      %v2676 = vadd.f32 %v2675, %v2485
      %v2677 = vadd.f32 %v2676, %v2486
      %v2678 = vadd.f32 %v2677, %v2487
      %v2679 = vadd.f32 %v2678, %v2488
      %v2680 = vadd.f32 %v2679, %v2489
      %v2681 = vadd.f32 %v2680, %v2490
      %v2682 = vadd.f32 %v2681, %v2491
      %v2683 = vadd.f32 %v2682, %v2492
      %v2684 = vadd.f32 %v2683, %v2493
      %v2685 = vadd.f32 %v2684, %v2494
      %v2686 = vadd.f32 %v2685, %v2495
      %v2687 = vadd.f32 %v2686, %v2496
      %v2688 = vadd.f32 %v2687, %v2497
      %v2689 = vadd.f32 %v2688, %v2498
      %v2690 = vadd.f32 %v2689, %v2499
      %v2691 = vadd.f32 %v2690, %v2500
      %v2692 = vrot.slane %v2691, 4
      %v2693 = vadd.f32 %v2691, %v2692
      %v2694 = vrot.slane %v2693, 2
      %v2695 = vadd.f32 %v2693, %v2694
      %v2696 = vrot.slane %v2695, 1
      %v2697 = vadd.f32 %v2695, %v2696
      %v2698 = vmul.f32 %v2469, %v2469
      %v2699 = vmul.f32 %v2470, %v2470
      %v2700 = vmul.f32 %v2471, %v2471
      %v2701 = vmul.f32 %v2472, %v2472
      %v2702 = vmul.f32 %v2473, %v2473
      %v2703 = vmul.f32 %v2474, %v2474
      %v2704 = vmul.f32 %v2475, %v2475
      %v2705 = vmul.f32 %v2476, %v2476
      %v2706 = vmul.f32 %v2477, %v2477
      %v2707 = vmul.f32 %v2478, %v2478
      %v2708 = vmul.f32 %v2479, %v2479
      %v2709 = vmul.f32 %v2480, %v2480
      %v2710 = vmul.f32 %v2481, %v2481
      %v2711 = vmul.f32 %v2482, %v2482
      %v2712 = vmul.f32 %v2483, %v2483
      %v2713 = vmul.f32 %v2484, %v2484
      %v2714 = vmul.f32 %v2485, %v2485
      %v2715 = vmul.f32 %v2486, %v2486
      %v2716 = vmul.f32 %v2487, %v2487
      %v2717 = vmul.f32 %v2488, %v2488
      %v2718 = vmul.f32 %v2489, %v2489
      %v2719 = vmul.f32 %v2490, %v2490
      %v2720 = vmul.f32 %v2491, %v2491
      %v2721 = vmul.f32 %v2492, %v2492
      %v2722 = vmul.f32 %v2493, %v2493
      %v2723 = vmul.f32 %v2494, %v2494
      %v2724 = vmul.f32 %v2495, %v2495
      %v2725 = vmul.f32 %v2496, %v2496
      %v2726 = vmul.f32 %v2497, %v2497
      %v2727 = vmul.f32 %v2498, %v2498
      %v2728 = vmul.f32 %v2499, %v2499
      %v2729 = vmul.f32 %v2500, %v2500
      %v2730 = vadd.f32 %v2698, %v2699
      %v2731 = vadd.f32 %v2730, %v2700
      %v2732 = vadd.f32 %v2731, %v2701
      %v2733 = vadd.f32 %v2732, %v2702
      %v2734 = vadd.f32 %v2733, %v2703
      %v2735 = vadd.f32 %v2734, %v2704
      %v2736 = vadd.f32 %v2735, %v2705
      %v2737 = vadd.f32 %v2736, %v2706
      %v2738 = vadd.f32 %v2737, %v2707
      %v2739 = vadd.f32 %v2738, %v2708
      %v2740 = vadd.f32 %v2739, %v2709
      %v2741 = vadd.f32 %v2740, %v2710
      %v2742 = vadd.f32 %v2741, %v2711
      %v2743 = vadd.f32 %v2742, %v2712
      %v2744 = vadd.f32 %v2743, %v2713
      %v2745 = vadd.f32 %v2744, %v2714
      %v2746 = vadd.f32 %v2745, %v2715
      %v2747 = vadd.f32 %v2746, %v2716
      %v2748 = vadd.f32 %v2747, %v2717
      %v2749 = vadd.f32 %v2748, %v2718
      %v2750 = vadd.f32 %v2749, %v2719
      %v2751 = vadd.f32 %v2750, %v2720
      %v2752 = vadd.f32 %v2751, %v2721
      %v2753 = vadd.f32 %v2752, %v2722
      %v2754 = vadd.f32 %v2753, %v2723
      %v2755 = vadd.f32 %v2754, %v2724
      %v2756 = vadd.f32 %v2755, %v2725
      %v2757 = vadd.f32 %v2756, %v2726
      %v2758 = vadd.f32 %v2757, %v2727
      %v2759 = vadd.f32 %v2758, %v2728
      %v2760 = vadd.f32 %v2759, %v2729
      %v2761 = vrot.slane %v2760, 4
      %v2762 = vadd.f32 %v2760, %v2761
      %v2763 = vrot.slane %v2762, 2
      %v2764 = vadd.f32 %v2762, %v2763
      %v2765 = vrot.slane %v2764, 1
      %v2766 = vadd.f32 %v2764, %v2765
      %vm2767 = vcmask 1040384
      %v2768 = vsel %vm2767, %v2697, %v2766
      %2769 = vst [vmem:[%s235] sm:$0x3] %v2768
      %p2770 = scmp.lt.s32.totalorder %s17, 1
      %s2771 = scalar_select %p2770, %s17, 1
      %s2772 = smul.addr %s2771, 32
      %s2773 = smul.addr %s2772, 4
      %s2774 = scalar_lea.vmem %s4, %s2773
      %p2775 = scmp.lt.s32.totalorder %s17, 1
      %s2776 = scalar_select %p2775, %s17, 1
      %s2777 = smul.addr %s2776, 2
      %s2778 = scalar_lea.vmem %s5, %s2777
      // Predicated region
      $region37: #{basic_block.4} parent=35 // pred_check
        %p2779 = pneg %p124
      $region38: #{basic_block.4} parent=35 // pred_check_branch
        %2781 = sbr.rel (%p2779) target = $region40
      $region39: #{basic_block.4} parent=35 // pred_region
        _
      $region40: #{basic_block.4} parent=35 // pred_fallthru
        _
      // Predicated region
      $region41: #{basic_block.4} parent=35 // pred_check
        %p2782 = pneg %p150
      $region42: #{basic_block.4} parent=35 // pred_check_branch
        %2784 = sbr.rel (%p2782) target = $region44
      $region43: #{basic_block.4} parent=35 // pred_region
        _
      $region44: #{basic_block.4} parent=35 // pred_fallthru
        _
    $region36: #{basic_block.4} parent=5 // pred_fallthru
      _
    %p2785 = scmp.le.s32.totalorder 2, %s12
    // Predicated region
    $region45: #{basic_block.4} parent=5 // pred_check
      %p2786 = pneg %p2785
    $region46: #{basic_block.4} parent=5 // pred_check_branch
      %2788 = sbr.rel (%p2786) target = $region48
    $region47: #{basic_block.4} parent=5 // pred_region
      %s2789 = ssub.s32 %s12, 2
      // Predicated region
      $region49: #{basic_block.4} parent=47 // pred_check
        %p2790 = pneg %p130
      $region50: #{basic_block.4} parent=47 // pred_check_branch
        %2792 = sbr.rel (%p2790) target = $region52
      $region51: #{basic_block.4} parent=47 // pred_region
        %p2793 = scmp.lt.s32.totalorder %s18, 1
        %s2794 = scalar_select %p2793, %s18, 1
        %s2795 = smul.addr %s2794, 32
        %s2796 = smul.addr %s2795, 4
        %s2797 = scalar_lea.vmem %s4, %s2796
      $region52: #{basic_block.4} parent=47 // pred_fallthru
        _
      // Predicated region
      $region53: #{basic_block.4} parent=47 // pred_check
        %p2798 = pneg %p156
      $region54: #{basic_block.4} parent=47 // pred_check_branch
        %2800 = sbr.rel (%p2798) target = $region56
      $region55: #{basic_block.4} parent=47 // pred_region
        %p2801 = scmp.lt.s32.totalorder %s18, 1
        %s2802 = scalar_select %p2801, %s18, 1
        %s2803 = smul.addr %s2802, 2
        %s2804 = scalar_lea.vmem %s5, %s2803
      $region56: #{basic_block.4} parent=47 // pred_fallthru
        _
    $region48: #{basic_block.4} parent=5 // pred_fallthru
      _
  $region6: #{basic_block.4} parent=0 // loop_footer
    %s16 = sadd.s32 1, %s12
  $region7: #{basic_block.4} parent=0 // loop_footer_branch
    %11 = sbr.rel target = $region3
  $region8: #{basic_block.4} parent=0 // loop_exit
    _

</llo_original>
